<compile_context>
chip_gen: v6e
topology: v6e:2x2x1
jax: 0.10.0
libtpu: 0.0.40
codegen_flags: <defaults>
</compile_context>

<pallas_src>
import numpy as np
import jax
import jax.numpy as jnp
from jax.experimental import pallas as pl
from jax.experimental.pallas import tpu as pltpu


# ----------------------------- configuration -----------------------------
SR = 16000            # sample rate (Hz)
WLEN = 400            # input waveform length (samples)
F1, L1 = 8, 65        # sinc-conv: filters, kernel length (odd, symmetric)
F2, L2 = 8, 5         # conv2
F3, L3 = 8, 5         # conv3
POOL = 3              # max-pool window (== stride, floor mode, like F.max_pool1d)
FC_DIM = 32           # MLP hidden width
NUM_CLASSES = 10
MIN_LOW_HZ = 50.0
MIN_BAND_HZ = 50.0
LRELU_SLOPE = 0.2     # SincNet uses nn.LeakyReLU(0.2)
LN_EPS = 1e-6         # SincNet custom LayerNorm eps

# derived sizes
T1R = WLEN - L1 + 1   # 336  (valid sinc-conv output)
T1P = T1R // POOL     # 112
T2R = T1P - L2 + 1    # 108
T2P = T2R // POOL     # 36
T3R = T2P - L3 + 1    # 32
T3P = T3R // POOL     # 10
FLAT = F3 * T3P       # 80
NTAP = L1 // 2 + 1    # 33 folded (symmetric) sinc taps

# ----------------------------- packed-parameter layout -----------------------------
_P8_FIELDS = [("filt", NTAP), ("ln1_g", T1P), ("ln1_b", T1P),
              ("ln2_g", T2P), ("ln2_b", T2P), ("ln3_g", T3P), ("ln3_b", T3P),
              ("w2", L2 * F1), ("b2", 1), ("w3", L3 * F2), ("b3", 1)]
_P1_FIELDS = [("ln0_g", WLEN), ("ln0_b", WLEN), ("fc1_b", FC_DIM),
              ("lnf1_g", FC_DIM), ("lnf1_b", FC_DIM), ("fc2_b", FC_DIM),
              ("lnf2_g", FC_DIM), ("lnf2_b", FC_DIM), ("cls_b", NUM_CLASSES)]


def _offsets(fields):
    off, table = 0, {}
    for name, w in fields:
        table[name] = (off, w)
        off += w
    return table, off


P8_OFF, P8_TOTAL = _offsets(_P8_FIELDS)   # 431 lanes, 8 rows
P1_OFF, P1_TOTAL = _offsets(_P1_FIELDS)   # 1002 lanes, 1 row


# ----------------------------- fused Pallas kernel -----------------------------
def _sincnet_kernel(x_ref, p8_ref, p1_ref, wmlp_ref,
                    sel1_ref, sel2_ref, sel3_ref, out_ref):
    f32 = jnp.float32

    P8 = p8_ref[...]      # [8, 431]   packed 8-row params
    P1 = p1_ref[...]      # [1, 1002]  packed 1-row params
    WM = wmlp_ref[...]    # [144, 32]  fc1 (80) | fc2 (32) | classifier (32, padded)

    def gp8(name):
        off, w = P8_OFF[name]
        return P8[:, off:off + w]

    def gp1(name):
        off, w = P1_OFF[name]
        return P1[:, off:off + w]

    def layer_norm(v, g, b, act):
        # SincNet custom LayerNorm: per-row stats over the LAST axis, unbiased
        # std (torch.std default), eps added to std; y = g*(v-mean)/(std+eps)+b.
        # One-pass (sum, sum-of-squares) statistics; exact reciprocal.
        n = v.shape[-1]
        s1 = jnp.sum(v, axis=-1, keepdims=True)
        s2 = jnp.sum(v * v, axis=-1, keepdims=True)
        mean = s1 * (1.0 / n)
        var = jnp.maximum(s2 - s1 * mean, 0.0) * (1.0 / (n - 1))
        inv = pl.reciprocal(jnp.sqrt(var) + LN_EPS, approx=False)
        y = g * ((v - mean) * inv) + b
        if act:
            y = jnp.maximum(y, LRELU_SLOPE * y)      # LeakyReLU(0.2)
        return y

    def pool3(v, sel_ref):
        # F.max_pool1d(kernel=3, stride=3, floor): sliding max of 3 lane-shifted
        # slices, then exact stride-3 downsample via a precomputed 0/1 selection
        # matmul (lane-dense, MXU; selector DMA'd once from the host).
        t = v.shape[-1]
        m = jnp.maximum(v[:, 0:t - 2], jnp.maximum(v[:, 1:t - 1], v[:, 2:t]))
        return jnp.dot(m, sel_ref[...], preferred_element_type=f32)

    def conv_stack(h, w, b, L):
        # valid 1-D conv, stride 1, as ONE MXU dot: stack the L shifted slices
        # along the contraction axis.  h: [C_in, T]; w: [C_out, L*C_in] with
        # column index = l*C_in + c (prepared on the host).
        t_out = h.shape[-1] - L + 1
        hs = jnp.concatenate([h[:, l:l + t_out] for l in range(L)], axis=0)
        return jnp.dot(w, hs, preferred_element_type=f32) + b

    x = x_ref[0].astype(f32)                                  # [1, WLEN]

    # ---- input LayerNorm (cnn_use_laynorm_inp), no activation ----
    x = layer_norm(x, gp1("ln0_g"), gp1("ln0_b"), act=False)

    # ---- sinc conv (C_in=1, no bias): symmetric taps folded pairwise, then one
    #      MXU dot over the 33-deep folded window stack; abs() after.
    rows = [x[:, l:l + T1R] + x[:, (L1 - 1 - l):(L1 - 1 - l) + T1R]
            for l in range(L1 // 2)]
    rows.append(x[:, L1 // 2:L1 // 2 + T1R])
    win = jnp.concatenate(rows, axis=0)                       # [33, 336]
    h = jnp.abs(jnp.dot(gp8("filt"), win, preferred_element_type=f32))  # [8, 336]

    h = pool3(h, sel1_ref)                                    # [8, 112]
    h = layer_norm(h, gp8("ln1_g"), gp8("ln1_b"), act=True)

    h = conv_stack(h, gp8("w2"), gp8("b2"), L2)               # [8, 108]
    h = pool3(h, sel2_ref)                                    # [8, 36]
    h = layer_norm(h, gp8("ln2_g"), gp8("ln2_b"), act=True)

    h = conv_stack(h, gp8("w3"), gp8("b3"), L3)               # [8, 32]
    h = pool3(h, sel3_ref)                                    # [8, 10]
    h = layer_norm(h, gp8("ln3_g"), gp8("ln3_b"), act=True)

    # ---- flatten (channel-major, == torch .view(B,-1)) via lane concat, then
    #      MLP: fc1 -> LN -> lrelu -> fc2 -> LN -> lrelu -> classifier.
    flat = jnp.concatenate([h[c:c + 1, :] for c in range(F3)], axis=1)   # [1, 80]
    fc1_w = WM[0:FLAT, :]
    fc2_w = WM[FLAT:FLAT + FC_DIM, :]
    cls_w = WM[FLAT + FC_DIM:FLAT + 2 * FC_DIM, 0:NUM_CLASSES]

    z = jnp.dot(flat, fc1_w, preferred_element_type=f32) + gp1("fc1_b")
    z = layer_norm(z, gp1("lnf1_g"), gp1("lnf1_b"), act=True)
    z = jnp.dot(z, fc2_w, preferred_element_type=f32) + gp1("fc2_b")
    z = layer_norm(z, gp1("lnf2_g"), gp1("lnf2_b"), act=True)
    logits = jnp.dot(z, cls_w, preferred_element_type=f32) + gp1("cls_b")

    # log_softmax over classes
    m = jnp.max(logits, axis=-1, keepdims=True)
    s = logits - m
    lse = jnp.log(jnp.sum(jnp.exp(s), axis=-1, keepdims=True))
    out_ref[0] = (s - lse).astype(out_ref.dtype)


# ----------------------------- host-side helpers -----------------------------
def build_sinc_filters_folded(low_hz_, band_hz_, kernel_size, sample_rate):
    # SincConv_fast filter construction (mravanelli/SincNet).  Only the left
    # half + center tap are returned ([F, 33]); the right half is the exact
    # mirror of the left and is folded into the window stack inside the kernel.
    low = MIN_LOW_HZ + jnp.abs(low_hz_)                              # [F, 1]
    high = jnp.clip(low + MIN_BAND_HZ + jnp.abs(band_hz_),
                    MIN_LOW_HZ, sample_rate / 2)                     # [F, 1]
    band = (high - low)[:, 0]                                        # [F]

    n = (kernel_size - 1) / 2.0
    n_ = (2.0 * jnp.pi * jnp.arange(-n, 0.0) / sample_rate).reshape(1, -1)   # [1, 32]
    n_lin = jnp.linspace(0.0, (kernel_size / 2) - 1, kernel_size // 2)
    window_ = 0.54 - 0.46 * jnp.cos(2.0 * jnp.pi * n_lin / kernel_size)      # [32]

    f_low = low * n_
    f_high = high * n_
    bp_left = ((jnp.sin(f_high) - jnp.sin(f_low)) / (n_ / 2.0)) * window_    # [F, 32]
    bp_center = 2.0 * band.reshape(-1, 1)                                    # [F, 1]
    band_pass_half = jnp.concatenate([bp_left, bp_center], axis=1)           # [F, 33]
    band_pass_half = band_pass_half / (2.0 * band[:, None])
    # TODO(synk): guard band > 0 (jnp.maximum(band, tiny)) if trained weights
    # are ever loaded; with the synthetic mel init band is strictly positive.
    return band_pass_half.astype(jnp.float32)


def _mel_init(n_filt, sample_rate):
    def to_mel(hz):
        return 2595.0 * np.log10(1.0 + hz / 700.0)

    def to_hz(mel):
        return 700.0 * (10.0 ** (mel / 2595.0) - 1.0)

    low_hz = 30.0
    high_hz = sample_rate / 2 - (MIN_LOW_HZ + MIN_BAND_HZ)
    mel = np.linspace(to_mel(low_hz), to_mel(high_hz), n_filt + 1)
    hz = to_hz(mel)
    low_hz_ = hz[:-1].reshape(-1, 1).astype(np.float32)
    band_hz_ = np.diff(hz).reshape(-1, 1).astype(np.float32)
    return jnp.asarray(low_hz_), jnp.asarray(band_hz_)


def _make_sel(t_in):
    # stride-3 downsample selector for pool3: [t_in-2, t_in//3], 1 where r == 3c
    tp = t_in // POOL
    rows = np.arange(t_in - 2).reshape(-1, 1)
    cols = np.arange(tp).reshape(1, -1)
    return jnp.asarray((rows == POOL * cols).astype(np.float32))


def init_params(key):
    # Deterministic synthetic parameters.  All kernel-friendly packing/layout
    # prep happens ONCE here (not per forward).
    assert F1 == F2 == F3 == 8, "8-row parameter pack assumes equal filter counts"
    ks = jax.random.split(key, 5)
    low_hz_, band_hz_ = _mel_init(F1, SR)

    def normal(k, shape, scale=0.1):
        return scale * jax.random.normal(k, shape, dtype=jnp.float32)

    # conv weights in PyTorch layout [C_out, C_in, L] -> stacked-shift layout
    # [C_out, L*C_in] with column index = l*C_in + c (matches in-kernel concat).
    w2 = normal(ks[0], (F2, F1, L2))
    w3 = normal(ks[1], (F3, F2, L3))
    w2s = jnp.transpose(w2, (0, 2, 1)).reshape(F2, L2 * F1)
    w3s = jnp.transpose(w3, (0, 2, 1)).reshape(F3, L3 * F2)

    fc1_w = normal(ks[2], (FLAT, FC_DIM))        # rows = c*T3P + t (torch flatten)
    fc2_w = normal(ks[3], (FC_DIM, FC_DIM))
    cls_w = normal(ks[4], (FC_DIM, NUM_CLASSES))

    # 8-row pack (everything except the runtime-built sinc filters, which are
    # prepended in the forward): ln1 g/b | ln2 g/b | ln3 g/b | w2 | b2 | w3 | b3
    p8_rest = jnp.concatenate([
        jnp.ones((F1, T1P), jnp.float32), jnp.zeros((F1, T1P), jnp.float32),
        jnp.ones((F2, T2P), jnp.float32), jnp.zeros((F2, T2P), jnp.float32),
        jnp.ones((F3, T3P), jnp.float32), jnp.zeros((F3, T3P), jnp.float32),
        w2s, jnp.zeros((F2, 1), jnp.float32),
        w3s, jnp.zeros((F3, 1), jnp.float32),
    ], axis=1)
    assert p8_rest.shape[1] == P8_TOTAL - NTAP

    # 1-row pack: ln0 g/b | fc1_b | lnf1 g/b | fc2_b | lnf2 g/b | cls_b
    p1 = jnp.concatenate([
        jnp.ones((1, WLEN), jnp.float32), jnp.zeros((1, WLEN), jnp.float32),
        jnp.zeros((1, FC_DIM), jnp.float32),
        jnp.ones((1, FC_DIM), jnp.float32), jnp.zeros((1, FC_DIM), jnp.float32),
        jnp.zeros((1, FC_DIM), jnp.float32),
        jnp.ones((1, FC_DIM), jnp.float32), jnp.zeros((1, FC_DIM), jnp.float32),
        jnp.zeros((1, NUM_CLASSES), jnp.float32),
    ], axis=1)
    assert p1.shape[1] == P1_TOTAL

    # MLP weights stacked along rows (classifier lane-padded to FC_DIM).
    cls_w_pad = jnp.concatenate(
        [cls_w, jnp.zeros((FC_DIM, FC_DIM - NUM_CLASSES), jnp.float32)], axis=1)
    wmlp = jnp.concatenate([fc1_w, fc2_w, cls_w_pad], axis=0)     # [144, 32]

    return {
        "low_hz": low_hz_, "band_hz": band_hz_,
        "p8_rest": p8_rest, "p1": p1, "wmlp": wmlp,
        "sel1": _make_sel(T1R), "sel2": _make_sel(T2R), "sel3": _make_sel(T3R),
    }


def _full_spec(arr):
    nd = arr.ndim
    return pl.BlockSpec(tuple(arr.shape), lambda i, _nd=nd: (0,) * _nd)


# ----------------------------- forward (plain JAX glue) -----------------------------
def sincnet_forward(params, x):
    # x: [B, WLEN] raw waveform (float32).  One fused VMEM-resident kernel,
    # gridded over the batch (1 sample per step; parallel across TCs on v7x).
    B = x.shape[0]
    filt_half = build_sinc_filters_folded(params["low_hz"], params["band_hz"],
                                          L1, SR)                 # [F1, 33]
    p8 = jnp.concatenate([filt_half, params["p8_rest"]], axis=1)  # [8, P8_TOTAL]
    x3 = x.astype(jnp.float32)[:, None, :]                        # [B, 1, WLEN]

    out = pl.pallas_call(
        _sincnet_kernel,
        out_shape=jax.ShapeDtypeStruct((B, 1, NUM_CLASSES), jnp.float32),
        grid=(B,),
        in_specs=[
            pl.BlockSpec((1, 1, WLEN), lambda i: (i, 0, 0)),
            _full_spec(p8), _full_spec(params["p1"]), _full_spec(params["wmlp"]),
            _full_spec(params["sel1"]), _full_spec(params["sel2"]),
            _full_spec(params["sel3"]),
        ],
        out_specs=pl.BlockSpec((1, 1, NUM_CLASSES), lambda i: (i, 0, 0)),
        compiler_params=pltpu.CompilerParams(dimension_semantics=("parallel",)),
        cost_estimate=pl.CostEstimate(flops=3_000_000, transcendentals=4_000,
                                      bytes_accessed=700_000),
    )(x3, p8, params["p1"], params["wmlp"],
      params["sel1"], params["sel2"], params["sel3"])
    return out[:, 0, :]


if __name__ == "__main__":
    key = jax.random.PRNGKey(0)
    k_param, k_data = jax.random.split(key)
    params = init_params(k_param)
    x = jax.random.normal(k_data, (2, WLEN), dtype=jnp.float32)    # [batch, samples]

    fwd = jax.jit(sincnet_forward)
    out = jax.block_until_ready(fwd(params, x))

    assert out.shape == (2, NUM_CLASSES)
    assert bool(jnp.all(jnp.isfinite(out)))
    # log_softmax rows must sum (in prob space) to 1
    assert bool(jnp.allclose(jnp.sum(jnp.exp(out), axis=-1), 1.0, atol=1e-4))
    print("KERNEL_OK")
</pallas_src>

<mosaic_0001>
module attributes {stable_mosaic.version = 11 : i64} {
  func.func @_sincnet_kernel(%arg0: i32, %arg1: memref<1x1x400xf32, #tpu.memory_space<vmem>>, %arg2: memref<8x431xf32, #tpu.memory_space<vmem>>, %arg3: memref<1x1002xf32, #tpu.memory_space<vmem>>, %arg4: memref<144x32xf32, #tpu.memory_space<vmem>>, %arg5: memref<334x112xf32, #tpu.memory_space<vmem>>, %arg6: memref<106x36xf32, #tpu.memory_space<vmem>>, %arg7: memref<30x10xf32, #tpu.memory_space<vmem>>, %arg8: memref<1x1x10xf32, #tpu.memory_space<vmem>>) attributes {dimension_semantics = [#tpu.dimension_semantics<parallel>], iteration_bounds = array<i64: 2>, scalar_prefetch = 0 : i64, scratch_operands = 0 : i64, tpu.core_type = #tpu.core_type<tc>, window_params = [{transform_indices = @transform_0, window_bounds = array<i64: 1, 1, 400>}, {pipeline_mode = #tpu.pipeline_mode<synchronous>, transform_indices = @transform_1, window_bounds = array<i64: 8, 431>}, {pipeline_mode = #tpu.pipeline_mode<synchronous>, transform_indices = @transform_2, window_bounds = array<i64: 1, 1002>}, {pipeline_mode = #tpu.pipeline_mode<synchronous>, transform_indices = @transform_3, window_bounds = array<i64: 144, 32>}, {pipeline_mode = #tpu.pipeline_mode<synchronous>, transform_indices = @transform_4, window_bounds = array<i64: 334, 112>}, {pipeline_mode = #tpu.pipeline_mode<synchronous>, transform_indices = @transform_5, window_bounds = array<i64: 106, 36>}, {pipeline_mode = #tpu.pipeline_mode<synchronous>, transform_indices = @transform_6, window_bounds = array<i64: 30, 10>}, {transform_indices = @transform_7, window_bounds = array<i64: 1, 1, 10>}]} {
    %c0 = arith.constant 0 : index
    %c0_0 = arith.constant 0 : index
    %0 = vector.load %arg2[%c0, %c0_0] : memref<8x431xf32, #tpu.memory_space<vmem>>, vector<8x431xf32>
    %c0_1 = arith.constant 0 : index
    %c0_2 = arith.constant 0 : index
    %1 = vector.load %arg3[%c0_1, %c0_2] : memref<1x1002xf32, #tpu.memory_space<vmem>>, vector<1x1002xf32>
    %c0_3 = arith.constant 0 : index
    %c0_4 = arith.constant 0 : index
    %2 = vector.load %arg4[%c0_3, %c0_4] : memref<144x32xf32, #tpu.memory_space<vmem>>, vector<144x32xf32>
    %c0_5 = arith.constant 0 : index
    %c0_6 = arith.constant 0 : index
    %c0_7 = arith.constant 0 : index
    %3 = vector.load %arg1[%c0_5, %c0_6, %c0_7] : memref<1x1x400xf32, #tpu.memory_space<vmem>>, vector<1x1x400xf32>
    %4 = vector.shape_cast %3 : vector<1x1x400xf32> to vector<1x400xf32>
    %5 = vector.extract_strided_slice %1 {offsets = [0, 0], sizes = [1, 400], strides = [1, 1]} : vector<1x1002xf32> to vector<1x400xf32>
    %6 = vector.extract_strided_slice %1 {offsets = [0, 400], sizes = [1, 400], strides = [1, 1]} : vector<1x1002xf32> to vector<1x400xf32>
    %cst = arith.constant dense<0.000000e+00> : vector<1xf32>
    %7 = vector.multi_reduction <add>, %4, %cst [1] : vector<1x400xf32> to vector<1xf32>
    %8 = vector.shape_cast %7 : vector<1xf32> to vector<1x1xf32>
    %9 = arith.mulf %4, %4 : vector<1x400xf32>
    %cst_8 = arith.constant dense<0.000000e+00> : vector<1xf32>
    %10 = vector.multi_reduction <add>, %9, %cst_8 [1] : vector<1x400xf32> to vector<1xf32>
    %11 = vector.shape_cast %10 : vector<1xf32> to vector<1x1xf32>
    %cst_9 = arith.constant 2.500000e-03 : f32
    %12 = vector.broadcast %cst_9 : f32 to vector<1x1xf32>
    %13 = arith.mulf %8, %12 : vector<1x1xf32>
    %14 = arith.mulf %8, %13 : vector<1x1xf32>
    %15 = arith.subf %11, %14 : vector<1x1xf32>
    %cst_10 = arith.constant 0.000000e+00 : f32
    %16 = vector.broadcast %cst_10 : f32 to vector<1x1xf32>
    %17 = arith.maximumf %15, %16 : vector<1x1xf32>
    %cst_11 = arith.constant 0.00250626565 : f32
    %18 = vector.broadcast %cst_11 : f32 to vector<1x1xf32>
    %19 = arith.mulf %17, %18 : vector<1x1xf32>
    %20 = math.sqrt %19 : vector<1x1xf32>
    %cst_12 = arith.constant 9.99999997E-7 : f32
    %21 = vector.broadcast %cst_12 : f32 to vector<1x1xf32>
    %22 = arith.addf %20, %21 : vector<1x1xf32>
    %23 = tpu.reciprocal %22 : vector<1x1xf32> -> vector<1x1xf32>
    %24 = vector.broadcast %13 : vector<1x1xf32> to vector<1x400xf32>
    %25 = arith.subf %4, %24 : vector<1x400xf32>
    %26 = vector.broadcast %23 : vector<1x1xf32> to vector<1x400xf32>
    %27 = arith.mulf %25, %26 : vector<1x400xf32>
    %28 = arith.mulf %5, %27 : vector<1x400xf32>
    %29 = arith.addf %28, %6 : vector<1x400xf32>
    %30 = vector.extract_strided_slice %29 {offsets = [0, 0], sizes = [1, 336], strides = [1, 1]} : vector<1x400xf32> to vector<1x336xf32>
    %31 = vector.extract_strided_slice %29 {offsets = [0, 64], sizes = [1, 336], strides = [1, 1]} : vector<1x400xf32> to vector<1x336xf32>
    %32 = arith.addf %30, %31 : vector<1x336xf32>
    %33 = vector.extract_strided_slice %29 {offsets = [0, 1], sizes = [1, 336], strides = [1, 1]} : vector<1x400xf32> to vector<1x336xf32>
    %34 = vector.extract_strided_slice %29 {offsets = [0, 63], sizes = [1, 336], strides = [1, 1]} : vector<1x400xf32> to vector<1x336xf32>
    %35 = arith.addf %33, %34 : vector<1x336xf32>
    %36 = vector.extract_strided_slice %29 {offsets = [0, 2], sizes = [1, 336], strides = [1, 1]} : vector<1x400xf32> to vector<1x336xf32>
    %37 = vector.extract_strided_slice %29 {offsets = [0, 62], sizes = [1, 336], strides = [1, 1]} : vector<1x400xf32> to vector<1x336xf32>
    %38 = arith.addf %36, %37 : vector<1x336xf32>
    %39 = vector.extract_strided_slice %29 {offsets = [0, 3], sizes = [1, 336], strides = [1, 1]} : vector<1x400xf32> to vector<1x336xf32>
    %40 = vector.extract_strided_slice %29 {offsets = [0, 61], sizes = [1, 336], strides = [1, 1]} : vector<1x400xf32> to vector<1x336xf32>
    %41 = arith.addf %39, %40 : vector<1x336xf32>
    %42 = vector.extract_strided_slice %29 {offsets = [0, 4], sizes = [1, 336], strides = [1, 1]} : vector<1x400xf32> to vector<1x336xf32>
    %43 = vector.extract_strided_slice %29 {offsets = [0, 60], sizes = [1, 336], strides = [1, 1]} : vector<1x400xf32> to vector<1x336xf32>
    %44 = arith.addf %42, %43 : vector<1x336xf32>
    %45 = vector.extract_strided_slice %29 {offsets = [0, 5], sizes = [1, 336], strides = [1, 1]} : vector<1x400xf32> to vector<1x336xf32>
    %46 = vector.extract_strided_slice %29 {offsets = [0, 59], sizes = [1, 336], strides = [1, 1]} : vector<1x400xf32> to vector<1x336xf32>
    %47 = arith.addf %45, %46 : vector<1x336xf32>
    %48 = vector.extract_strided_slice %29 {offsets = [0, 6], sizes = [1, 336], strides = [1, 1]} : vector<1x400xf32> to vector<1x336xf32>
    %49 = vector.extract_strided_slice %29 {offsets = [0, 58], sizes = [1, 336], strides = [1, 1]} : vector<1x400xf32> to vector<1x336xf32>
    %50 = arith.addf %48, %49 : vector<1x336xf32>
    %51 = vector.extract_strided_slice %29 {offsets = [0, 7], sizes = [1, 336], strides = [1, 1]} : vector<1x400xf32> to vector<1x336xf32>
    %52 = vector.extract_strided_slice %29 {offsets = [0, 57], sizes = [1, 336], strides = [1, 1]} : vector<1x400xf32> to vector<1x336xf32>
    %53 = arith.addf %51, %52 : vector<1x336xf32>
    %54 = vector.extract_strided_slice %29 {offsets = [0, 8], sizes = [1, 336], strides = [1, 1]} : vector<1x400xf32> to vector<1x336xf32>
    %55 = vector.extract_strided_slice %29 {offsets = [0, 56], sizes = [1, 336], strides = [1, 1]} : vector<1x400xf32> to vector<1x336xf32>
    %56 = arith.addf %54, %55 : vector<1x336xf32>
    %57 = vector.extract_strided_slice %29 {offsets = [0, 9], sizes = [1, 336], strides = [1, 1]} : vector<1x400xf32> to vector<1x336xf32>
    %58 = vector.extract_strided_slice %29 {offsets = [0, 55], sizes = [1, 336], strides = [1, 1]} : vector<1x400xf32> to vector<1x336xf32>
    %59 = arith.addf %57, %58 : vector<1x336xf32>
    %60 = vector.extract_strided_slice %29 {offsets = [0, 10], sizes = [1, 336], strides = [1, 1]} : vector<1x400xf32> to vector<1x336xf32>
    %61 = vector.extract_strided_slice %29 {offsets = [0, 54], sizes = [1, 336], strides = [1, 1]} : vector<1x400xf32> to vector<1x336xf32>
    %62 = arith.addf %60, %61 : vector<1x336xf32>
    %63 = vector.extract_strided_slice %29 {offsets = [0, 11], sizes = [1, 336], strides = [1, 1]} : vector<1x400xf32> to vector<1x336xf32>
    %64 = vector.extract_strided_slice %29 {offsets = [0, 53], sizes = [1, 336], strides = [1, 1]} : vector<1x400xf32> to vector<1x336xf32>
    %65 = arith.addf %63, %64 : vector<1x336xf32>
    %66 = vector.extract_strided_slice %29 {offsets = [0, 12], sizes = [1, 336], strides = [1, 1]} : vector<1x400xf32> to vector<1x336xf32>
    %67 = vector.extract_strided_slice %29 {offsets = [0, 52], sizes = [1, 336], strides = [1, 1]} : vector<1x400xf32> to vector<1x336xf32>
    %68 = arith.addf %66, %67 : vector<1x336xf32>
    %69 = vector.extract_strided_slice %29 {offsets = [0, 13], sizes = [1, 336], strides = [1, 1]} : vector<1x400xf32> to vector<1x336xf32>
    %70 = vector.extract_strided_slice %29 {offsets = [0, 51], sizes = [1, 336], strides = [1, 1]} : vector<1x400xf32> to vector<1x336xf32>
    %71 = arith.addf %69, %70 : vector<1x336xf32>
    %72 = vector.extract_strided_slice %29 {offsets = [0, 14], sizes = [1, 336], strides = [1, 1]} : vector<1x400xf32> to vector<1x336xf32>
    %73 = vector.extract_strided_slice %29 {offsets = [0, 50], sizes = [1, 336], strides = [1, 1]} : vector<1x400xf32> to vector<1x336xf32>
    %74 = arith.addf %72, %73 : vector<1x336xf32>
    %75 = vector.extract_strided_slice %29 {offsets = [0, 15], sizes = [1, 336], strides = [1, 1]} : vector<1x400xf32> to vector<1x336xf32>
    %76 = vector.extract_strided_slice %29 {offsets = [0, 49], sizes = [1, 336], strides = [1, 1]} : vector<1x400xf32> to vector<1x336xf32>
    %77 = arith.addf %75, %76 : vector<1x336xf32>
    %78 = vector.extract_strided_slice %29 {offsets = [0, 16], sizes = [1, 336], strides = [1, 1]} : vector<1x400xf32> to vector<1x336xf32>
    %79 = vector.extract_strided_slice %29 {offsets = [0, 48], sizes = [1, 336], strides = [1, 1]} : vector<1x400xf32> to vector<1x336xf32>
    %80 = arith.addf %78, %79 : vector<1x336xf32>
    %81 = vector.extract_strided_slice %29 {offsets = [0, 17], sizes = [1, 336], strides = [1, 1]} : vector<1x400xf32> to vector<1x336xf32>
    %82 = vector.extract_strided_slice %29 {offsets = [0, 47], sizes = [1, 336], strides = [1, 1]} : vector<1x400xf32> to vector<1x336xf32>
    %83 = arith.addf %81, %82 : vector<1x336xf32>
    %84 = vector.extract_strided_slice %29 {offsets = [0, 18], sizes = [1, 336], strides = [1, 1]} : vector<1x400xf32> to vector<1x336xf32>
    %85 = vector.extract_strided_slice %29 {offsets = [0, 46], sizes = [1, 336], strides = [1, 1]} : vector<1x400xf32> to vector<1x336xf32>
    %86 = arith.addf %84, %85 : vector<1x336xf32>
    %87 = vector.extract_strided_slice %29 {offsets = [0, 19], sizes = [1, 336], strides = [1, 1]} : vector<1x400xf32> to vector<1x336xf32>
    %88 = vector.extract_strided_slice %29 {offsets = [0, 45], sizes = [1, 336], strides = [1, 1]} : vector<1x400xf32> to vector<1x336xf32>
    %89 = arith.addf %87, %88 : vector<1x336xf32>
    %90 = vector.extract_strided_slice %29 {offsets = [0, 20], sizes = [1, 336], strides = [1, 1]} : vector<1x400xf32> to vector<1x336xf32>
    %91 = vector.extract_strided_slice %29 {offsets = [0, 44], sizes = [1, 336], strides = [1, 1]} : vector<1x400xf32> to vector<1x336xf32>
    %92 = arith.addf %90, %91 : vector<1x336xf32>
    %93 = vector.extract_strided_slice %29 {offsets = [0, 21], sizes = [1, 336], strides = [1, 1]} : vector<1x400xf32> to vector<1x336xf32>
    %94 = vector.extract_strided_slice %29 {offsets = [0, 43], sizes = [1, 336], strides = [1, 1]} : vector<1x400xf32> to vector<1x336xf32>
    %95 = arith.addf %93, %94 : vector<1x336xf32>
    %96 = vector.extract_strided_slice %29 {offsets = [0, 22], sizes = [1, 336], strides = [1, 1]} : vector<1x400xf32> to vector<1x336xf32>
    %97 = vector.extract_strided_slice %29 {offsets = [0, 42], sizes = [1, 336], strides = [1, 1]} : vector<1x400xf32> to vector<1x336xf32>
    %98 = arith.addf %96, %97 : vector<1x336xf32>
    %99 = vector.extract_strided_slice %29 {offsets = [0, 23], sizes = [1, 336], strides = [1, 1]} : vector<1x400xf32> to vector<1x336xf32>
    %100 = vector.extract_strided_slice %29 {offsets = [0, 41], sizes = [1, 336], strides = [1, 1]} : vector<1x400xf32> to vector<1x336xf32>
    %101 = arith.addf %99, %100 : vector<1x336xf32>
    %102 = vector.extract_strided_slice %29 {offsets = [0, 24], sizes = [1, 336], strides = [1, 1]} : vector<1x400xf32> to vector<1x336xf32>
    %103 = vector.extract_strided_slice %29 {offsets = [0, 40], sizes = [1, 336], strides = [1, 1]} : vector<1x400xf32> to vector<1x336xf32>
    %104 = arith.addf %102, %103 : vector<1x336xf32>
    %105 = vector.extract_strided_slice %29 {offsets = [0, 25], sizes = [1, 336], strides = [1, 1]} : vector<1x400xf32> to vector<1x336xf32>
    %106 = vector.extract_strided_slice %29 {offsets = [0, 39], sizes = [1, 336], strides = [1, 1]} : vector<1x400xf32> to vector<1x336xf32>
    %107 = arith.addf %105, %106 : vector<1x336xf32>
    %108 = vector.extract_strided_slice %29 {offsets = [0, 26], sizes = [1, 336], strides = [1, 1]} : vector<1x400xf32> to vector<1x336xf32>
    %109 = vector.extract_strided_slice %29 {offsets = [0, 38], sizes = [1, 336], strides = [1, 1]} : vector<1x400xf32> to vector<1x336xf32>
    %110 = arith.addf %108, %109 : vector<1x336xf32>
    %111 = vector.extract_strided_slice %29 {offsets = [0, 27], sizes = [1, 336], strides = [1, 1]} : vector<1x400xf32> to vector<1x336xf32>
    %112 = vector.extract_strided_slice %29 {offsets = [0, 37], sizes = [1, 336], strides = [1, 1]} : vector<1x400xf32> to vector<1x336xf32>
    %113 = arith.addf %111, %112 : vector<1x336xf32>
    %114 = vector.extract_strided_slice %29 {offsets = [0, 28], sizes = [1, 336], strides = [1, 1]} : vector<1x400xf32> to vector<1x336xf32>
    %115 = vector.extract_strided_slice %29 {offsets = [0, 36], sizes = [1, 336], strides = [1, 1]} : vector<1x400xf32> to vector<1x336xf32>
    %116 = arith.addf %114, %115 : vector<1x336xf32>
    %117 = vector.extract_strided_slice %29 {offsets = [0, 29], sizes = [1, 336], strides = [1, 1]} : vector<1x400xf32> to vector<1x336xf32>
    %118 = vector.extract_strided_slice %29 {offsets = [0, 35], sizes = [1, 336], strides = [1, 1]} : vector<1x400xf32> to vector<1x336xf32>
    %119 = arith.addf %117, %118 : vector<1x336xf32>
    %120 = vector.extract_strided_slice %29 {offsets = [0, 30], sizes = [1, 336], strides = [1, 1]} : vector<1x400xf32> to vector<1x336xf32>
    %121 = vector.extract_strided_slice %29 {offsets = [0, 34], sizes = [1, 336], strides = [1, 1]} : vector<1x400xf32> to vector<1x336xf32>
    %122 = arith.addf %120, %121 : vector<1x336xf32>
    %123 = vector.extract_strided_slice %29 {offsets = [0, 31], sizes = [1, 336], strides = [1, 1]} : vector<1x400xf32> to vector<1x336xf32>
    %124 = vector.extract_strided_slice %29 {offsets = [0, 33], sizes = [1, 336], strides = [1, 1]} : vector<1x400xf32> to vector<1x336xf32>
    %125 = arith.addf %123, %124 : vector<1x336xf32>
    %126 = vector.extract_strided_slice %29 {offsets = [0, 32], sizes = [1, 336], strides = [1, 1]} : vector<1x400xf32> to vector<1x336xf32>
    %127 = tpu.concatenate %32, %35, %38, %41, %44, %47, %50, %53, %56, %59, %62, %65, %68, %71, %74, %77 in 0 : vector<1x336xf32>, vector<1x336xf32>, vector<1x336xf32>, vector<1x336xf32>, vector<1x336xf32>, vector<1x336xf32>, vector<1x336xf32>, vector<1x336xf32>, vector<1x336xf32>, vector<1x336xf32>, vector<1x336xf32>, vector<1x336xf32>, vector<1x336xf32>, vector<1x336xf32>, vector<1x336xf32>, vector<1x336xf32> -> vector<16x336xf32>
    %128 = tpu.concatenate %80, %83, %86, %89, %92, %95, %98, %101, %104, %107, %110, %113, %116, %119, %122, %125 in 0 : vector<1x336xf32>, vector<1x336xf32>, vector<1x336xf32>, vector<1x336xf32>, vector<1x336xf32>, vector<1x336xf32>, vector<1x336xf32>, vector<1x336xf32>, vector<1x336xf32>, vector<1x336xf32>, vector<1x336xf32>, vector<1x336xf32>, vector<1x336xf32>, vector<1x336xf32>, vector<1x336xf32>, vector<1x336xf32> -> vector<16x336xf32>
    %129 = tpu.concatenate %127, %128, %126 in 0 : vector<16x336xf32>, vector<16x336xf32>, vector<1x336xf32> -> vector<33x336xf32>
    %130 = vector.extract_strided_slice %0 {offsets = [0, 0], sizes = [8, 33], strides = [1, 1]} : vector<8x431xf32> to vector<8x33xf32>
    %cst_13 = arith.constant dense<0.000000e+00> : vector<8x336xf32>
    %131 = tpu.matmul %130, %129, %cst_13 {dimension_numbers = #tpu.dot_dimension_numbers<[1], [0], [0], [1], [0, 0, 1, 1], [], []>} : vector<8x33xf32>, vector<33x336xf32>, vector<8x336xf32> -> vector<8x336xf32>
    %132 = math.absf %131 : vector<8x336xf32>
    %133 = vector.extract_strided_slice %132 {offsets = [0, 0], sizes = [8, 334], strides = [1, 1]} : vector<8x336xf32> to vector<8x334xf32>
    %134 = vector.extract_strided_slice %132 {offsets = [0, 1], sizes = [8, 334], strides = [1, 1]} : vector<8x336xf32> to vector<8x334xf32>
    %135 = vector.extract_strided_slice %132 {offsets = [0, 2], sizes = [8, 334], strides = [1, 1]} : vector<8x336xf32> to vector<8x334xf32>
    %136 = arith.maximumf %134, %135 : vector<8x334xf32>
    %137 = arith.maximumf %133, %136 : vector<8x334xf32>
    %c0_14 = arith.constant 0 : index
    %c0_15 = arith.constant 0 : index
    %138 = vector.load %arg5[%c0_14, %c0_15] : memref<334x112xf32, #tpu.memory_space<vmem>>, vector<334x112xf32>
    %cst_16 = arith.constant dense<0.000000e+00> : vector<8x112xf32>
    %139 = tpu.matmul %137, %138, %cst_16 {dimension_numbers = #tpu.dot_dimension_numbers<[1], [0], [0], [1], [0, 0, 1, 1], [], []>} : vector<8x334xf32>, vector<334x112xf32>, vector<8x112xf32> -> vector<8x112xf32>
    %140 = vector.extract_strided_slice %0 {offsets = [0, 33], sizes = [8, 112], strides = [1, 1]} : vector<8x431xf32> to vector<8x112xf32>
    %141 = vector.extract_strided_slice %0 {offsets = [0, 145], sizes = [8, 112], strides = [1, 1]} : vector<8x431xf32> to vector<8x112xf32>
    %cst_17 = arith.constant dense<0.000000e+00> : vector<8xf32>
    %142 = vector.multi_reduction <add>, %139, %cst_17 [1] : vector<8x112xf32> to vector<8xf32>
    %143 = vector.shape_cast %142 : vector<8xf32> to vector<8x1xf32>
    %144 = arith.mulf %139, %139 : vector<8x112xf32>
    %cst_18 = arith.constant dense<0.000000e+00> : vector<8xf32>
    %145 = vector.multi_reduction <add>, %144, %cst_18 [1] : vector<8x112xf32> to vector<8xf32>
    %146 = vector.shape_cast %145 : vector<8xf32> to vector<8x1xf32>
    %cst_19 = arith.constant 0.00892857183 : f32
    %147 = vector.broadcast %cst_19 : f32 to vector<8x1xf32>
    %148 = arith.mulf %143, %147 : vector<8x1xf32>
    %149 = arith.mulf %143, %148 : vector<8x1xf32>
    %150 = arith.subf %146, %149 : vector<8x1xf32>
    %cst_20 = arith.constant 0.000000e+00 : f32
    %151 = vector.broadcast %cst_20 : f32 to vector<8x1xf32>
    %152 = arith.maximumf %150, %151 : vector<8x1xf32>
    %cst_21 = arith.constant 0.00900900922 : f32
    %153 = vector.broadcast %cst_21 : f32 to vector<8x1xf32>
    %154 = arith.mulf %152, %153 : vector<8x1xf32>
    %155 = math.sqrt %154 : vector<8x1xf32>
    %cst_22 = arith.constant 9.99999997E-7 : f32
    %156 = vector.broadcast %cst_22 : f32 to vector<8x1xf32>
    %157 = arith.addf %155, %156 : vector<8x1xf32>
    %158 = tpu.reciprocal %157 : vector<8x1xf32> -> vector<8x1xf32>
    %159 = vector.broadcast %148 : vector<8x1xf32> to vector<8x112xf32>
    %160 = arith.subf %139, %159 : vector<8x112xf32>
    %161 = vector.broadcast %158 : vector<8x1xf32> to vector<8x112xf32>
    %162 = arith.mulf %160, %161 : vector<8x112xf32>
    %163 = arith.mulf %140, %162 : vector<8x112xf32>
    %164 = arith.addf %163, %141 : vector<8x112xf32>
    %cst_23 = arith.constant 2.000000e-01 : f32
    %165 = vector.broadcast %cst_23 : f32 to vector<8x112xf32>
    %166 = arith.mulf %165, %164 : vector<8x112xf32>
    %167 = arith.maximumf %164, %166 : vector<8x112xf32>
    %168 = vector.extract_strided_slice %0 {offsets = [0, 349], sizes = [8, 40], strides = [1, 1]} : vector<8x431xf32> to vector<8x40xf32>
    %169 = vector.extract_strided_slice %0 {offsets = [0, 389], sizes = [8, 1], strides = [1, 1]} : vector<8x431xf32> to vector<8x1xf32>
    %170 = vector.extract_strided_slice %167 {offsets = [0, 0], sizes = [8, 108], strides = [1, 1]} : vector<8x112xf32> to vector<8x108xf32>
    %171 = vector.extract_strided_slice %167 {offsets = [0, 1], sizes = [8, 108], strides = [1, 1]} : vector<8x112xf32> to vector<8x108xf32>
    %172 = vector.extract_strided_slice %167 {offsets = [0, 2], sizes = [8, 108], strides = [1, 1]} : vector<8x112xf32> to vector<8x108xf32>
    %173 = vector.extract_strided_slice %167 {offsets = [0, 3], sizes = [8, 108], strides = [1, 1]} : vector<8x112xf32> to vector<8x108xf32>
    %174 = vector.extract_strided_slice %167 {offsets = [0, 4], sizes = [8, 108], strides = [1, 1]} : vector<8x112xf32> to vector<8x108xf32>
    %175 = tpu.concatenate %170, %171, %172, %173, %174 in 0 : vector<8x108xf32>, vector<8x108xf32>, vector<8x108xf32>, vector<8x108xf32>, vector<8x108xf32> -> vector<40x108xf32>
    %cst_24 = arith.constant dense<0.000000e+00> : vector<8x108xf32>
    %176 = tpu.matmul %168, %175, %cst_24 {dimension_numbers = #tpu.dot_dimension_numbers<[1], [0], [0], [1], [0, 0, 1, 1], [], []>} : vector<8x40xf32>, vector<40x108xf32>, vector<8x108xf32> -> vector<8x108xf32>
    %177 = vector.broadcast %169 : vector<8x1xf32> to vector<8x108xf32>
    %178 = arith.addf %176, %177 : vector<8x108xf32>
    %179 = vector.extract_strided_slice %178 {offsets = [0, 0], sizes = [8, 106], strides = [1, 1]} : vector<8x108xf32> to vector<8x106xf32>
    %180 = vector.extract_strided_slice %178 {offsets = [0, 1], sizes = [8, 106], strides = [1, 1]} : vector<8x108xf32> to vector<8x106xf32>
    %181 = vector.extract_strided_slice %178 {offsets = [0, 2], sizes = [8, 106], strides = [1, 1]} : vector<8x108xf32> to vector<8x106xf32>
    %182 = arith.maximumf %180, %181 : vector<8x106xf32>
    %183 = arith.maximumf %179, %182 : vector<8x106xf32>
    %c0_25 = arith.constant 0 : index
    %c0_26 = arith.constant 0 : index
    %184 = vector.load %arg6[%c0_25, %c0_26] : memref<106x36xf32, #tpu.memory_space<vmem>>, vector<106x36xf32>
    %cst_27 = arith.constant dense<0.000000e+00> : vector<8x36xf32>
    %185 = tpu.matmul %183, %184, %cst_27 {dimension_numbers = #tpu.dot_dimension_numbers<[1], [0], [0], [1], [0, 0, 1, 1], [], []>} : vector<8x106xf32>, vector<106x36xf32>, vector<8x36xf32> -> vector<8x36xf32>
    %186 = vector.extract_strided_slice %0 {offsets = [0, 257], sizes = [8, 36], strides = [1, 1]} : vector<8x431xf32> to vector<8x36xf32>
    %187 = vector.extract_strided_slice %0 {offsets = [0, 293], sizes = [8, 36], strides = [1, 1]} : vector<8x431xf32> to vector<8x36xf32>
    %cst_28 = arith.constant dense<0.000000e+00> : vector<8xf32>
    %188 = vector.multi_reduction <add>, %185, %cst_28 [1] : vector<8x36xf32> to vector<8xf32>
    %189 = vector.shape_cast %188 : vector<8xf32> to vector<8x1xf32>
    %190 = arith.mulf %185, %185 : vector<8x36xf32>
    %cst_29 = arith.constant dense<0.000000e+00> : vector<8xf32>
    %191 = vector.multi_reduction <add>, %190, %cst_29 [1] : vector<8x36xf32> to vector<8xf32>
    %192 = vector.shape_cast %191 : vector<8xf32> to vector<8x1xf32>
    %cst_30 = arith.constant 0.027777778 : f32
    %193 = vector.broadcast %cst_30 : f32 to vector<8x1xf32>
    %194 = arith.mulf %189, %193 : vector<8x1xf32>
    %195 = arith.mulf %189, %194 : vector<8x1xf32>
    %196 = arith.subf %192, %195 : vector<8x1xf32>
    %cst_31 = arith.constant 0.000000e+00 : f32
    %197 = vector.broadcast %cst_31 : f32 to vector<8x1xf32>
    %198 = arith.maximumf %196, %197 : vector<8x1xf32>
    %cst_32 = arith.constant 0.0285714287 : f32
    %199 = vector.broadcast %cst_32 : f32 to vector<8x1xf32>
    %200 = arith.mulf %198, %199 : vector<8x1xf32>
    %201 = math.sqrt %200 : vector<8x1xf32>
    %cst_33 = arith.constant 9.99999997E-7 : f32
    %202 = vector.broadcast %cst_33 : f32 to vector<8x1xf32>
    %203 = arith.addf %201, %202 : vector<8x1xf32>
    %204 = tpu.reciprocal %203 : vector<8x1xf32> -> vector<8x1xf32>
    %205 = vector.broadcast %194 : vector<8x1xf32> to vector<8x36xf32>
    %206 = arith.subf %185, %205 : vector<8x36xf32>
    %207 = vector.broadcast %204 : vector<8x1xf32> to vector<8x36xf32>
    %208 = arith.mulf %206, %207 : vector<8x36xf32>
    %209 = arith.mulf %186, %208 : vector<8x36xf32>
    %210 = arith.addf %209, %187 : vector<8x36xf32>
    %cst_34 = arith.constant 2.000000e-01 : f32
    %211 = vector.broadcast %cst_34 : f32 to vector<8x36xf32>
    %212 = arith.mulf %211, %210 : vector<8x36xf32>
    %213 = arith.maximumf %210, %212 : vector<8x36xf32>
    %214 = vector.extract_strided_slice %0 {offsets = [0, 390], sizes = [8, 40], strides = [1, 1]} : vector<8x431xf32> to vector<8x40xf32>
    %215 = vector.extract_strided_slice %0 {offsets = [0, 430], sizes = [8, 1], strides = [1, 1]} : vector<8x431xf32> to vector<8x1xf32>
    %216 = vector.extract_strided_slice %213 {offsets = [0, 0], sizes = [8, 32], strides = [1, 1]} : vector<8x36xf32> to vector<8x32xf32>
    %217 = vector.extract_strided_slice %213 {offsets = [0, 1], sizes = [8, 32], strides = [1, 1]} : vector<8x36xf32> to vector<8x32xf32>
    %218 = vector.extract_strided_slice %213 {offsets = [0, 2], sizes = [8, 32], strides = [1, 1]} : vector<8x36xf32> to vector<8x32xf32>
    %219 = vector.extract_strided_slice %213 {offsets = [0, 3], sizes = [8, 32], strides = [1, 1]} : vector<8x36xf32> to vector<8x32xf32>
    %220 = vector.extract_strided_slice %213 {offsets = [0, 4], sizes = [8, 32], strides = [1, 1]} : vector<8x36xf32> to vector<8x32xf32>
    %221 = tpu.concatenate %216, %217, %218, %219, %220 in 0 : vector<8x32xf32>, vector<8x32xf32>, vector<8x32xf32>, vector<8x32xf32>, vector<8x32xf32> -> vector<40x32xf32>
    %cst_35 = arith.constant dense<0.000000e+00> : vector<8x32xf32>
    %222 = tpu.matmul %214, %221, %cst_35 {dimension_numbers = #tpu.dot_dimension_numbers<[1], [0], [0], [1], [0, 0, 1, 1], [], []>} : vector<8x40xf32>, vector<40x32xf32>, vector<8x32xf32> -> vector<8x32xf32>
    %223 = vector.broadcast %215 : vector<8x1xf32> to vector<8x32xf32>
    %224 = arith.addf %222, %223 : vector<8x32xf32>
    %225 = vector.extract_strided_slice %224 {offsets = [0, 0], sizes = [8, 30], strides = [1, 1]} : vector<8x32xf32> to vector<8x30xf32>
    %226 = vector.extract_strided_slice %224 {offsets = [0, 1], sizes = [8, 30], strides = [1, 1]} : vector<8x32xf32> to vector<8x30xf32>
    %227 = vector.extract_strided_slice %224 {offsets = [0, 2], sizes = [8, 30], strides = [1, 1]} : vector<8x32xf32> to vector<8x30xf32>
    %228 = arith.maximumf %226, %227 : vector<8x30xf32>
    %229 = arith.maximumf %225, %228 : vector<8x30xf32>
    %c0_36 = arith.constant 0 : index
    %c0_37 = arith.constant 0 : index
    %230 = vector.load %arg7[%c0_36, %c0_37] : memref<30x10xf32, #tpu.memory_space<vmem>>, vector<30x10xf32>
    %cst_38 = arith.constant dense<0.000000e+00> : vector<8x10xf32>
    %231 = tpu.matmul %229, %230, %cst_38 {dimension_numbers = #tpu.dot_dimension_numbers<[1], [0], [0], [1], [0, 0, 1, 1], [], []>} : vector<8x30xf32>, vector<30x10xf32>, vector<8x10xf32> -> vector<8x10xf32>
    %232 = vector.extract_strided_slice %0 {offsets = [0, 329], sizes = [8, 10], strides = [1, 1]} : vector<8x431xf32> to vector<8x10xf32>
    %233 = vector.extract_strided_slice %0 {offsets = [0, 339], sizes = [8, 10], strides = [1, 1]} : vector<8x431xf32> to vector<8x10xf32>
    %cst_39 = arith.constant dense<0.000000e+00> : vector<8xf32>
    %234 = vector.multi_reduction <add>, %231, %cst_39 [1] : vector<8x10xf32> to vector<8xf32>
    %235 = vector.shape_cast %234 : vector<8xf32> to vector<8x1xf32>
    %236 = arith.mulf %231, %231 : vector<8x10xf32>
    %cst_40 = arith.constant dense<0.000000e+00> : vector<8xf32>
    %237 = vector.multi_reduction <add>, %236, %cst_40 [1] : vector<8x10xf32> to vector<8xf32>
    %238 = vector.shape_cast %237 : vector<8xf32> to vector<8x1xf32>
    %cst_41 = arith.constant 1.000000e-01 : f32
    %239 = vector.broadcast %cst_41 : f32 to vector<8x1xf32>
    %240 = arith.mulf %235, %239 : vector<8x1xf32>
    %241 = arith.mulf %235, %240 : vector<8x1xf32>
    %242 = arith.subf %238, %241 : vector<8x1xf32>
    %cst_42 = arith.constant 0.000000e+00 : f32
    %243 = vector.broadcast %cst_42 : f32 to vector<8x1xf32>
    %244 = arith.maximumf %242, %243 : vector<8x1xf32>
    %cst_43 = arith.constant 0.111111112 : f32
    %245 = vector.broadcast %cst_43 : f32 to vector<8x1xf32>
    %246 = arith.mulf %244, %245 : vector<8x1xf32>
    %247 = math.sqrt %246 : vector<8x1xf32>
    %cst_44 = arith.constant 9.99999997E-7 : f32
    %248 = vector.broadcast %cst_44 : f32 to vector<8x1xf32>
    %249 = arith.addf %247, %248 : vector<8x1xf32>
    %250 = tpu.reciprocal %249 : vector<8x1xf32> -> vector<8x1xf32>
    %251 = vector.broadcast %240 : vector<8x1xf32> to vector<8x10xf32>
    %252 = arith.subf %231, %251 : vector<8x10xf32>
    %253 = vector.broadcast %250 : vector<8x1xf32> to vector<8x10xf32>
    %254 = arith.mulf %252, %253 : vector<8x10xf32>
    %255 = arith.mulf %232, %254 : vector<8x10xf32>
    %256 = arith.addf %255, %233 : vector<8x10xf32>
    %cst_45 = arith.constant 2.000000e-01 : f32
    %257 = vector.broadcast %cst_45 : f32 to vector<8x10xf32>
    %258 = arith.mulf %257, %256 : vector<8x10xf32>
    %259 = arith.maximumf %256, %258 : vector<8x10xf32>
    %260 = vector.extract_strided_slice %259 {offsets = [0, 0], sizes = [1, 10], strides = [1, 1]} : vector<8x10xf32> to vector<1x10xf32>
    %261 = vector.extract_strided_slice %259 {offsets = [1, 0], sizes = [1, 10], strides = [1, 1]} : vector<8x10xf32> to vector<1x10xf32>
    %262 = vector.extract_strided_slice %259 {offsets = [2, 0], sizes = [1, 10], strides = [1, 1]} : vector<8x10xf32> to vector<1x10xf32>
    %263 = vector.extract_strided_slice %259 {offsets = [3, 0], sizes = [1, 10], strides = [1, 1]} : vector<8x10xf32> to vector<1x10xf32>
    %264 = vector.extract_strided_slice %259 {offsets = [4, 0], sizes = [1, 10], strides = [1, 1]} : vector<8x10xf32> to vector<1x10xf32>
    %265 = vector.extract_strided_slice %259 {offsets = [5, 0], sizes = [1, 10], strides = [1, 1]} : vector<8x10xf32> to vector<1x10xf32>
    %266 = vector.extract_strided_slice %259 {offsets = [6, 0], sizes = [1, 10], strides = [1, 1]} : vector<8x10xf32> to vector<1x10xf32>
    %267 = vector.extract_strided_slice %259 {offsets = [7, 0], sizes = [1, 10], strides = [1, 1]} : vector<8x10xf32> to vector<1x10xf32>
    %268 = tpu.concatenate %260, %261, %262, %263, %264, %265, %266, %267 in 1 : vector<1x10xf32>, vector<1x10xf32>, vector<1x10xf32>, vector<1x10xf32>, vector<1x10xf32>, vector<1x10xf32>, vector<1x10xf32>, vector<1x10xf32> -> vector<1x80xf32>
    %269 = vector.extract_strided_slice %2 {offsets = [0, 0], sizes = [80, 32], strides = [1, 1]} : vector<144x32xf32> to vector<80x32xf32>
    %270 = vector.extract_strided_slice %2 {offsets = [80, 0], sizes = [32, 32], strides = [1, 1]} : vector<144x32xf32> to vector<32x32xf32>
    %271 = vector.extract_strided_slice %2 {offsets = [112, 0], sizes = [32, 10], strides = [1, 1]} : vector<144x32xf32> to vector<32x10xf32>
    %cst_46 = arith.constant dense<0.000000e+00> : vector<1x32xf32>
    %272 = tpu.matmul %268, %269, %cst_46 {dimension_numbers = #tpu.dot_dimension_numbers<[1], [0], [0], [1], [0, 0, 1, 1], [], []>} : vector<1x80xf32>, vector<80x32xf32>, vector<1x32xf32> -> vector<1x32xf32>
    %273 = vector.extract_strided_slice %1 {offsets = [0, 800], sizes = [1, 32], strides = [1, 1]} : vector<1x1002xf32> to vector<1x32xf32>
    %274 = arith.addf %272, %273 : vector<1x32xf32>
    %275 = vector.extract_strided_slice %1 {offsets = [0, 832], sizes = [1, 32], strides = [1, 1]} : vector<1x1002xf32> to vector<1x32xf32>
    %276 = vector.extract_strided_slice %1 {offsets = [0, 864], sizes = [1, 32], strides = [1, 1]} : vector<1x1002xf32> to vector<1x32xf32>
    %cst_47 = arith.constant dense<0.000000e+00> : vector<1xf32>
    %277 = vector.multi_reduction <add>, %274, %cst_47 [1] : vector<1x32xf32> to vector<1xf32>
    %278 = vector.shape_cast %277 : vector<1xf32> to vector<1x1xf32>
    %279 = arith.mulf %274, %274 : vector<1x32xf32>
    %cst_48 = arith.constant dense<0.000000e+00> : vector<1xf32>
    %280 = vector.multi_reduction <add>, %279, %cst_48 [1] : vector<1x32xf32> to vector<1xf32>
    %281 = vector.shape_cast %280 : vector<1xf32> to vector<1x1xf32>
    %cst_49 = arith.constant 3.125000e-02 : f32
    %282 = vector.broadcast %cst_49 : f32 to vector<1x1xf32>
    %283 = arith.mulf %278, %282 : vector<1x1xf32>
    %284 = arith.mulf %278, %283 : vector<1x1xf32>
    %285 = arith.subf %281, %284 : vector<1x1xf32>
    %cst_50 = arith.constant 0.000000e+00 : f32
    %286 = vector.broadcast %cst_50 : f32 to vector<1x1xf32>
    %287 = arith.maximumf %285, %286 : vector<1x1xf32>
    %cst_51 = arith.constant 0.0322580636 : f32
    %288 = vector.broadcast %cst_51 : f32 to vector<1x1xf32>
    %289 = arith.mulf %287, %288 : vector<1x1xf32>
    %290 = math.sqrt %289 : vector<1x1xf32>
    %cst_52 = arith.constant 9.99999997E-7 : f32
    %291 = vector.broadcast %cst_52 : f32 to vector<1x1xf32>
    %292 = arith.addf %290, %291 : vector<1x1xf32>
    %293 = tpu.reciprocal %292 : vector<1x1xf32> -> vector<1x1xf32>
    %294 = vector.broadcast %283 : vector<1x1xf32> to vector<1x32xf32>
    %295 = arith.subf %274, %294 : vector<1x32xf32>
    %296 = vector.broadcast %293 : vector<1x1xf32> to vector<1x32xf32>
    %297 = arith.mulf %295, %296 : vector<1x32xf32>
    %298 = arith.mulf %275, %297 : vector<1x32xf32>
    %299 = arith.addf %298, %276 : vector<1x32xf32>
    %cst_53 = arith.constant 2.000000e-01 : f32
    %300 = vector.broadcast %cst_53 : f32 to vector<1x32xf32>
    %301 = arith.mulf %300, %299 : vector<1x32xf32>
    %302 = arith.maximumf %299, %301 : vector<1x32xf32>
    %cst_54 = arith.constant dense<0.000000e+00> : vector<1x32xf32>
    %303 = tpu.matmul %302, %270, %cst_54 {dimension_numbers = #tpu.dot_dimension_numbers<[1], [0], [0], [1], [0, 0, 1, 1], [], []>} : vector<1x32xf32>, vector<32x32xf32>, vector<1x32xf32> -> vector<1x32xf32>
    %304 = vector.extract_strided_slice %1 {offsets = [0, 896], sizes = [1, 32], strides = [1, 1]} : vector<1x1002xf32> to vector<1x32xf32>
    %305 = arith.addf %303, %304 : vector<1x32xf32>
    %306 = vector.extract_strided_slice %1 {offsets = [0, 928], sizes = [1, 32], strides = [1, 1]} : vector<1x1002xf32> to vector<1x32xf32>
    %307 = vector.extract_strided_slice %1 {offsets = [0, 960], sizes = [1, 32], strides = [1, 1]} : vector<1x1002xf32> to vector<1x32xf32>
    %cst_55 = arith.constant dense<0.000000e+00> : vector<1xf32>
    %308 = vector.multi_reduction <add>, %305, %cst_55 [1] : vector<1x32xf32> to vector<1xf32>
    %309 = vector.shape_cast %308 : vector<1xf32> to vector<1x1xf32>
    %310 = arith.mulf %305, %305 : vector<1x32xf32>
    %cst_56 = arith.constant dense<0.000000e+00> : vector<1xf32>
    %311 = vector.multi_reduction <add>, %310, %cst_56 [1] : vector<1x32xf32> to vector<1xf32>
    %312 = vector.shape_cast %311 : vector<1xf32> to vector<1x1xf32>
    %cst_57 = arith.constant 3.125000e-02 : f32
    %313 = vector.broadcast %cst_57 : f32 to vector<1x1xf32>
    %314 = arith.mulf %309, %313 : vector<1x1xf32>
    %315 = arith.mulf %309, %314 : vector<1x1xf32>
    %316 = arith.subf %312, %315 : vector<1x1xf32>
    %cst_58 = arith.constant 0.000000e+00 : f32
    %317 = vector.broadcast %cst_58 : f32 to vector<1x1xf32>
    %318 = arith.maximumf %316, %317 : vector<1x1xf32>
    %cst_59 = arith.constant 0.0322580636 : f32
    %319 = vector.broadcast %cst_59 : f32 to vector<1x1xf32>
    %320 = arith.mulf %318, %319 : vector<1x1xf32>
    %321 = math.sqrt %320 : vector<1x1xf32>
    %cst_60 = arith.constant 9.99999997E-7 : f32
    %322 = vector.broadcast %cst_60 : f32 to vector<1x1xf32>
    %323 = arith.addf %321, %322 : vector<1x1xf32>
    %324 = tpu.reciprocal %323 : vector<1x1xf32> -> vector<1x1xf32>
    %325 = vector.broadcast %314 : vector<1x1xf32> to vector<1x32xf32>
    %326 = arith.subf %305, %325 : vector<1x32xf32>
    %327 = vector.broadcast %324 : vector<1x1xf32> to vector<1x32xf32>
    %328 = arith.mulf %326, %327 : vector<1x32xf32>
    %329 = arith.mulf %306, %328 : vector<1x32xf32>
    %330 = arith.addf %329, %307 : vector<1x32xf32>
    %cst_61 = arith.constant 2.000000e-01 : f32
    %331 = vector.broadcast %cst_61 : f32 to vector<1x32xf32>
    %332 = arith.mulf %331, %330 : vector<1x32xf32>
    %333 = arith.maximumf %330, %332 : vector<1x32xf32>
    %cst_62 = arith.constant dense<0.000000e+00> : vector<1x10xf32>
    %334 = tpu.matmul %333, %271, %cst_62 {dimension_numbers = #tpu.dot_dimension_numbers<[1], [0], [0], [1], [0, 0, 1, 1], [], []>} : vector<1x32xf32>, vector<32x10xf32>, vector<1x10xf32> -> vector<1x10xf32>
    %335 = vector.extract_strided_slice %1 {offsets = [0, 992], sizes = [1, 10], strides = [1, 1]} : vector<1x1002xf32> to vector<1x10xf32>
    %336 = arith.addf %334, %335 : vector<1x10xf32>
    %cst_63 = arith.constant dense<0xFF800000> : vector<1xf32>
    %337 = vector.multi_reduction <maximumf>, %336, %cst_63 [1] : vector<1x10xf32> to vector<1xf32>
    %338 = vector.shape_cast %337 : vector<1xf32> to vector<1x1xf32>
    %339 = vector.broadcast %338 : vector<1x1xf32> to vector<1x10xf32>
    %340 = arith.subf %336, %339 : vector<1x10xf32>
    %341 = math.exp %340 : vector<1x10xf32>
    %cst_64 = arith.constant dense<0.000000e+00> : vector<1xf32>
    %342 = vector.multi_reduction <add>, %341, %cst_64 [1] : vector<1x10xf32> to vector<1xf32>
    %343 = vector.shape_cast %342 : vector<1xf32> to vector<1x1xf32>
    %344 = math.log %343 : vector<1x1xf32>
    %345 = vector.broadcast %344 : vector<1x1xf32> to vector<1x10xf32>
    %346 = arith.subf %340, %345 : vector<1x10xf32>
    %c0_65 = arith.constant 0 : index
    %c0_66 = arith.constant 0 : index
    %c0_67 = arith.constant 0 : index
    %347 = vector.load %arg8[%c0_65, %c0_66, %c0_67] : memref<1x1x10xf32, #tpu.memory_space<vmem>>, vector<1x1x10xf32>
    %348 = vector.shape_cast %347 : vector<1x1x10xf32> to vector<1x10xf32>
    %349 = vector.shape_cast %346 : vector<1x10xf32> to vector<1x1x10xf32>
    tpu.vector_store %arg8[%c0_65, %c0_66, %c0_67], %349 {strides = array<i32>} : memref<1x1x10xf32, #tpu.memory_space<vmem>>, vector<1x1x10xf32>,
    return
  }
  func.func @transform_0(%arg0: i32) -> (i32, i32, i32) {
    %c0_i32 = arith.constant 0 : i32
    %c0_i32_0 = arith.constant 0 : i32
    %c0_i32_1 = arith.constant 0 : i32
    return %arg0, %c0_i32, %c0_i32_0 : i32, i32, i32
  }
  func.func @transform_1(%arg0: i32) -> (i32, i32) {
    %c0_i32 = arith.constant 0 : i32
    %c0_i32_0 = arith.constant 0 : i32
    %c0_i32_1 = arith.constant 0 : i32
    return %c0_i32, %c0_i32_0 : i32, i32
  }
  func.func @transform_2(%arg0: i32) -> (i32, i32) {
    %c0_i32 = arith.constant 0 : i32
    %c0_i32_0 = arith.constant 0 : i32
    %c0_i32_1 = arith.constant 0 : i32
    return %c0_i32, %c0_i32_0 : i32, i32
  }
  func.func @transform_3(%arg0: i32) -> (i32, i32) {
    %c0_i32 = arith.constant 0 : i32
    %c0_i32_0 = arith.constant 0 : i32
    %c0_i32_1 = arith.constant 0 : i32
    return %c0_i32, %c0_i32_0 : i32, i32
  }
  func.func @transform_4(%arg0: i32) -> (i32, i32) {
    %c0_i32 = arith.constant 0 : i32
    %c0_i32_0 = arith.constant 0 : i32
    %c0_i32_1 = arith.constant 0 : i32
    return %c0_i32, %c0_i32_0 : i32, i32
  }
  func.func @transform_5(%arg0: i32) -> (i32, i32) {
    %c0_i32 = arith.constant 0 : i32
    %c0_i32_0 = arith.constant 0 : i32
    %c0_i32_1 = arith.constant 0 : i32
    return %c0_i32, %c0_i32_0 : i32, i32
  }
  func.func @transform_6(%arg0: i32) -> (i32, i32) {
    %c0_i32 = arith.constant 0 : i32
    %c0_i32_0 = arith.constant 0 : i32
    %c0_i32_1 = arith.constant 0 : i32
    return %c0_i32, %c0_i32_0 : i32, i32
  }
  func.func @transform_7(%arg0: i32) -> (i32, i32, i32) {
    %c0_i32 = arith.constant 0 : i32
    %c0_i32_0 = arith.constant 0 : i32
    %c0_i32_1 = arith.constant 0 : i32
    return %arg0, %c0_i32, %c0_i32_0 : i32, i32, i32
  }
}

</mosaic_0001>

<llo_original>
// kernel: sincnet_forward.1
$region0: #{sincnet_forward.1}
  #allocation0 [shape = 'u32[]', space=smem, size = 0x4, offset = 0x4, fixed_abs, tag = 'smem constant byte address 0x4 - core index']
  #allocation1 [shape = 'u32[144,128]{1,0:T(1,128)}', space=vmem, size = 0x12000, scoped, tag = 'internal scratch']
  %s0 = inlined_call_operand.vmem [shape: f32[2,1,400], index: 0, kind: input, shape index: {}]
  %s1 = inlined_call_operand.vmem [shape: f32[8,431], index: 1, kind: input, shape index: {}]
  %s2 = inlined_call_operand.vmem [shape: f32[1,1002], index: 2, kind: input, shape index: {}]
  %s3 = inlined_call_operand.vmem [shape: f32[144,32], index: 3, kind: input, shape index: {}]
  %s4 = inlined_call_operand.vmem [shape: f32[334,112], index: 4, kind: input, shape index: {}]
  %s5 = inlined_call_operand.vmem [shape: f32[106,36], index: 5, kind: input, shape index: {}]
  %s6 = inlined_call_operand.vmem [shape: f32[30,10], index: 6, kind: input, shape index: {}]
  %s7 = inlined_call_operand.hbm [shape: f32[2,1,10], index: 7, kind: output, shape index: {}]
  %s8 = sld [smem:[#allocation0]]
  $region61: #{sincnet_forward.1} parent=0
    _
  %s10 = ssub.s32 1, %s8
  %s11 = scalar_select 0, %s10, %s8
  $region1: #{sincnet_forward.1} parent=0
    #allocation2 [shape = 'u8[1024]{0}', space=vmem, size = 0x400, scoped, tag = 'output window, operand 0']
    #allocation3 [shape = 's32[2]{0}', space=sflag, size = 0x8, scoped, tag = 'scoped memory for sincnet_forward.1']
    %12 = vsyncpa [#allocation3], 0
    %s13 = scalar_lea.sflag [#allocation3], 1
    %14 = vsyncpa %s13, 0
    loop: start=0, step=1, limit=4
    $region2: #{sincnet_forward.1} parent=1 // loop_pre_header
      _
    $region3: #{sincnet_forward.1} parent=1 // loop_header
      %s16 = sphi 0, %s20
      %p17 = scmp.ge.s32.totalorder %s16, 4
      %s26 = sphi 0, %s28
      %s29 = sphi 0, %s26
      %s30 = sphi 0, %s29
      %s46 = sphi 0, %s30
      %s50 = sphi 0, %s50
      %s52 = sphi 0, %s50
      %s53 = sphi 0, %s52
      %s67 = sphi 0, %s53
      %s71 = sphi 0, %s71
      %s73 = sphi 0, %s71
      %s74 = sphi 0, %s73
      %s88 = sphi 0, %s74
      %s92 = sphi 0, %s92
      %s94 = sphi 0, %s92
      %s95 = sphi 0, %s94
      %s109 = sphi 0, %s95
      %s113 = sphi 0, %s113
      %s115 = sphi 0, %s113
      %s116 = sphi 0, %s115
      %s130 = sphi 0, %s116
      %s134 = sphi 0, %s134
      %s136 = sphi 0, %s134
      %s137 = sphi 0, %s136
      %s151 = sphi 0, %s137
      %s155 = sphi 0, %s155
      %s157 = sphi 0, %s155
      %s158 = sphi 0, %s157
      %s172 = sphi 0, %s158
      %s178 = sphi 0, %s180
      %s181 = sphi 0, %s178
      %s182 = sphi 0, %s181
      %s198 = sphi 0, %s182
    $region4: #{sincnet_forward.1} parent=1 // loop_header_branch
      %19 = sbr.rel (%p17) target = $region8
    $region5: #{sincnet_forward.1} parent=1 // loop_body
      %s21 = ssub.s32 %s16, 1
      %s22 = ssub.s32 %s16, 2
      %s23 = sadd.s32 %s16, 1
      %s24 = ssub.s32 %s16, %s23
      %p25 = scmp.eq.s32.totalorder %s24, 0
      %s27 = sadd.s32 %s26, 1
      %s28 = scalar_select %p25, %s26, %s27
      %p31 = pneg %p25
      %p32 = scmp.eq.s32.totalorder %s16, 1
      %p33 = por %p31, %p32
      %p34 = scmp.ne.s32.totalorder %s26, %s29
      %p35 = scmp.eq.s32.totalorder %s16, 0
      %p36 = por %p34, %p35
      %p37 = scmp.ne.s32.totalorder %s26, %s29
      %p38 = scmp.eq.s32.totalorder %s21, 1
      %p39 = por %p37, %p38
      %p40 = scmp.ne.s32.totalorder %s29, %s30
      %p41 = scmp.eq.s32.totalorder %s21, 0
      %p42 = por %p40, %p41
      %p43 = scmp.ne.s32.totalorder %s29, %s30
      %p44 = scmp.eq.s32.totalorder %s22, 1
      %p45 = por %p43, %p44
      %p47 = scmp.ne.s32.totalorder %s30, %s46
      %p48 = scmp.eq.s32.totalorder %s22, 0
      %p49 = por %p47, %p48
      %s51 = sadd.s32 %s50, 1
      %p54 = scmp.eq.s32.totalorder %s16, 1
      %p55 = scmp.ne.s32.totalorder %s50, %s52
      %p56 = scmp.eq.s32.totalorder %s16, 0
      %p57 = por %p55, %p56
      %p58 = scmp.ne.s32.totalorder %s50, %s52
      %p59 = scmp.eq.s32.totalorder %s21, 1
      %p60 = por %p58, %p59
      %p61 = scmp.ne.s32.totalorder %s52, %s53
      %p62 = scmp.eq.s32.totalorder %s21, 0
      %p63 = por %p61, %p62
      %p64 = scmp.ne.s32.totalorder %s52, %s53
      %p65 = scmp.eq.s32.totalorder %s22, 1
      %p66 = por %p64, %p65
      %p68 = scmp.ne.s32.totalorder %s53, %s67
      %p69 = scmp.eq.s32.totalorder %s22, 0
      %p70 = por %p68, %p69
      %s72 = sadd.s32 %s71, 1
      %p75 = scmp.eq.s32.totalorder %s16, 1
      %p76 = scmp.ne.s32.totalorder %s71, %s73
      %p77 = scmp.eq.s32.totalorder %s16, 0
      %p78 = por %p76, %p77
      %p79 = scmp.ne.s32.totalorder %s71, %s73
      %p80 = scmp.eq.s32.totalorder %s21, 1
      %p81 = por %p79, %p80
      %p82 = scmp.ne.s32.totalorder %s73, %s74
      %p83 = scmp.eq.s32.totalorder %s21, 0
      %p84 = por %p82, %p83
      %p85 = scmp.ne.s32.totalorder %s73, %s74
      %p86 = scmp.eq.s32.totalorder %s22, 1
      %p87 = por %p85, %p86
      %p89 = scmp.ne.s32.totalorder %s74, %s88
      %p90 = scmp.eq.s32.totalorder %s22, 0
      %p91 = por %p89, %p90
      %s93 = sadd.s32 %s92, 1
      %p96 = scmp.eq.s32.totalorder %s16, 1
      %p97 = scmp.ne.s32.totalorder %s92, %s94
      %p98 = scmp.eq.s32.totalorder %s16, 0
      %p99 = por %p97, %p98
      %p100 = scmp.ne.s32.totalorder %s92, %s94
      %p101 = scmp.eq.s32.totalorder %s21, 1
      %p102 = por %p100, %p101
      %p103 = scmp.ne.s32.totalorder %s94, %s95
      %p104 = scmp.eq.s32.totalorder %s21, 0
      %p105 = por %p103, %p104
      %p106 = scmp.ne.s32.totalorder %s94, %s95
      %p107 = scmp.eq.s32.totalorder %s22, 1
      %p108 = por %p106, %p107
      %p110 = scmp.ne.s32.totalorder %s95, %s109
      %p111 = scmp.eq.s32.totalorder %s22, 0
      %p112 = por %p110, %p111
      %s114 = sadd.s32 %s113, 1
      %p117 = scmp.eq.s32.totalorder %s16, 1
      %p118 = scmp.ne.s32.totalorder %s113, %s115
      %p119 = scmp.eq.s32.totalorder %s16, 0
      %p120 = por %p118, %p119
      %p121 = scmp.ne.s32.totalorder %s113, %s115
      %p122 = scmp.eq.s32.totalorder %s21, 1
      %p123 = por %p121, %p122
      %p124 = scmp.ne.s32.totalorder %s115, %s116
      %p125 = scmp.eq.s32.totalorder %s21, 0
      %p126 = por %p124, %p125
      %p127 = scmp.ne.s32.totalorder %s115, %s116
      %p128 = scmp.eq.s32.totalorder %s22, 1
      %p129 = por %p127, %p128
      %p131 = scmp.ne.s32.totalorder %s116, %s130
      %p132 = scmp.eq.s32.totalorder %s22, 0
      %p133 = por %p131, %p132
      %s135 = sadd.s32 %s134, 1
      %p138 = scmp.eq.s32.totalorder %s16, 1
      %p139 = scmp.ne.s32.totalorder %s134, %s136
      %p140 = scmp.eq.s32.totalorder %s16, 0
      %p141 = por %p139, %p140
      %p142 = scmp.ne.s32.totalorder %s134, %s136
      %p143 = scmp.eq.s32.totalorder %s21, 1
      %p144 = por %p142, %p143
      %p145 = scmp.ne.s32.totalorder %s136, %s137
      %p146 = scmp.eq.s32.totalorder %s21, 0
      %p147 = por %p145, %p146
      %p148 = scmp.ne.s32.totalorder %s136, %s137
      %p149 = scmp.eq.s32.totalorder %s22, 1
      %p150 = por %p148, %p149
      %p152 = scmp.ne.s32.totalorder %s137, %s151
      %p153 = scmp.eq.s32.totalorder %s22, 0
      %p154 = por %p152, %p153
      %s156 = sadd.s32 %s155, 1
      %p159 = scmp.eq.s32.totalorder %s16, 1
      %p160 = scmp.ne.s32.totalorder %s155, %s157
      %p161 = scmp.eq.s32.totalorder %s16, 0
      %p162 = por %p160, %p161
      %p163 = scmp.ne.s32.totalorder %s155, %s157
      %p164 = scmp.eq.s32.totalorder %s21, 1
      %p165 = por %p163, %p164
      %p166 = scmp.ne.s32.totalorder %s157, %s158
      %p167 = scmp.eq.s32.totalorder %s21, 0
      %p168 = por %p166, %p167
      %p169 = scmp.ne.s32.totalorder %s157, %s158
      %p170 = scmp.eq.s32.totalorder %s22, 1
      %p171 = por %p169, %p170
      %p173 = scmp.ne.s32.totalorder %s158, %s172
      %p174 = scmp.eq.s32.totalorder %s22, 0
      %p175 = por %p173, %p174
      %s176 = ssub.s32 %s16, %s23
      %p177 = scmp.eq.s32.totalorder %s176, 0
      %s179 = sadd.s32 %s178, 1
      %s180 = scalar_select %p177, %s178, %s179
      %p183 = pneg %p177
      %p184 = scmp.eq.s32.totalorder %s16, 1
      %p185 = por %p183, %p184
      %p186 = scmp.ne.s32.totalorder %s178, %s181
      %p187 = scmp.eq.s32.totalorder %s16, 0
      %p188 = por %p186, %p187
      %p189 = scmp.ne.s32.totalorder %s178, %s181
      %p190 = scmp.eq.s32.totalorder %s21, 1
      %p191 = por %p189, %p190
      %p192 = scmp.ne.s32.totalorder %s181, %s182
      %p193 = scmp.eq.s32.totalorder %s21, 0
      %p194 = por %p192, %p193
      %p195 = scmp.ne.s32.totalorder %s181, %s182
      %p196 = scmp.eq.s32.totalorder %s22, 1
      %p197 = por %p195, %p196
      %p199 = scmp.ne.s32.totalorder %s182, %s198
      %p200 = scmp.eq.s32.totalorder %s22, 0
      %p201 = por %p199, %p200
      %p202 = scmp.le.s32.totalorder 1, %s16
      %p203 = scmp.lt.s32.totalorder %s16, 3
      %p204 = pnand %p202, %p203
      %p205 = pneg %p204
      // Predicated region
      $region9: #{sincnet_forward.1} parent=5 // pred_check
        _
      $region10: #{sincnet_forward.1} parent=5 // pred_check_branch
        %207 = sbr.rel (%p204) target = $region12
      $region11: #{sincnet_forward.1} parent=5 // pred_region
        %s208 = ssub.s32 %s16, 1
        // Predicated region
        $region13: #{sincnet_forward.1} parent=11 // pred_check
          %p209 = pneg %p63
        $region14: #{sincnet_forward.1} parent=11 // pred_check_branch
          %211 = sbr.rel (%p209) target = $region16
        $region15: #{sincnet_forward.1} parent=11 // pred_region
          _
        $region16: #{sincnet_forward.1} parent=11 // pred_fallthru
          _
        // Predicated region
        $region17: #{sincnet_forward.1} parent=11 // pred_check
          %p212 = pneg %p84
        $region18: #{sincnet_forward.1} parent=11 // pred_check_branch
          %214 = sbr.rel (%p212) target = $region20
        $region19: #{sincnet_forward.1} parent=11 // pred_region
          _
        $region20: #{sincnet_forward.1} parent=11 // pred_fallthru
          _
        // Predicated region
        $region21: #{sincnet_forward.1} parent=11 // pred_check
          %p215 = pneg %p105
        $region22: #{sincnet_forward.1} parent=11 // pred_check_branch
          %217 = sbr.rel (%p215) target = $region24
        $region23: #{sincnet_forward.1} parent=11 // pred_region
          _
        $region24: #{sincnet_forward.1} parent=11 // pred_fallthru
          _
        // Predicated region
        $region25: #{sincnet_forward.1} parent=11 // pred_check
          %p218 = pneg %p126
        $region26: #{sincnet_forward.1} parent=11 // pred_check_branch
          %220 = sbr.rel (%p218) target = $region28
        $region27: #{sincnet_forward.1} parent=11 // pred_region
          _
        $region28: #{sincnet_forward.1} parent=11 // pred_fallthru
          _
        // Predicated region
        $region29: #{sincnet_forward.1} parent=11 // pred_check
          %p221 = pneg %p147
        $region30: #{sincnet_forward.1} parent=11 // pred_check_branch
          %223 = sbr.rel (%p221) target = $region32
        $region31: #{sincnet_forward.1} parent=11 // pred_region
          _
        $region32: #{sincnet_forward.1} parent=11 // pred_fallthru
          _
        // Predicated region
        $region33: #{sincnet_forward.1} parent=11 // pred_check
          %p224 = pneg %p168
        $region34: #{sincnet_forward.1} parent=11 // pred_check_branch
          %226 = sbr.rel (%p224) target = $region36
        $region35: #{sincnet_forward.1} parent=11 // pred_region
          _
        $region36: #{sincnet_forward.1} parent=11 // pred_fallthru
          _
      $region12: #{sincnet_forward.1} parent=5 // pred_fallthru
        _
      %p227 = scmp.lt.s32.totalorder %s16, 2
      // Predicated region
      $region37: #{sincnet_forward.1} parent=5 // pred_check
        %p228 = pneg %p227
      $region38: #{sincnet_forward.1} parent=5 // pred_check_branch
        %230 = sbr.rel (%p228) target = $region40
      $region39: #{sincnet_forward.1} parent=5 // pred_region
        // Predicated region
        $region41: #{sincnet_forward.1} parent=39 // pred_check
          %p231 = pneg %p36
        $region42: #{sincnet_forward.1} parent=39 // pred_check_branch
          %233 = sbr.rel (%p231) target = $region44
        $region43: #{sincnet_forward.1} parent=39 // pred_region
          %p234 = scmp.lt.s32.totalorder %s16, 1
          %s235 = scalar_select %p234, %s16, 1
          %s236 = smul.addr %s235, 4
          %s237 = scalar_lea.vmem %s0, %s236
        $region44: #{sincnet_forward.1} parent=39 // pred_fallthru
          _
      $region40: #{sincnet_forward.1} parent=5 // pred_fallthru
        _
      %p238 = scmp.le.s32.totalorder 1, %s16
      %p239 = scmp.lt.s32.totalorder %s16, 3
      %p240 = pnand %p238, %p239
      %p241 = pneg %p240
      // Predicated region
      $region45: #{sincnet_forward.1} parent=5 // pred_check
        _
      $region46: #{sincnet_forward.1} parent=5 // pred_check_branch
        %243 = sbr.rel (%p240) target = $region48
      $region47: #{sincnet_forward.1} parent=5 // pred_region
        %s244 = ssub.s32 %s16, 1
        %p245 = scmp.lt.s32.totalorder %s21, 1
        %s246 = scalar_select %p245, %s21, 1
        %s247 = smul.addr %s246, 4
        %s248 = scalar_lea.vmem %s0, %s247
        %p249 = pneg %p42
        %p250 = pneg %p39
        %p251 = pneg %p63
        %p252 = pneg %p60
        %p253 = pneg %p84
        %p254 = pneg %p81
        %p255 = pneg %p105
        %p256 = pneg %p102
        %p257 = pneg %p126
        %p258 = pneg %p123
        %p259 = pneg %p147
        %p260 = pneg %p144
        %p261 = pneg %p168
        %p262 = pneg %p165
        %p263 = pneg %p194
        %p264 = pneg %p191
        %s265 = sand.u32 %s181, 1
        %s266 = scalar_lea.sflag [#allocation3], %s265
        %s267 = sand.u32 %s181, 1
        %s268 = scalar_lea.vmem [#allocation2], %s267
        %p269 = scmp.lt.s32.totalorder %s21, 1
        %s270 = scalar_select %p269, %s21, 1
        %s271 = smul.addr %s270, 4
        %s272 = scalar_lea.vmem %s0, %s271
        %v273 = vld [vmem:[%s1] sm:$0xff]
        %v274 = vld [vmem:[%s1 + $0x8] sm:$0xff]
        %v275 = vld [vmem:[%s1 + $0x10] sm:$0xff]
        %v276 = vld [vmem:[%s1 + $0x18] sm:$0xff]
        %v277 = vld [vmem:[%s2] sm:$0xff]
        %v278 = vld [vmem:[%s3] sm:$0xff]
        %v279 = vld [vmem:[%s3 + $0x8] sm:$0xff]
        %v280 = vld [vmem:[%s3 + $0x10] sm:$0xff]
        %v281 = vld [vmem:[%s3 + $0x18] sm:$0xff]
        %v282 = vld [vmem:[%s3 + $0x20] sm:$0xff]
        %v283 = vld [vmem:[%s3 + $0x28] sm:$0xff]
        %v284 = vld [vmem:[%s3 + $0x30] sm:$0xff]
        %v285 = vld [vmem:[%s3 + $0x38] sm:$0xff]
        %v286 = vld [vmem:[%s3 + $0x40] sm:$0xff]
        %v287 = vld [vmem:[%s3 + $0x48] sm:$0xff]
        %v288 = vld [vmem:[%s3 + $0x50] sm:$0xff]
        %v289 = vld [vmem:[%s3 + $0x58] sm:$0xff]
        %v290 = vld [vmem:[%s3 + $0x60] sm:$0xff]
        %v291 = vld [vmem:[%s3 + $0x68] sm:$0xff]
        %v292 = vld [vmem:[%s3 + $0x70] sm:$0xff]
        %v293 = vld [vmem:[%s3 + $0x78] sm:$0xff]
        %v294 = vld [vmem:[%s3 + $0x80] sm:$0xff]
        %v295 = vld [vmem:[%s3 + $0x88] sm:$0xff]
        %v296 = vld [vmem:[%s272] sm:$0xf]
        %v298 = vlaneseq
        %v299 = vshrl.u32 %v298, 7
        %v300 = vsub.s32 0, %v299
        %v301 = vrot.slane %v296, %v300
        %v302 = vlaneseq
        %v303 = vshrl.u32 %v302, 7
        %v304 = vsub.s32 1, %v303
        %v305 = vrot.slane %v296, %v304
        %v306 = vlaneseq
        %v307 = vshrl.u32 %v306, 7
        %v308 = vsub.s32 2, %v307
        %v309 = vrot.slane %v296, %v308
        %v310 = vlaneseq
        %v311 = vshrl.u32 %v310, 7
        %v312 = vsub.s32 3, %v311
        %v313 = vrot.slane %v296, %v312
        %vm318 = vcmask 1040384
        %v319 = vsel %vm318, %v301, 0.0
        %v320 = vsel %vm318, %v305, 0.0
        %v321 = vadd.f32 %v319, %v320
        %v322 = vsel %vm318, %v309, 0.0
        %v323 = vadd.f32 %v321, %v322
        %vm324 = vcmask 122880
        %v325 = vsel %vm324, %v313, 0.0
        %v326 = vadd.f32 %v323, %v325
        %327 = vadd.xlane.f32.xlu0 %v326
        %v328 = vpop.xlane.xlu0 %327
        %v329 = vmul.f32 %v296, %v296
        %v331 = vlaneseq
        %v332 = vshrl.u32 %v331, 7
        %v333 = vsub.s32 0, %v332
        %v334 = vrot.slane %v329, %v333
        %v335 = vlaneseq
        %v336 = vshrl.u32 %v335, 7
        %v337 = vsub.s32 1, %v336
        %v338 = vrot.slane %v329, %v337
        %v339 = vlaneseq
        %v340 = vshrl.u32 %v339, 7
        %v341 = vsub.s32 2, %v340
        %v342 = vrot.slane %v329, %v341
        %v343 = vlaneseq
        %v344 = vshrl.u32 %v343, 7
        %v345 = vsub.s32 3, %v344
        %v346 = vrot.slane %v329, %v345
        %v351 = vsel %vm318, %v334, 0.0
        %v352 = vsel %vm318, %v338, 0.0
        %v353 = vadd.f32 %v351, %v352
        %v354 = vsel %vm318, %v342, 0.0
        %v355 = vadd.f32 %v353, %v354
        %v356 = vsel %vm324, %v346, 0.0
        %v357 = vadd.f32 %v355, %v356
        %358 = vadd.xlane.f32.xlu0 %v357
        %v359 = vpop.xlane.xlu0 %358
        %v360 = vmul.f32 %v328, 0.0025
        %v361 = vmul.f32 %v328, %v360
        %v362 = vsub.f32 %v359, %v361
        %v363 = vmax.f32 %v362, 0.0
        %v364 = vmul.f32 %v363, 0.0025062656
        %v365 = vrsqrt.pop %v364
        %v366 = vmul.f32 %v364, %v365
        %vm367 = vcmp.eq.f32.partialorder %v364, inf
        %v368 = vsel %vm367, %v364, %v366
        %vm369 = vcmp.eq.f32.partialorder %v364, 0.0
        %v370 = vand.u32 %v364, 2147483648
        %v371 = vsel %vm369, %v370, %v368
        %v372 = vadd.f32 %v371, 1e-06
        %v373 = vrcp.pop %v372
        %v375 = vlaneseq
        %v376 = vshrl.u32 %v375, 7
        %v377 = vsub.s32 0, %v376
        %v378 = vrot.slane %v360, %v377
        %v380 = vsub.f32 %v296, %v378
        %v382 = vlaneseq
        %v383 = vshrl.u32 %v382, 7
        %v384 = vsub.s32 0, %v383
        %v385 = vrot.slane %v373, %v384
        %v387 = vmul.f32 %v380, %v385
        %v388 = vmul.f32 %v277, %v387
        %390 = vrot.lane.b32.xlu0 %v277, 112
        %v391 = vpop.permute.xlu0 %390
        %v392 = vrot.slane %v391, 3
        %v393 = vrot.slane %v391, 4
        %vm394 = vcmask 916480
        %v395 = vsel %vm394, %v392, %v393
        %v397 = vadd.f32 %v388, %v395
        %399 = vrot.lane.b32.xlu0 %v397, 64
        %v400 = vpop.permute.xlu0 %399
        %v401 = vrot.slane %v400, 1
        %vm402 = vcmask 523264
        %v403 = vsel %vm402, %v400, %v401
        %v405 = vadd.f32 %v397, %v403
        %406 = vrot.lane.b32.xlu0 %v397, 66
        %v407 = vpop.permute.xlu0 %406
        %v408 = vrot.slane %v407, 1
        %vm409 = vcmask 539648
        %v410 = vsel %vm409, %v407, %v408
        %v412 = vadd.f32 %v397, %v410
        %413 = vrot.lane.b32.xlu0 %v397, 68
        %v414 = vpop.permute.xlu0 %413
        %v415 = vrot.slane %v414, 1
        %vm416 = vcmask 556032
        %v417 = vsel %vm416, %v414, %v415
        %v419 = vadd.f32 %v397, %v417
        %420 = vrot.lane.b32.xlu0 %v397, 70
        %v421 = vpop.permute.xlu0 %420
        %v422 = vrot.slane %v421, 1
        %vm423 = vcmask 572416
        %v424 = vsel %vm423, %v421, %v422
        %v426 = vadd.f32 %v397, %v424
        %427 = vrot.lane.b32.xlu0 %v397, 72
        %v428 = vpop.permute.xlu0 %427
        %v429 = vrot.slane %v428, 1
        %vm430 = vcmask 588800
        %v431 = vsel %vm430, %v428, %v429
        %v433 = vadd.f32 %v397, %v431
        %434 = vrot.lane.b32.xlu0 %v397, 74
        %v435 = vpop.permute.xlu0 %434
        %v436 = vrot.slane %v435, 1
        %vm437 = vcmask 605184
        %v438 = vsel %vm437, %v435, %v436
        %v440 = vadd.f32 %v397, %v438
        %441 = vrot.lane.b32.xlu0 %v397, 76
        %v442 = vpop.permute.xlu0 %441
        %v443 = vrot.slane %v442, 1
        %vm444 = vcmask 621568
        %v445 = vsel %vm444, %v442, %v443
        %v447 = vadd.f32 %v397, %v445
        %448 = vrot.lane.b32.xlu0 %v397, 78
        %v449 = vpop.permute.xlu0 %448
        %v450 = vrot.slane %v449, 1
        %vm451 = vcmask 637952
        %v452 = vsel %vm451, %v449, %v450
        %v454 = vadd.f32 %v397, %v452
        %455 = vrot.lane.b32.xlu0 %v397, 80
        %v456 = vpop.permute.xlu0 %455
        %v457 = vrot.slane %v456, 1
        %vm458 = vcmask 654336
        %v459 = vsel %vm458, %v456, %v457
        %v461 = vadd.f32 %v397, %v459
        %462 = vrot.lane.b32.xlu0 %v397, 82
        %v463 = vpop.permute.xlu0 %462
        %v464 = vrot.slane %v463, 1
        %vm465 = vcmask 670720
        %v466 = vsel %vm465, %v463, %v464
        %v468 = vadd.f32 %v397, %v466
        %469 = vrot.lane.b32.xlu0 %v397, 84
        %v470 = vpop.permute.xlu0 %469
        %v471 = vrot.slane %v470, 1
        %vm472 = vcmask 687104
        %v473 = vsel %vm472, %v470, %v471
        %v475 = vadd.f32 %v397, %v473
        %476 = vrot.lane.b32.xlu0 %v397, 86
        %v477 = vpop.permute.xlu0 %476
        %v478 = vrot.slane %v477, 1
        %vm479 = vcmask 703488
        %v480 = vsel %vm479, %v477, %v478
        %v482 = vadd.f32 %v397, %v480
        %483 = vrot.lane.b32.xlu0 %v397, 88
        %v484 = vpop.permute.xlu0 %483
        %v485 = vrot.slane %v484, 1
        %vm486 = vcmask 719872
        %v487 = vsel %vm486, %v484, %v485
        %v489 = vadd.f32 %v397, %v487
        %490 = vrot.lane.b32.xlu0 %v397, 90
        %v491 = vpop.permute.xlu0 %490
        %v492 = vrot.slane %v491, 1
        %vm493 = vcmask 736256
        %v494 = vsel %vm493, %v491, %v492
        %v496 = vadd.f32 %v397, %v494
        %497 = vrot.lane.b32.xlu0 %v397, 92
        %v498 = vpop.permute.xlu0 %497
        %v499 = vrot.slane %v498, 1
        %vm500 = vcmask 752640
        %v501 = vsel %vm500, %v498, %v499
        %v503 = vadd.f32 %v397, %v501
        %504 = vrot.lane.b32.xlu0 %v397, 94
        %v505 = vpop.permute.xlu0 %504
        %v506 = vrot.slane %v505, 1
        %vm507 = vcmask 769024
        %v508 = vsel %vm507, %v505, %v506
        %v510 = vadd.f32 %v397, %v508
        %511 = vrot.lane.b32.xlu0 %v397, 96
        %v512 = vpop.permute.xlu0 %511
        %v513 = vrot.slane %v512, 1
        %vm514 = vcmask 785408
        %v515 = vsel %vm514, %v512, %v513
        %v517 = vadd.f32 %v397, %v515
        %518 = vrot.lane.b32.xlu0 %v397, 98
        %v519 = vpop.permute.xlu0 %518
        %v520 = vrot.slane %v519, 1
        %vm521 = vcmask 801792
        %v522 = vsel %vm521, %v519, %v520
        %v524 = vadd.f32 %v397, %v522
        %525 = vrot.lane.b32.xlu0 %v397, 100
        %v526 = vpop.permute.xlu0 %525
        %v527 = vrot.slane %v526, 1
        %vm528 = vcmask 818176
        %v529 = vsel %vm528, %v526, %v527
        %v531 = vadd.f32 %v397, %v529
        %532 = vrot.lane.b32.xlu0 %v397, 102
        %v533 = vpop.permute.xlu0 %532
        %v534 = vrot.slane %v533, 1
        %vm535 = vcmask 834560
        %v536 = vsel %vm535, %v533, %v534
        %v538 = vadd.f32 %v397, %v536
        %539 = vrot.lane.b32.xlu0 %v397, 104
        %v540 = vpop.permute.xlu0 %539
        %v541 = vrot.slane %v540, 1
        %vm542 = vcmask 850944
        %v543 = vsel %vm542, %v540, %v541
        %v545 = vadd.f32 %v397, %v543
        %546 = vrot.lane.b32.xlu0 %v397, 106
        %v547 = vpop.permute.xlu0 %546
        %v548 = vrot.slane %v547, 1
        %vm549 = vcmask 867328
        %v550 = vsel %vm549, %v547, %v548
        %v552 = vadd.f32 %v397, %v550
        %553 = vrot.lane.b32.xlu0 %v397, 108
        %v554 = vpop.permute.xlu0 %553
        %v555 = vrot.slane %v554, 1
        %vm556 = vcmask 883712
        %v557 = vsel %vm556, %v554, %v555
        %v559 = vadd.f32 %v397, %v557
        %560 = vrot.lane.b32.xlu0 %v397, 110
        %v561 = vpop.permute.xlu0 %560
        %v562 = vrot.slane %v561, 1
        %vm563 = vcmask 900096
        %v564 = vsel %vm563, %v561, %v562
        %v566 = vadd.f32 %v397, %v564
        %567 = vrot.lane.b32.xlu0 %v397, 112
        %v568 = vpop.permute.xlu0 %567
        %v569 = vrot.slane %v568, 1
        %v570 = vsel %vm394, %v568, %v569
        %v572 = vadd.f32 %v397, %v570
        %573 = vrot.lane.b32.xlu0 %v397, 114
        %v574 = vpop.permute.xlu0 %573
        %v575 = vrot.slane %v574, 1
        %vm576 = vcmask 932864
        %v577 = vsel %vm576, %v574, %v575
        %v579 = vadd.f32 %v397, %v577
        %580 = vrot.lane.b32.xlu0 %v397, 116
        %v581 = vpop.permute.xlu0 %580
        %v582 = vrot.slane %v581, 1
        %vm583 = vcmask 949248
        %v584 = vsel %vm583, %v581, %v582
        %v586 = vadd.f32 %v397, %v584
        %587 = vrot.lane.b32.xlu0 %v397, 118
        %v588 = vpop.permute.xlu0 %587
        %v589 = vrot.slane %v588, 1
        %vm590 = vcmask 965632
        %v591 = vsel %vm590, %v588, %v589
        %v593 = vadd.f32 %v397, %v591
        %594 = vrot.lane.b32.xlu0 %v397, 120
        %v595 = vpop.permute.xlu0 %594
        %v596 = vrot.slane %v595, 1
        %vm597 = vcmask 982016
        %v598 = vsel %vm597, %v595, %v596
        %v600 = vadd.f32 %v397, %v598
        %601 = vrot.lane.b32.xlu0 %v397, 122
        %v602 = vpop.permute.xlu0 %601
        %v603 = vrot.slane %v602, 1
        %vm604 = vcmask 998400
        %v605 = vsel %vm604, %v602, %v603
        %v607 = vadd.f32 %v397, %v605
        %608 = vrot.lane.b32.xlu0 %v397, 124
        %v609 = vpop.permute.xlu0 %608
        %v610 = vrot.slane %v609, 1
        %vm611 = vcmask 1014784
        %v612 = vsel %vm611, %v609, %v610
        %v614 = vadd.f32 %v397, %v612
        %615 = vrot.lane.b32.xlu0 %v397, 126
        %v616 = vpop.permute.xlu0 %615
        %v617 = vrot.slane %v616, 1
        %vm618 = vcmask 1031168
        %v619 = vsel %vm618, %v616, %v617
        %v621 = vadd.f32 %v397, %v619
        %v623 = vlaneseq
        %v624 = vshrl.u32 %v623, 7
        %v625 = vsub.s32 0, %v624
        %v626 = vrot.slane %v405, %v625
        %v627 = vlaneseq
        %v628 = vshrl.u32 %v627, 7
        %v629 = vsub.s32 1, %v628
        %v630 = vrot.slane %v405, %v629
        %v631 = vlaneseq
        %v632 = vshrl.u32 %v631, 7
        %v633 = vsub.s32 2, %v632
        %v634 = vrot.slane %v405, %v633
        %v639 = vlaneseq
        %v640 = vshrl.u32 %v639, 7
        %v641 = vsub.s32 0, %v640
        %v642 = vrot.slane %v412, %v641
        %v643 = vlaneseq
        %v644 = vshrl.u32 %v643, 7
        %v645 = vsub.s32 1, %v644
        %v646 = vrot.slane %v412, %v645
        %v647 = vlaneseq
        %v648 = vshrl.u32 %v647, 7
        %v649 = vsub.s32 2, %v648
        %v650 = vrot.slane %v412, %v649
        %651 = vrot.lane.b32.xlu0 %v642, 127
        %v652 = vpop.permute.xlu0 %651
        %653 = vrot.lane.b32.xlu0 %v646, 127
        %v654 = vpop.permute.xlu0 %653
        %655 = vrot.lane.b32.xlu0 %v650, 127
        %v656 = vpop.permute.xlu0 %655
        %vm657 = vcmask 1039360
        %v658 = vsel %vm657, %v652, %v654
        %v659 = vsel %vm657, %v654, %v656
        %v664 = vlaneseq
        %v665 = vshrl.u32 %v664, 7
        %v666 = vsub.s32 0, %v665
        %v667 = vrot.slane %v419, %v666
        %v668 = vlaneseq
        %v669 = vshrl.u32 %v668, 7
        %v670 = vsub.s32 1, %v669
        %v671 = vrot.slane %v419, %v670
        %v672 = vlaneseq
        %v673 = vshrl.u32 %v672, 7
        %v674 = vsub.s32 2, %v673
        %v675 = vrot.slane %v419, %v674
        %676 = vrot.lane.b32.xlu0 %v667, 126
        %v677 = vpop.permute.xlu0 %676
        %678 = vrot.lane.b32.xlu0 %v671, 126
        %v679 = vpop.permute.xlu0 %678
        %680 = vrot.lane.b32.xlu0 %v675, 126
        %v681 = vpop.permute.xlu0 %680
        %v682 = vsel %vm618, %v677, %v679
        %v683 = vsel %vm618, %v679, %v681
        %v688 = vlaneseq
        %v689 = vshrl.u32 %v688, 7
        %v690 = vsub.s32 0, %v689
        %v691 = vrot.slane %v426, %v690
        %v692 = vlaneseq
        %v693 = vshrl.u32 %v692, 7
        %v694 = vsub.s32 1, %v693
        %v695 = vrot.slane %v426, %v694
        %v696 = vlaneseq
        %v697 = vshrl.u32 %v696, 7
        %v698 = vsub.s32 2, %v697
        %v699 = vrot.slane %v426, %v698
        %700 = vrot.lane.b32.xlu0 %v691, 125
        %v701 = vpop.permute.xlu0 %700
        %702 = vrot.lane.b32.xlu0 %v695, 125
        %v703 = vpop.permute.xlu0 %702
        %704 = vrot.lane.b32.xlu0 %v699, 125
        %v705 = vpop.permute.xlu0 %704
        %vm706 = vcmask 1022976
        %v707 = vsel %vm706, %v701, %v703
        %v708 = vsel %vm706, %v703, %v705
        %v713 = vlaneseq
        %v714 = vshrl.u32 %v713, 7
        %v715 = vsub.s32 0, %v714
        %v716 = vrot.slane %v433, %v715
        %v717 = vlaneseq
        %v718 = vshrl.u32 %v717, 7
        %v719 = vsub.s32 1, %v718
        %v720 = vrot.slane %v433, %v719
        %v721 = vlaneseq
        %v722 = vshrl.u32 %v721, 7
        %v723 = vsub.s32 2, %v722
        %v724 = vrot.slane %v433, %v723
        %725 = vrot.lane.b32.xlu0 %v716, 124
        %v726 = vpop.permute.xlu0 %725
        %727 = vrot.lane.b32.xlu0 %v720, 124
        %v728 = vpop.permute.xlu0 %727
        %729 = vrot.lane.b32.xlu0 %v724, 124
        %v730 = vpop.permute.xlu0 %729
        %v731 = vsel %vm611, %v726, %v728
        %v732 = vsel %vm611, %v728, %v730
        %v737 = vlaneseq
        %v738 = vshrl.u32 %v737, 7
        %v739 = vsub.s32 0, %v738
        %v740 = vrot.slane %v440, %v739
        %v741 = vlaneseq
        %v742 = vshrl.u32 %v741, 7
        %v743 = vsub.s32 1, %v742
        %v744 = vrot.slane %v440, %v743
        %v745 = vlaneseq
        %v746 = vshrl.u32 %v745, 7
        %v747 = vsub.s32 2, %v746
        %v748 = vrot.slane %v440, %v747
        %749 = vrot.lane.b32.xlu0 %v740, 123
        %v750 = vpop.permute.xlu0 %749
        %751 = vrot.lane.b32.xlu0 %v744, 123
        %v752 = vpop.permute.xlu0 %751
        %753 = vrot.lane.b32.xlu0 %v748, 123
        %v754 = vpop.permute.xlu0 %753
        %vm755 = vcmask 1006592
        %v756 = vsel %vm755, %v750, %v752
        %v757 = vsel %vm755, %v752, %v754
        %v762 = vlaneseq
        %v763 = vshrl.u32 %v762, 7
        %v764 = vsub.s32 0, %v763
        %v765 = vrot.slane %v447, %v764
        %v766 = vlaneseq
        %v767 = vshrl.u32 %v766, 7
        %v768 = vsub.s32 1, %v767
        %v769 = vrot.slane %v447, %v768
        %v770 = vlaneseq
        %v771 = vshrl.u32 %v770, 7
        %v772 = vsub.s32 2, %v771
        %v773 = vrot.slane %v447, %v772
        %774 = vrot.lane.b32.xlu0 %v765, 122
        %v775 = vpop.permute.xlu0 %774
        %776 = vrot.lane.b32.xlu0 %v769, 122
        %v777 = vpop.permute.xlu0 %776
        %778 = vrot.lane.b32.xlu0 %v773, 122
        %v779 = vpop.permute.xlu0 %778
        %v780 = vsel %vm604, %v775, %v777
        %v781 = vsel %vm604, %v777, %v779
        %v786 = vlaneseq
        %v787 = vshrl.u32 %v786, 7
        %v788 = vsub.s32 0, %v787
        %v789 = vrot.slane %v454, %v788
        %v790 = vlaneseq
        %v791 = vshrl.u32 %v790, 7
        %v792 = vsub.s32 1, %v791
        %v793 = vrot.slane %v454, %v792
        %v794 = vlaneseq
        %v795 = vshrl.u32 %v794, 7
        %v796 = vsub.s32 2, %v795
        %v797 = vrot.slane %v454, %v796
        %798 = vrot.lane.b32.xlu0 %v789, 121
        %v799 = vpop.permute.xlu0 %798
        %800 = vrot.lane.b32.xlu0 %v793, 121
        %v801 = vpop.permute.xlu0 %800
        %802 = vrot.lane.b32.xlu0 %v797, 121
        %v803 = vpop.permute.xlu0 %802
        %vm804 = vcmask 990208
        %v805 = vsel %vm804, %v799, %v801
        %v806 = vsel %vm804, %v801, %v803
        %v811 = vlaneseq
        %v812 = vshrl.u32 %v811, 7
        %v813 = vsub.s32 0, %v812
        %v814 = vrot.slane %v461, %v813
        %v815 = vlaneseq
        %v816 = vshrl.u32 %v815, 7
        %v817 = vsub.s32 1, %v816
        %v818 = vrot.slane %v461, %v817
        %v819 = vlaneseq
        %v820 = vshrl.u32 %v819, 7
        %v821 = vsub.s32 2, %v820
        %v822 = vrot.slane %v461, %v821
        %823 = vrot.lane.b32.xlu0 %v814, 120
        %v824 = vpop.permute.xlu0 %823
        %825 = vrot.lane.b32.xlu0 %v818, 120
        %v826 = vpop.permute.xlu0 %825
        %827 = vrot.lane.b32.xlu0 %v822, 120
        %v828 = vpop.permute.xlu0 %827
        %v829 = vsel %vm597, %v824, %v826
        %v830 = vsel %vm597, %v826, %v828
        %v835 = vlaneseq
        %v836 = vshrl.u32 %v835, 7
        %v837 = vsub.s32 0, %v836
        %v838 = vrot.slane %v468, %v837
        %v839 = vlaneseq
        %v840 = vshrl.u32 %v839, 7
        %v841 = vsub.s32 1, %v840
        %v842 = vrot.slane %v468, %v841
        %v843 = vlaneseq
        %v844 = vshrl.u32 %v843, 7
        %v845 = vsub.s32 2, %v844
        %v846 = vrot.slane %v468, %v845
        %847 = vrot.lane.b32.xlu0 %v838, 119
        %v848 = vpop.permute.xlu0 %847
        %849 = vrot.lane.b32.xlu0 %v842, 119
        %v850 = vpop.permute.xlu0 %849
        %851 = vrot.lane.b32.xlu0 %v846, 119
        %v852 = vpop.permute.xlu0 %851
        %vm853 = vcmask 973824
        %v854 = vsel %vm853, %v848, %v850
        %v855 = vsel %vm853, %v850, %v852
        %v860 = vlaneseq
        %v861 = vshrl.u32 %v860, 7
        %v862 = vsub.s32 0, %v861
        %v863 = vrot.slane %v475, %v862
        %v864 = vlaneseq
        %v865 = vshrl.u32 %v864, 7
        %v866 = vsub.s32 1, %v865
        %v867 = vrot.slane %v475, %v866
        %v868 = vlaneseq
        %v869 = vshrl.u32 %v868, 7
        %v870 = vsub.s32 2, %v869
        %v871 = vrot.slane %v475, %v870
        %872 = vrot.lane.b32.xlu0 %v863, 118
        %v873 = vpop.permute.xlu0 %872
        %874 = vrot.lane.b32.xlu0 %v867, 118
        %v875 = vpop.permute.xlu0 %874
        %876 = vrot.lane.b32.xlu0 %v871, 118
        %v877 = vpop.permute.xlu0 %876
        %v878 = vsel %vm590, %v873, %v875
        %v879 = vsel %vm590, %v875, %v877
        %v884 = vlaneseq
        %v885 = vshrl.u32 %v884, 7
        %v886 = vsub.s32 0, %v885
        %v887 = vrot.slane %v482, %v886
        %v888 = vlaneseq
        %v889 = vshrl.u32 %v888, 7
        %v890 = vsub.s32 1, %v889
        %v891 = vrot.slane %v482, %v890
        %v892 = vlaneseq
        %v893 = vshrl.u32 %v892, 7
        %v894 = vsub.s32 2, %v893
        %v895 = vrot.slane %v482, %v894
        %896 = vrot.lane.b32.xlu0 %v887, 117
        %v897 = vpop.permute.xlu0 %896
        %898 = vrot.lane.b32.xlu0 %v891, 117
        %v899 = vpop.permute.xlu0 %898
        %900 = vrot.lane.b32.xlu0 %v895, 117
        %v901 = vpop.permute.xlu0 %900
        %vm902 = vcmask 957440
        %v903 = vsel %vm902, %v897, %v899
        %v904 = vsel %vm902, %v899, %v901
        %v909 = vlaneseq
        %v910 = vshrl.u32 %v909, 7
        %v911 = vsub.s32 0, %v910
        %v912 = vrot.slane %v489, %v911
        %v913 = vlaneseq
        %v914 = vshrl.u32 %v913, 7
        %v915 = vsub.s32 1, %v914
        %v916 = vrot.slane %v489, %v915
        %v917 = vlaneseq
        %v918 = vshrl.u32 %v917, 7
        %v919 = vsub.s32 2, %v918
        %v920 = vrot.slane %v489, %v919
        %921 = vrot.lane.b32.xlu0 %v912, 116
        %v922 = vpop.permute.xlu0 %921
        %923 = vrot.lane.b32.xlu0 %v916, 116
        %v924 = vpop.permute.xlu0 %923
        %925 = vrot.lane.b32.xlu0 %v920, 116
        %v926 = vpop.permute.xlu0 %925
        %v927 = vsel %vm583, %v922, %v924
        %v928 = vsel %vm583, %v924, %v926
        %v933 = vlaneseq
        %v934 = vshrl.u32 %v933, 7
        %v935 = vsub.s32 0, %v934
        %v936 = vrot.slane %v496, %v935
        %v937 = vlaneseq
        %v938 = vshrl.u32 %v937, 7
        %v939 = vsub.s32 1, %v938
        %v940 = vrot.slane %v496, %v939
        %v941 = vlaneseq
        %v942 = vshrl.u32 %v941, 7
        %v943 = vsub.s32 2, %v942
        %v944 = vrot.slane %v496, %v943
        %945 = vrot.lane.b32.xlu0 %v936, 115
        %v946 = vpop.permute.xlu0 %945
        %947 = vrot.lane.b32.xlu0 %v940, 115
        %v948 = vpop.permute.xlu0 %947
        %949 = vrot.lane.b32.xlu0 %v944, 115
        %v950 = vpop.permute.xlu0 %949
        %vm951 = vcmask 941056
        %v952 = vsel %vm951, %v946, %v948
        %v953 = vsel %vm951, %v948, %v950
        %v958 = vlaneseq
        %v959 = vshrl.u32 %v958, 7
        %v960 = vsub.s32 0, %v959
        %v961 = vrot.slane %v503, %v960
        %v962 = vlaneseq
        %v963 = vshrl.u32 %v962, 7
        %v964 = vsub.s32 1, %v963
        %v965 = vrot.slane %v503, %v964
        %v966 = vlaneseq
        %v967 = vshrl.u32 %v966, 7
        %v968 = vsub.s32 2, %v967
        %v969 = vrot.slane %v503, %v968
        %970 = vrot.lane.b32.xlu0 %v961, 114
        %v971 = vpop.permute.xlu0 %970
        %972 = vrot.lane.b32.xlu0 %v965, 114
        %v973 = vpop.permute.xlu0 %972
        %974 = vrot.lane.b32.xlu0 %v969, 114
        %v975 = vpop.permute.xlu0 %974
        %v976 = vsel %vm576, %v971, %v973
        %v977 = vsel %vm576, %v973, %v975
        %v982 = vlaneseq
        %v983 = vshrl.u32 %v982, 7
        %v984 = vsub.s32 0, %v983
        %v985 = vrot.slane %v510, %v984
        %v986 = vlaneseq
        %v987 = vshrl.u32 %v986, 7
        %v988 = vsub.s32 1, %v987
        %v989 = vrot.slane %v510, %v988
        %v990 = vlaneseq
        %v991 = vshrl.u32 %v990, 7
        %v992 = vsub.s32 2, %v991
        %v993 = vrot.slane %v510, %v992
        %994 = vrot.lane.b32.xlu0 %v985, 113
        %v995 = vpop.permute.xlu0 %994
        %996 = vrot.lane.b32.xlu0 %v989, 113
        %v997 = vpop.permute.xlu0 %996
        %998 = vrot.lane.b32.xlu0 %v993, 113
        %v999 = vpop.permute.xlu0 %998
        %vm1000 = vcmask 924672
        %v1001 = vsel %vm1000, %v995, %v997
        %v1002 = vsel %vm1000, %v997, %v999
        %v1006 = vsel %vm318, %v626, %v658
        %v1007 = vsel %vm318, %v630, %v659
        %v1008 = vsel %vm318, %v634, %v656
        %vm1009 = vcmask 1041408
        %v1010 = vsel %vm1009, %v1006, %v682
        %v1011 = vsel %vm1009, %v1007, %v683
        %v1012 = vsel %vm1009, %v1008, %v681
        %vm1013 = vcmask 1042432
        %v1014 = vsel %vm1013, %v1010, %v707
        %v1015 = vsel %vm1013, %v1011, %v708
        %v1016 = vsel %vm1013, %v1012, %v705
        %vm1017 = vcmask 1043456
        %v1018 = vsel %vm1017, %v1014, %v731
        %v1019 = vsel %vm1017, %v1015, %v732
        %v1020 = vsel %vm1017, %v1016, %v730
        %vm1021 = vcmask 1044480
        %v1022 = vsel %vm1021, %v1018, %v756
        %v1023 = vsel %vm1021, %v1019, %v757
        %v1024 = vsel %vm1021, %v1020, %v754
        %vm1025 = vcmask 1045504
        %v1026 = vsel %vm1025, %v1022, %v780
        %v1027 = vsel %vm1025, %v1023, %v781
        %v1028 = vsel %vm1025, %v1024, %v779
        %vm1029 = vcmask 1046528
        %v1030 = vsel %vm1029, %v1026, %v805
        %v1031 = vsel %vm1029, %v1027, %v806
        %v1032 = vsel %vm1029, %v1028, %v803
        %v1033 = vsel %vm318, %v829, %v854
        %v1034 = vsel %vm318, %v830, %v855
        %v1035 = vsel %vm318, %v828, %v852
        %v1036 = vsel %vm1009, %v1033, %v878
        %v1037 = vsel %vm1009, %v1034, %v879
        %v1038 = vsel %vm1009, %v1035, %v877
        %v1039 = vsel %vm1013, %v1036, %v903
        %v1040 = vsel %vm1013, %v1037, %v904
        %v1041 = vsel %vm1013, %v1038, %v901
        %v1042 = vsel %vm1017, %v1039, %v927
        %v1043 = vsel %vm1017, %v1040, %v928
        %v1044 = vsel %vm1017, %v1041, %v926
        %v1045 = vsel %vm1021, %v1042, %v952
        %v1046 = vsel %vm1021, %v1043, %v953
        %v1047 = vsel %vm1021, %v1044, %v950
        %v1048 = vsel %vm1025, %v1045, %v976
        %v1049 = vsel %vm1025, %v1046, %v977
        %v1050 = vsel %vm1025, %v1047, %v975
        %v1051 = vsel %vm1029, %v1048, %v1001
        %v1052 = vsel %vm1029, %v1049, %v1002
        %v1053 = vsel %vm1029, %v1050, %v999
        %v1055 = vlaneseq
        %v1056 = vshrl.u32 %v1055, 7
        %v1057 = vsub.s32 0, %v1056
        %v1058 = vrot.slane %v517, %v1057
        %v1059 = vlaneseq
        %v1060 = vshrl.u32 %v1059, 7
        %v1061 = vsub.s32 1, %v1060
        %v1062 = vrot.slane %v517, %v1061
        %v1063 = vlaneseq
        %v1064 = vshrl.u32 %v1063, 7
        %v1065 = vsub.s32 2, %v1064
        %v1066 = vrot.slane %v517, %v1065
        %v1071 = vlaneseq
        %v1072 = vshrl.u32 %v1071, 7
        %v1073 = vsub.s32 0, %v1072
        %v1074 = vrot.slane %v524, %v1073
        %v1075 = vlaneseq
        %v1076 = vshrl.u32 %v1075, 7
        %v1077 = vsub.s32 1, %v1076
        %v1078 = vrot.slane %v524, %v1077
        %v1079 = vlaneseq
        %v1080 = vshrl.u32 %v1079, 7
        %v1081 = vsub.s32 2, %v1080
        %v1082 = vrot.slane %v524, %v1081
        %1083 = vrot.lane.b32.xlu0 %v1074, 127
        %v1084 = vpop.permute.xlu0 %1083
        %1085 = vrot.lane.b32.xlu0 %v1078, 127
        %v1086 = vpop.permute.xlu0 %1085
        %1087 = vrot.lane.b32.xlu0 %v1082, 127
        %v1088 = vpop.permute.xlu0 %1087
        %v1089 = vsel %vm657, %v1084, %v1086
        %v1090 = vsel %vm657, %v1086, %v1088
        %v1095 = vlaneseq
        %v1096 = vshrl.u32 %v1095, 7
        %v1097 = vsub.s32 0, %v1096
        %v1098 = vrot.slane %v531, %v1097
        %v1099 = vlaneseq
        %v1100 = vshrl.u32 %v1099, 7
        %v1101 = vsub.s32 1, %v1100
        %v1102 = vrot.slane %v531, %v1101
        %v1103 = vlaneseq
        %v1104 = vshrl.u32 %v1103, 7
        %v1105 = vsub.s32 2, %v1104
        %v1106 = vrot.slane %v531, %v1105
        %1107 = vrot.lane.b32.xlu0 %v1098, 126
        %v1108 = vpop.permute.xlu0 %1107
        %1109 = vrot.lane.b32.xlu0 %v1102, 126
        %v1110 = vpop.permute.xlu0 %1109
        %1111 = vrot.lane.b32.xlu0 %v1106, 126
        %v1112 = vpop.permute.xlu0 %1111
        %v1113 = vsel %vm618, %v1108, %v1110
        %v1114 = vsel %vm618, %v1110, %v1112
        %v1119 = vlaneseq
        %v1120 = vshrl.u32 %v1119, 7
        %v1121 = vsub.s32 0, %v1120
        %v1122 = vrot.slane %v538, %v1121
        %v1123 = vlaneseq
        %v1124 = vshrl.u32 %v1123, 7
        %v1125 = vsub.s32 1, %v1124
        %v1126 = vrot.slane %v538, %v1125
        %v1127 = vlaneseq
        %v1128 = vshrl.u32 %v1127, 7
        %v1129 = vsub.s32 2, %v1128
        %v1130 = vrot.slane %v538, %v1129
        %1131 = vrot.lane.b32.xlu0 %v1122, 125
        %v1132 = vpop.permute.xlu0 %1131
        %1133 = vrot.lane.b32.xlu0 %v1126, 125
        %v1134 = vpop.permute.xlu0 %1133
        %1135 = vrot.lane.b32.xlu0 %v1130, 125
        %v1136 = vpop.permute.xlu0 %1135
        %v1137 = vsel %vm706, %v1132, %v1134
        %v1138 = vsel %vm706, %v1134, %v1136
        %v1143 = vlaneseq
        %v1144 = vshrl.u32 %v1143, 7
        %v1145 = vsub.s32 0, %v1144
        %v1146 = vrot.slane %v545, %v1145
        %v1147 = vlaneseq
        %v1148 = vshrl.u32 %v1147, 7
        %v1149 = vsub.s32 1, %v1148
        %v1150 = vrot.slane %v545, %v1149
        %v1151 = vlaneseq
        %v1152 = vshrl.u32 %v1151, 7
        %v1153 = vsub.s32 2, %v1152
        %v1154 = vrot.slane %v545, %v1153
        %1155 = vrot.lane.b32.xlu0 %v1146, 124
        %v1156 = vpop.permute.xlu0 %1155
        %1157 = vrot.lane.b32.xlu0 %v1150, 124
        %v1158 = vpop.permute.xlu0 %1157
        %1159 = vrot.lane.b32.xlu0 %v1154, 124
        %v1160 = vpop.permute.xlu0 %1159
        %v1161 = vsel %vm611, %v1156, %v1158
        %v1162 = vsel %vm611, %v1158, %v1160
        %v1167 = vlaneseq
        %v1168 = vshrl.u32 %v1167, 7
        %v1169 = vsub.s32 0, %v1168
        %v1170 = vrot.slane %v552, %v1169
        %v1171 = vlaneseq
        %v1172 = vshrl.u32 %v1171, 7
        %v1173 = vsub.s32 1, %v1172
        %v1174 = vrot.slane %v552, %v1173
        %v1175 = vlaneseq
        %v1176 = vshrl.u32 %v1175, 7
        %v1177 = vsub.s32 2, %v1176
        %v1178 = vrot.slane %v552, %v1177
        %1179 = vrot.lane.b32.xlu0 %v1170, 123
        %v1180 = vpop.permute.xlu0 %1179
        %1181 = vrot.lane.b32.xlu0 %v1174, 123
        %v1182 = vpop.permute.xlu0 %1181
        %1183 = vrot.lane.b32.xlu0 %v1178, 123
        %v1184 = vpop.permute.xlu0 %1183
        %v1185 = vsel %vm755, %v1180, %v1182
        %v1186 = vsel %vm755, %v1182, %v1184
        %v1191 = vlaneseq
        %v1192 = vshrl.u32 %v1191, 7
        %v1193 = vsub.s32 0, %v1192
        %v1194 = vrot.slane %v559, %v1193
        %v1195 = vlaneseq
        %v1196 = vshrl.u32 %v1195, 7
        %v1197 = vsub.s32 1, %v1196
        %v1198 = vrot.slane %v559, %v1197
        %v1199 = vlaneseq
        %v1200 = vshrl.u32 %v1199, 7
        %v1201 = vsub.s32 2, %v1200
        %v1202 = vrot.slane %v559, %v1201
        %1203 = vrot.lane.b32.xlu0 %v1194, 122
        %v1204 = vpop.permute.xlu0 %1203
        %1205 = vrot.lane.b32.xlu0 %v1198, 122
        %v1206 = vpop.permute.xlu0 %1205
        %1207 = vrot.lane.b32.xlu0 %v1202, 122
        %v1208 = vpop.permute.xlu0 %1207
        %v1209 = vsel %vm604, %v1204, %v1206
        %v1210 = vsel %vm604, %v1206, %v1208
        %v1215 = vlaneseq
        %v1216 = vshrl.u32 %v1215, 7
        %v1217 = vsub.s32 0, %v1216
        %v1218 = vrot.slane %v566, %v1217
        %v1219 = vlaneseq
        %v1220 = vshrl.u32 %v1219, 7
        %v1221 = vsub.s32 1, %v1220
        %v1222 = vrot.slane %v566, %v1221
        %v1223 = vlaneseq
        %v1224 = vshrl.u32 %v1223, 7
        %v1225 = vsub.s32 2, %v1224
        %v1226 = vrot.slane %v566, %v1225
        %1227 = vrot.lane.b32.xlu0 %v1218, 121
        %v1228 = vpop.permute.xlu0 %1227
        %1229 = vrot.lane.b32.xlu0 %v1222, 121
        %v1230 = vpop.permute.xlu0 %1229
        %1231 = vrot.lane.b32.xlu0 %v1226, 121
        %v1232 = vpop.permute.xlu0 %1231
        %v1233 = vsel %vm804, %v1228, %v1230
        %v1234 = vsel %vm804, %v1230, %v1232
        %v1239 = vlaneseq
        %v1240 = vshrl.u32 %v1239, 7
        %v1241 = vsub.s32 0, %v1240
        %v1242 = vrot.slane %v572, %v1241
        %v1243 = vlaneseq
        %v1244 = vshrl.u32 %v1243, 7
        %v1245 = vsub.s32 1, %v1244
        %v1246 = vrot.slane %v572, %v1245
        %v1247 = vlaneseq
        %v1248 = vshrl.u32 %v1247, 7
        %v1249 = vsub.s32 2, %v1248
        %v1250 = vrot.slane %v572, %v1249
        %1251 = vrot.lane.b32.xlu0 %v1242, 120
        %v1252 = vpop.permute.xlu0 %1251
        %1253 = vrot.lane.b32.xlu0 %v1246, 120
        %v1254 = vpop.permute.xlu0 %1253
        %1255 = vrot.lane.b32.xlu0 %v1250, 120
        %v1256 = vpop.permute.xlu0 %1255
        %v1257 = vsel %vm597, %v1252, %v1254
        %v1258 = vsel %vm597, %v1254, %v1256
        %v1263 = vlaneseq
        %v1264 = vshrl.u32 %v1263, 7
        %v1265 = vsub.s32 0, %v1264
        %v1266 = vrot.slane %v579, %v1265
        %v1267 = vlaneseq
        %v1268 = vshrl.u32 %v1267, 7
        %v1269 = vsub.s32 1, %v1268
        %v1270 = vrot.slane %v579, %v1269
        %v1271 = vlaneseq
        %v1272 = vshrl.u32 %v1271, 7
        %v1273 = vsub.s32 2, %v1272
        %v1274 = vrot.slane %v579, %v1273
        %1275 = vrot.lane.b32.xlu0 %v1266, 119
        %v1276 = vpop.permute.xlu0 %1275
        %1277 = vrot.lane.b32.xlu0 %v1270, 119
        %v1278 = vpop.permute.xlu0 %1277
        %1279 = vrot.lane.b32.xlu0 %v1274, 119
        %v1280 = vpop.permute.xlu0 %1279
        %v1281 = vsel %vm853, %v1276, %v1278
        %v1282 = vsel %vm853, %v1278, %v1280
        %v1287 = vlaneseq
        %v1288 = vshrl.u32 %v1287, 7
        %v1289 = vsub.s32 0, %v1288
        %v1290 = vrot.slane %v586, %v1289
        %v1291 = vlaneseq
        %v1292 = vshrl.u32 %v1291, 7
        %v1293 = vsub.s32 1, %v1292
        %v1294 = vrot.slane %v586, %v1293
        %v1295 = vlaneseq
        %v1296 = vshrl.u32 %v1295, 7
        %v1297 = vsub.s32 2, %v1296
        %v1298 = vrot.slane %v586, %v1297
        %1299 = vrot.lane.b32.xlu0 %v1290, 118
        %v1300 = vpop.permute.xlu0 %1299
        %1301 = vrot.lane.b32.xlu0 %v1294, 118
        %v1302 = vpop.permute.xlu0 %1301
        %1303 = vrot.lane.b32.xlu0 %v1298, 118
        %v1304 = vpop.permute.xlu0 %1303
        %v1305 = vsel %vm590, %v1300, %v1302
        %v1306 = vsel %vm590, %v1302, %v1304
        %v1311 = vlaneseq
        %v1312 = vshrl.u32 %v1311, 7
        %v1313 = vsub.s32 0, %v1312
        %v1314 = vrot.slane %v593, %v1313
        %v1315 = vlaneseq
        %v1316 = vshrl.u32 %v1315, 7
        %v1317 = vsub.s32 1, %v1316
        %v1318 = vrot.slane %v593, %v1317
        %v1319 = vlaneseq
        %v1320 = vshrl.u32 %v1319, 7
        %v1321 = vsub.s32 2, %v1320
        %v1322 = vrot.slane %v593, %v1321
        %1323 = vrot.lane.b32.xlu0 %v1314, 117
        %v1324 = vpop.permute.xlu0 %1323
        %1325 = vrot.lane.b32.xlu0 %v1318, 117
        %v1326 = vpop.permute.xlu0 %1325
        %1327 = vrot.lane.b32.xlu0 %v1322, 117
        %v1328 = vpop.permute.xlu0 %1327
        %v1329 = vsel %vm902, %v1324, %v1326
        %v1330 = vsel %vm902, %v1326, %v1328
        %v1335 = vlaneseq
        %v1336 = vshrl.u32 %v1335, 7
        %v1337 = vsub.s32 0, %v1336
        %v1338 = vrot.slane %v600, %v1337
        %v1339 = vlaneseq
        %v1340 = vshrl.u32 %v1339, 7
        %v1341 = vsub.s32 1, %v1340
        %v1342 = vrot.slane %v600, %v1341
        %v1343 = vlaneseq
        %v1344 = vshrl.u32 %v1343, 7
        %v1345 = vsub.s32 2, %v1344
        %v1346 = vrot.slane %v600, %v1345
        %1347 = vrot.lane.b32.xlu0 %v1338, 116
        %v1348 = vpop.permute.xlu0 %1347
        %1349 = vrot.lane.b32.xlu0 %v1342, 116
        %v1350 = vpop.permute.xlu0 %1349
        %1351 = vrot.lane.b32.xlu0 %v1346, 116
        %v1352 = vpop.permute.xlu0 %1351
        %v1353 = vsel %vm583, %v1348, %v1350
        %v1354 = vsel %vm583, %v1350, %v1352
        %v1359 = vlaneseq
        %v1360 = vshrl.u32 %v1359, 7
        %v1361 = vsub.s32 0, %v1360
        %v1362 = vrot.slane %v607, %v1361
        %v1363 = vlaneseq
        %v1364 = vshrl.u32 %v1363, 7
        %v1365 = vsub.s32 1, %v1364
        %v1366 = vrot.slane %v607, %v1365
        %v1367 = vlaneseq
        %v1368 = vshrl.u32 %v1367, 7
        %v1369 = vsub.s32 2, %v1368
        %v1370 = vrot.slane %v607, %v1369
        %1371 = vrot.lane.b32.xlu0 %v1362, 115
        %v1372 = vpop.permute.xlu0 %1371
        %1373 = vrot.lane.b32.xlu0 %v1366, 115
        %v1374 = vpop.permute.xlu0 %1373
        %1375 = vrot.lane.b32.xlu0 %v1370, 115
        %v1376 = vpop.permute.xlu0 %1375
        %v1377 = vsel %vm951, %v1372, %v1374
        %v1378 = vsel %vm951, %v1374, %v1376
        %v1383 = vlaneseq
        %v1384 = vshrl.u32 %v1383, 7
        %v1385 = vsub.s32 0, %v1384
        %v1386 = vrot.slane %v614, %v1385
        %v1387 = vlaneseq
        %v1388 = vshrl.u32 %v1387, 7
        %v1389 = vsub.s32 1, %v1388
        %v1390 = vrot.slane %v614, %v1389
        %v1391 = vlaneseq
        %v1392 = vshrl.u32 %v1391, 7
        %v1393 = vsub.s32 2, %v1392
        %v1394 = vrot.slane %v614, %v1393
        %1395 = vrot.lane.b32.xlu0 %v1386, 114
        %v1396 = vpop.permute.xlu0 %1395
        %1397 = vrot.lane.b32.xlu0 %v1390, 114
        %v1398 = vpop.permute.xlu0 %1397
        %1399 = vrot.lane.b32.xlu0 %v1394, 114
        %v1400 = vpop.permute.xlu0 %1399
        %v1401 = vsel %vm576, %v1396, %v1398
        %v1402 = vsel %vm576, %v1398, %v1400
        %v1407 = vlaneseq
        %v1408 = vshrl.u32 %v1407, 7
        %v1409 = vsub.s32 0, %v1408
        %v1410 = vrot.slane %v621, %v1409
        %v1411 = vlaneseq
        %v1412 = vshrl.u32 %v1411, 7
        %v1413 = vsub.s32 1, %v1412
        %v1414 = vrot.slane %v621, %v1413
        %v1415 = vlaneseq
        %v1416 = vshrl.u32 %v1415, 7
        %v1417 = vsub.s32 2, %v1416
        %v1418 = vrot.slane %v621, %v1417
        %1419 = vrot.lane.b32.xlu0 %v1410, 113
        %v1420 = vpop.permute.xlu0 %1419
        %1421 = vrot.lane.b32.xlu0 %v1414, 113
        %v1422 = vpop.permute.xlu0 %1421
        %1423 = vrot.lane.b32.xlu0 %v1418, 113
        %v1424 = vpop.permute.xlu0 %1423
        %v1425 = vsel %vm1000, %v1420, %v1422
        %v1426 = vsel %vm1000, %v1422, %v1424
        %v1430 = vsel %vm318, %v1058, %v1089
        %v1431 = vsel %vm318, %v1062, %v1090
        %v1432 = vsel %vm318, %v1066, %v1088
        %v1433 = vsel %vm1009, %v1430, %v1113
        %v1434 = vsel %vm1009, %v1431, %v1114
        %v1435 = vsel %vm1009, %v1432, %v1112
        %v1436 = vsel %vm1013, %v1433, %v1137
        %v1437 = vsel %vm1013, %v1434, %v1138
        %v1438 = vsel %vm1013, %v1435, %v1136
        %v1439 = vsel %vm1017, %v1436, %v1161
        %v1440 = vsel %vm1017, %v1437, %v1162
        %v1441 = vsel %vm1017, %v1438, %v1160
        %v1442 = vsel %vm1021, %v1439, %v1185
        %v1443 = vsel %vm1021, %v1440, %v1186
        %v1444 = vsel %vm1021, %v1441, %v1184
        %v1445 = vsel %vm1025, %v1442, %v1209
        %v1446 = vsel %vm1025, %v1443, %v1210
        %v1447 = vsel %vm1025, %v1444, %v1208
        %v1448 = vsel %vm1029, %v1445, %v1233
        %v1449 = vsel %vm1029, %v1446, %v1234
        %v1450 = vsel %vm1029, %v1447, %v1232
        %v1451 = vsel %vm318, %v1257, %v1281
        %v1452 = vsel %vm318, %v1258, %v1282
        %v1453 = vsel %vm318, %v1256, %v1280
        %v1454 = vsel %vm1009, %v1451, %v1305
        %v1455 = vsel %vm1009, %v1452, %v1306
        %v1456 = vsel %vm1009, %v1453, %v1304
        %v1457 = vsel %vm1013, %v1454, %v1329
        %v1458 = vsel %vm1013, %v1455, %v1330
        %v1459 = vsel %vm1013, %v1456, %v1328
        %v1460 = vsel %vm1017, %v1457, %v1353
        %v1461 = vsel %vm1017, %v1458, %v1354
        %v1462 = vsel %vm1017, %v1459, %v1352
        %v1463 = vsel %vm1021, %v1460, %v1377
        %v1464 = vsel %vm1021, %v1461, %v1378
        %v1465 = vsel %vm1021, %v1462, %v1376
        %v1466 = vsel %vm1025, %v1463, %v1401
        %v1467 = vsel %vm1025, %v1464, %v1402
        %v1468 = vsel %vm1025, %v1465, %v1400
        %v1469 = vsel %vm1029, %v1466, %v1425
        %v1470 = vsel %vm1029, %v1467, %v1426
        %v1471 = vsel %vm1029, %v1468, %v1424
        %1478 = vrot.lane.b32.xlu0 %v1448, 112
        %v1479 = vpop.permute.xlu0 %1478
        %1480 = vrot.lane.b32.xlu0 %v1449, 112
        %v1481 = vpop.permute.xlu0 %1480
        %1482 = vrot.lane.b32.xlu0 %v1450, 112
        %v1483 = vpop.permute.xlu0 %1482
        %1484 = vrot.lane.b32.xlu0 %v1469, 112
        %v1485 = vpop.permute.xlu0 %1484
        %1486 = vrot.lane.b32.xlu0 %v1470, 112
        %v1487 = vpop.permute.xlu0 %1486
        %1488 = vrot.lane.b32.xlu0 %v1471, 112
        %v1489 = vpop.permute.xlu0 %1488
        %v1490 = vsel %vm394, %v1479, %v1481
        %v1491 = vsel %vm394, %v1481, %v1483
        %v1492 = vsel %vm394, %v1485, %v1487
        %v1493 = vsel %vm394, %v1487, %v1489
        %v1500 = vlaneseq
        %v1501 = vshrl.u32 %v1500, 7
        %v1502 = vsub.s32 0, %v1501
        %v1503 = vrot.slane %v397, %v1502
        %v1504 = vlaneseq
        %v1505 = vshrl.u32 %v1504, 7
        %v1506 = vsub.s32 1, %v1505
        %v1507 = vrot.slane %v397, %v1506
        %v1508 = vlaneseq
        %v1509 = vshrl.u32 %v1508, 7
        %v1510 = vsub.s32 2, %v1509
        %v1511 = vrot.slane %v397, %v1510
        %1512 = vrot.lane.b32.xlu0 %v1503, 96
        %v1513 = vpop.permute.xlu0 %1512
        %1514 = vrot.lane.b32.xlu0 %v1507, 96
        %v1515 = vpop.permute.xlu0 %1514
        %1516 = vrot.lane.b32.xlu0 %v1511, 96
        %v1517 = vpop.permute.xlu0 %1516
        %v1518 = vsel %vm514, %v1513, %v1515
        %v1519 = vsel %vm514, %v1515, %v1517
        %vm1520 = vcmask 269312
        %v1522 = vsel %vm1520, %v273, 0
        %v1524 = vsel %vm318, %v1518, 0
        %v1526 = vsel %vm318, %v1519, 0
        %v1528 = vsel %vm318, %v1517, 0
        %1530 = vmatprep.subr.mxu0 0.0
        %1531 = vmatpush1.msra.mxu0 0.0
        %1532 = vmatprep.subr.mxu0 0.0
        %1533 = vmatpush1.msra.mxu0 0.0
        %1534 = vmatprep.subr.mxu0 0.0
        %1535 = vmatpush1.msra.mxu0 0.0
        %1536 = vmatprep.subr.mxu0 0.0
        %1537 = vmatpush1.msra.mxu0 0.0
        %1538 = vmatprep.subr.mxu0 0.0
        %1539 = vmatpush1.msra.mxu0 0.0
        %1540 = vmatprep.subr.mxu0 0.0
        %1541 = vmatpush1.msra.mxu0 0.0
        %1542 = vmatprep.subr.mxu0 0.0
        %1543 = vmatpush1.msra.mxu0 0.0
        %1544 = vmatprep.subr.mxu0 0.0
        %1545 = vmatpush1.msra.mxu0 0.0
        %1546 = vmatprep.subr.mxu0 0.0
        %1547 = vmatpush1.msra.mxu0 0.0
        %1548 = vmatprep.subr.mxu0 0.0
        %1549 = vmatpush1.msra.mxu0 0.0
        %1550 = vmatprep.subr.mxu0 0.0
        %1551 = vmatpush1.msra.mxu0 0.0
        %1552 = vmatprep.subr.mxu0 %v1526
        %1553 = vmatpush1.msra.mxu0 %v1524
        %1554 = vmatprep.subr.mxu0 %v1493
        %1555 = vmatpush1.msra.mxu0 %v1492
        %1556 = vmatprep.subr.mxu0 %v1491
        %1557 = vmatpush1.msra.mxu0 %v1490
        %1558 = vmatprep.subr.mxu0 %v1052
        %1559 = vmatpush1.msra.mxu0 %v1051
        %1560 = vmatprep.subr.mxu0 %v1031
        %1561 = vmatpush1.msra.mxu0 %v1030
        %1562 = vmatprep.subr.mxu0 0.0
        %1563 = vmatpush2.msra.mxu0 0.0
        %1564 = vmatprep.subr.mxu0 0.0
        %1565 = vmatpush2.msra.mxu0 0.0
        %1566 = vmatprep.subr.mxu0 0.0
        %1567 = vmatpush2.msra.mxu0 0.0
        %1568 = vmatprep.subr.mxu0 0.0
        %1569 = vmatpush2.msra.mxu0 0.0
        %1570 = vmatprep.subr.mxu0 0.0
        %1571 = vmatpush2.msra.mxu0 0.0
        %1572 = vmatprep.subr.mxu0 0.0
        %1573 = vmatpush2.msra.mxu0 0.0
        %1574 = vmatprep.subr.mxu0 0.0
        %1575 = vmatpush2.msra.mxu0 0.0
        %1576 = vmatprep.subr.mxu0 0.0
        %1577 = vmatpush2.msra.mxu0 0.0
        %1578 = vmatprep.subr.mxu0 0.0
        %1579 = vmatpush2.msra.mxu0 0.0
        %1580 = vmatprep.subr.mxu0 0.0
        %1581 = vmatpush2.msra.mxu0 0.0
        %1582 = vmatprep.subr.mxu0 0.0
        %1583 = vmatpush2.msra.mxu0 0.0
        %1584 = vmatprep.subr.mxu0 0.0
        %1585 = vmatpush2.msra.mxu0 0.0
        %1586 = vmatprep.subr.mxu0 0.0
        %1587 = vmatpush2.msra.mxu0 0.0
        %1588 = vmatprep.subr.mxu0 0.0
        %1589 = vmatpush2.msra.mxu0 0.0
        %1590 = vmatprep.subr.mxu0 0.0
        %1591 = vmatpush2.msra.mxu0 0.0
        %1592 = vmatprep.subr.mxu0 0.0
        %1593 = vmatpush2.msra.mxu0 0.0
        %1594 = vmatprep.mubr.f32.mxu0 0.0
        %1595 = vmatmul.mubr.f32.gmra.mxu0 %v1522
        %v1596 = vpop.f32.mrf.mxu0
        %v1597 = vadd.f32 0.0, %v1596
        %v1598 = vpop.f32.mrf.mxu0
        %v1599 = vadd.f32 0.0, %v1598
        %1600 = vdwg.mxu0
        %1601 = vmatprep.subr.mxu0 0.0
        %1602 = vmatpush1.msra.mxu0 0.0
        %1603 = vmatprep.subr.mxu0 0.0
        %1604 = vmatpush1.msra.mxu0 0.0
        %1605 = vmatprep.subr.mxu0 0.0
        %1606 = vmatpush1.msra.mxu0 0.0
        %1607 = vmatprep.subr.mxu0 0.0
        %1608 = vmatpush1.msra.mxu0 0.0
        %1609 = vmatprep.subr.mxu0 0.0
        %1610 = vmatpush1.msra.mxu0 0.0
        %1611 = vmatprep.subr.mxu0 0.0
        %1612 = vmatpush1.msra.mxu0 0.0
        %1613 = vmatprep.subr.mxu0 0.0
        %1614 = vmatpush1.msra.mxu0 0.0
        %1615 = vmatprep.subr.mxu0 0.0
        %1616 = vmatpush1.msra.mxu0 0.0
        %1617 = vmatprep.subr.mxu0 0.0
        %1618 = vmatpush1.msra.mxu0 0.0
        %1619 = vmatprep.subr.mxu0 0.0
        %1620 = vmatpush1.msra.mxu0 0.0
        %1621 = vmatprep.subr.mxu0 0.0
        %1622 = vmatpush1.msra.mxu0 0.0
        %1623 = vmatprep.subr.mxu0 0.0
        %1624 = vmatpush1.msra.mxu0 %v1528
        %1625 = vmatprep.subr.mxu0 0.0
        %1626 = vmatpush1.msra.mxu0 %v1489
        %1627 = vmatprep.subr.mxu0 0.0
        %1628 = vmatpush1.msra.mxu0 %v1483
        %1629 = vmatprep.subr.mxu0 0.0
        %1630 = vmatpush1.msra.mxu0 %v1053
        %1631 = vmatprep.subr.mxu0 0.0
        %1632 = vmatpush1.msra.mxu0 %v1032
        %1633 = vmatprep.subr.mxu0 0.0
        %1634 = vmatpush2.msra.mxu0 0.0
        %1635 = vmatprep.subr.mxu0 0.0
        %1636 = vmatpush2.msra.mxu0 0.0
        %1637 = vmatprep.subr.mxu0 0.0
        %1638 = vmatpush2.msra.mxu0 0.0
        %1639 = vmatprep.subr.mxu0 0.0
        %1640 = vmatpush2.msra.mxu0 0.0
        %1641 = vmatprep.subr.mxu0 0.0
        %1642 = vmatpush2.msra.mxu0 0.0
        %1643 = vmatprep.subr.mxu0 0.0
        %1644 = vmatpush2.msra.mxu0 0.0
        %1645 = vmatprep.subr.mxu0 0.0
        %1646 = vmatpush2.msra.mxu0 0.0
        %1647 = vmatprep.subr.mxu0 0.0
        %1648 = vmatpush2.msra.mxu0 0.0
        %1649 = vmatprep.subr.mxu0 0.0
        %1650 = vmatpush2.msra.mxu0 0.0
        %1651 = vmatprep.subr.mxu0 0.0
        %1652 = vmatpush2.msra.mxu0 0.0
        %1653 = vmatprep.subr.mxu0 0.0
        %1654 = vmatpush2.msra.mxu0 0.0
        %1655 = vmatprep.subr.mxu0 0.0
        %1656 = vmatpush2.msra.mxu0 0.0
        %1657 = vmatprep.subr.mxu0 0.0
        %1658 = vmatpush2.msra.mxu0 0.0
        %1659 = vmatprep.subr.mxu0 0.0
        %1660 = vmatpush2.msra.mxu0 0.0
        %1661 = vmatprep.subr.mxu0 0.0
        %1662 = vmatpush2.msra.mxu0 0.0
        %1663 = vmatprep.subr.mxu0 0.0
        %1664 = vmatpush2.msra.mxu0 0.0
        %1665 = vmatprep.mubr.f32.mxu0 0.0
        %1666 = vmatmul.mubr.f32.gmra.mxu0 %v1522
        %v1667 = vpop.f32.mrf.mxu0
        %v1668 = vadd.f32 0.0, %v1667
        %v1669 = vpop.f32.mrf.mxu0
        %1670 = vdwg.mxu0
        %v1671 = vand.u32 2147483647, %v1597
        %v1672 = vand.u32 2147483647, %v1599
        %v1673 = vand.u32 2147483647, %v1668
        %1677 = vrot.lane.b32.xlu0 %v1671, 127
        %v1678 = vpop.permute.xlu0 %1677
        %1679 = vrot.lane.b32.xlu0 %v1672, 127
        %v1680 = vpop.permute.xlu0 %1679
        %1681 = vrot.lane.b32.xlu0 %v1673, 127
        %v1682 = vpop.permute.xlu0 %1681
        %v1683 = vsel %vm657, %v1678, %v1680
        %v1684 = vsel %vm657, %v1680, %v1682
        %v1688 = vmax.f32 %v1671, %v1683
        %v1689 = vmax.f32 %v1672, %v1684
        %v1690 = vmax.f32 %v1673, %v1682
        %1694 = vrot.lane.b32.xlu0 %v1688, 127
        %v1695 = vpop.permute.xlu0 %1694
        %1696 = vrot.lane.b32.xlu0 %v1689, 127
        %v1697 = vpop.permute.xlu0 %1696
        %1698 = vrot.lane.b32.xlu0 %v1690, 127
        %v1699 = vpop.permute.xlu0 %1698
        %v1700 = vsel %vm657, %v1695, %v1697
        %v1701 = vsel %vm657, %v1697, %v1699
        %v1705 = vmax.f32 %v1671, %v1700
        %v1706 = vmax.f32 %v1672, %v1701
        %v1707 = vmax.f32 %v1673, %v1699
        %v1708 = vld [vmem:[%s4] sm:$0xff]
        %v1709 = vld [vmem:[%s4 + $0x8] sm:$0xff]
        %v1710 = vld [vmem:[%s4 + $0x10] sm:$0xff]
        %v1711 = vld [vmem:[%s4 + $0x18] sm:$0xff]
        %v1712 = vld [vmem:[%s4 + $0x20] sm:$0xff]
        %v1713 = vld [vmem:[%s4 + $0x28] sm:$0xff]
        %v1714 = vld [vmem:[%s4 + $0x30] sm:$0xff]
        %v1715 = vld [vmem:[%s4 + $0x38] sm:$0xff]
        %v1716 = vld [vmem:[%s4 + $0x40] sm:$0xff]
        %v1717 = vld [vmem:[%s4 + $0x48] sm:$0xff]
        %v1718 = vld [vmem:[%s4 + $0x50] sm:$0xff]
        %v1719 = vld [vmem:[%s4 + $0x58] sm:$0xff]
        %v1720 = vld [vmem:[%s4 + $0x60] sm:$0xff]
        %v1721 = vld [vmem:[%s4 + $0x68] sm:$0xff]
        %v1722 = vld [vmem:[%s4 + $0x70] sm:$0xff]
        %v1723 = vld [vmem:[%s4 + $0x78] sm:$0xff]
        %v1724 = vld [vmem:[%s4 + $0x80] sm:$0xff]
        %v1725 = vld [vmem:[%s4 + $0x88] sm:$0xff]
        %v1726 = vld [vmem:[%s4 + $0x90] sm:$0xff]
        %v1727 = vld [vmem:[%s4 + $0x98] sm:$0xff]
        %v1728 = vld [vmem:[%s4 + $0xa0] sm:$0xff]
        %v1729 = vld [vmem:[%s4 + $0xa8] sm:$0xff]
        %v1730 = vld [vmem:[%s4 + $0xb0] sm:$0xff]
        %v1731 = vld [vmem:[%s4 + $0xb8] sm:$0xff]
        %v1732 = vld [vmem:[%s4 + $0xc0] sm:$0xff]
        %v1733 = vld [vmem:[%s4 + $0xc8] sm:$0xff]
        %v1734 = vld [vmem:[%s4 + $0xd0] sm:$0xff]
        %v1735 = vld [vmem:[%s4 + $0xd8] sm:$0xff]
        %v1736 = vld [vmem:[%s4 + $0xe0] sm:$0xff]
        %v1737 = vld [vmem:[%s4 + $0xe8] sm:$0xff]
        %v1738 = vld [vmem:[%s4 + $0xf0] sm:$0xff]
        %v1739 = vld [vmem:[%s4 + $0xf8] sm:$0xff]
        %v1740 = vld [vmem:[%s4 + $0x100] sm:$0xff]
        %v1741 = vld [vmem:[%s4 + $0x108] sm:$0xff]
        %v1742 = vld [vmem:[%s4 + $0x110] sm:$0xff]
        %v1743 = vld [vmem:[%s4 + $0x118] sm:$0xff]
        %v1744 = vld [vmem:[%s4 + $0x120] sm:$0xff]
        %v1745 = vld [vmem:[%s4 + $0x128] sm:$0xff]
        %v1746 = vld [vmem:[%s4 + $0x130] sm:$0xff]
        %v1747 = vld [vmem:[%s4 + $0x138] sm:$0xff]
        %v1748 = vld [vmem:[%s4 + $0x140] sm:$0xff]
        %v1749 = vld [vmem:[%s4 + $0x148] sm:$0x3f]
        %v1751 = vsel %vm451, %v1707, 0
        %v1754 = vsel %vm1025, %v1749, 0
        %1756 = vmatprep.subr.mxu0 0.0
        %1757 = vmatpush1.msra.mxu0 %v1723
        %1758 = vmatprep.subr.mxu0 0.0
        %1759 = vmatpush1.msra.mxu0 %v1722
        %1760 = vmatprep.subr.mxu0 0.0
        %1761 = vmatpush1.msra.mxu0 %v1721
        %1762 = vmatprep.subr.mxu0 0.0
        %1763 = vmatpush1.msra.mxu0 %v1720
        %1764 = vmatprep.subr.mxu0 0.0
        %1765 = vmatpush1.msra.mxu0 %v1719
        %1766 = vmatprep.subr.mxu0 0.0
        %1767 = vmatpush1.msra.mxu0 %v1718
        %1768 = vmatprep.subr.mxu0 0.0
        %1769 = vmatpush1.msra.mxu0 %v1717
        %1770 = vmatprep.subr.mxu0 0.0
        %1771 = vmatpush1.msra.mxu0 %v1716
        %1772 = vmatprep.subr.mxu0 0.0
        %1773 = vmatpush1.msra.mxu0 %v1715
        %1774 = vmatprep.subr.mxu0 0.0
        %1775 = vmatpush1.msra.mxu0 %v1714
        %1776 = vmatprep.subr.mxu0 0.0
        %1777 = vmatpush1.msra.mxu0 %v1713
        %1778 = vmatprep.subr.mxu0 0.0
        %1779 = vmatpush1.msra.mxu0 %v1712
        %1780 = vmatprep.subr.mxu0 0.0
        %1781 = vmatpush1.msra.mxu0 %v1711
        %1782 = vmatprep.subr.mxu0 0.0
        %1783 = vmatpush1.msra.mxu0 %v1710
        %1784 = vmatprep.subr.mxu0 0.0
        %1785 = vmatpush1.msra.mxu0 %v1709
        %1786 = vmatprep.subr.mxu0 0.0
        %1787 = vmatpush1.msra.mxu0 %v1708
        %1788 = vmatprep.subr.mxu0 0.0
        %1789 = vmatpush2.msra.mxu0 %v1739
        %1790 = vmatprep.subr.mxu0 0.0
        %1791 = vmatpush2.msra.mxu0 %v1738
        %1792 = vmatprep.subr.mxu0 0.0
        %1793 = vmatpush2.msra.mxu0 %v1737
        %1794 = vmatprep.subr.mxu0 0.0
        %1795 = vmatpush2.msra.mxu0 %v1736
        %1796 = vmatprep.subr.mxu0 0.0
        %1797 = vmatpush2.msra.mxu0 %v1735
        %1798 = vmatprep.subr.mxu0 0.0
        %1799 = vmatpush2.msra.mxu0 %v1734
        %1800 = vmatprep.subr.mxu0 0.0
        %1801 = vmatpush2.msra.mxu0 %v1733
        %1802 = vmatprep.subr.mxu0 0.0
        %1803 = vmatpush2.msra.mxu0 %v1732
        %1804 = vmatprep.subr.mxu0 0.0
        %1805 = vmatpush2.msra.mxu0 %v1731
        %1806 = vmatprep.subr.mxu0 0.0
        %1807 = vmatpush2.msra.mxu0 %v1730
        %1808 = vmatprep.subr.mxu0 0.0
        %1809 = vmatpush2.msra.mxu0 %v1729
        %1810 = vmatprep.subr.mxu0 0.0
        %1811 = vmatpush2.msra.mxu0 %v1728
        %1812 = vmatprep.subr.mxu0 0.0
        %1813 = vmatpush2.msra.mxu0 %v1727
        %1814 = vmatprep.subr.mxu0 0.0
        %1815 = vmatpush2.msra.mxu0 %v1726
        %1816 = vmatprep.subr.mxu0 0.0
        %1817 = vmatpush2.msra.mxu0 %v1725
        %1818 = vmatprep.subr.mxu0 0.0
        %1819 = vmatpush2.msra.mxu0 %v1724
        %1820 = vmatprep.mubr.f32.mxu0 %v1706
        %1821 = vmatmul.mubr.f32.gmra.mxu0 %v1705
        %v1822 = vpop.f32.mrf.mxu0
        %v1823 = vadd.f32 0.0, %v1822
        %v1824 = vpop.f32.mrf.mxu0
        %1825 = vdwg.mxu0
        %1826 = vmatprep.subr.mxu0 0.0
        %1827 = vmatpush1.msra.mxu0 0.0
        %1828 = vmatprep.subr.mxu0 0.0
        %1829 = vmatpush1.msra.mxu0 0.0
        %1830 = vmatprep.subr.mxu0 0.0
        %1831 = vmatpush1.msra.mxu0 0.0
        %1832 = vmatprep.subr.mxu0 0.0
        %1833 = vmatpush1.msra.mxu0 0.0
        %1834 = vmatprep.subr.mxu0 0.0
        %1835 = vmatpush1.msra.mxu0 0.0
        %1836 = vmatprep.subr.mxu0 0.0
        %1837 = vmatpush1.msra.mxu0 0.0
        %1838 = vmatprep.subr.mxu0 0.0
        %1839 = vmatpush1.msra.mxu0 %v1754
        %1840 = vmatprep.subr.mxu0 0.0
        %1841 = vmatpush1.msra.mxu0 %v1748
        %1842 = vmatprep.subr.mxu0 0.0
        %1843 = vmatpush1.msra.mxu0 %v1747
        %1844 = vmatprep.subr.mxu0 0.0
        %1845 = vmatpush1.msra.mxu0 %v1746
        %1846 = vmatprep.subr.mxu0 0.0
        %1847 = vmatpush1.msra.mxu0 %v1745
        %1848 = vmatprep.subr.mxu0 0.0
        %1849 = vmatpush1.msra.mxu0 %v1744
        %1850 = vmatprep.subr.mxu0 0.0
        %1851 = vmatpush1.msra.mxu0 %v1743
        %1852 = vmatprep.subr.mxu0 0.0
        %1853 = vmatpush1.msra.mxu0 %v1742
        %1854 = vmatprep.subr.mxu0 0.0
        %1855 = vmatpush1.msra.mxu0 %v1741
        %1856 = vmatprep.subr.mxu0 0.0
        %1857 = vmatpush1.msra.mxu0 %v1740
        %1858 = vmatprep.subr.mxu0 0.0
        %1859 = vmatpush2.msra.mxu0 0.0
        %1860 = vmatprep.subr.mxu0 0.0
        %1861 = vmatpush2.msra.mxu0 0.0
        %1862 = vmatprep.subr.mxu0 0.0
        %1863 = vmatpush2.msra.mxu0 0.0
        %1864 = vmatprep.subr.mxu0 0.0
        %1865 = vmatpush2.msra.mxu0 0.0
        %1866 = vmatprep.subr.mxu0 0.0
        %1867 = vmatpush2.msra.mxu0 0.0
        %1868 = vmatprep.subr.mxu0 0.0
        %1869 = vmatpush2.msra.mxu0 0.0
        %1870 = vmatprep.subr.mxu0 0.0
        %1871 = vmatpush2.msra.mxu0 0.0
        %1872 = vmatprep.subr.mxu0 0.0
        %1873 = vmatpush2.msra.mxu0 0.0
        %1874 = vmatprep.subr.mxu0 0.0
        %1875 = vmatpush2.msra.mxu0 0.0
        %1876 = vmatprep.subr.mxu0 0.0
        %1877 = vmatpush2.msra.mxu0 0.0
        %1878 = vmatprep.subr.mxu0 0.0
        %1879 = vmatpush2.msra.mxu0 0.0
        %1880 = vmatprep.subr.mxu0 0.0
        %1881 = vmatpush2.msra.mxu0 0.0
        %1882 = vmatprep.subr.mxu0 0.0
        %1883 = vmatpush2.msra.mxu0 0.0
        %1884 = vmatprep.subr.mxu0 0.0
        %1885 = vmatpush2.msra.mxu0 0.0
        %1886 = vmatprep.subr.mxu0 0.0
        %1887 = vmatpush2.msra.mxu0 0.0
        %1888 = vmatprep.subr.mxu0 0.0
        %1889 = vmatpush2.msra.mxu0 0.0
        %1890 = vmatprep.mubr.f32.mxu0 0.0
        %1891 = vmatmul.mubr.f32.gmra.mxu0 %v1751
        %v1892 = vpop.f32.mrf.mxu0
        %v1893 = vadd.f32 %v1823, %v1892
        %v1894 = vpop.f32.mrf.mxu0
        %1895 = vdwg.mxu0
        %v1896 = vsel %vm394, %v1893, 0.0
        %1897 = vadd.xlane.f32.xlu0 %v1896
        %v1898 = vpop.xlane.xlu0 %1897
        %v1899 = vmul.f32 %v1893, %v1893
        %v1900 = vsel %vm394, %v1899, 0.0
        %1901 = vadd.xlane.f32.xlu0 %v1900
        %v1902 = vpop.xlane.xlu0 %1901
        %v1903 = vmul.f32 %v1898, 0.008928572
        %v1904 = vmul.f32 %v1898, %v1903
        %v1905 = vsub.f32 %v1902, %v1904
        %v1906 = vmax.f32 %v1905, 0.0
        %v1907 = vmul.f32 %v1906, 0.009009009
        %v1908 = vrsqrt.pop %v1907
        %v1909 = vmul.f32 %v1907, %v1908
        %vm1910 = vcmp.eq.f32.partialorder %v1907, inf
        %v1911 = vsel %vm1910, %v1907, %v1909
        %vm1912 = vcmp.eq.f32.partialorder %v1907, 0.0
        %v1913 = vand.u32 %v1907, 2147483648
        %v1914 = vsel %vm1912, %v1913, %v1911
        %v1915 = vadd.f32 %v1914, 1e-06
        %v1916 = vrcp.pop %v1915
        %v1917 = vsub.f32 %v1893, %v1903
        %v1918 = vmul.f32 %v1917, %v1916
        %1920 = vrot.lane.b32.xlu0 %v1918, 33
        %v1921 = vpop.permute.xlu0 %1920
        %v1923 = vmul.f32 %v273, %v1921
        %v1924 = vmul.f32 %v274, %v1921
        %1927 = vrot.lane.b32.xlu0 %v274, 16
        %v1928 = vpop.permute.xlu0 %1927
        %1929 = vrot.lane.b32.xlu0 %v275, 16
        %v1930 = vpop.permute.xlu0 %1929
        %vm1931 = vcmask 130048
        %v1932 = vsel %vm1931, %v1928, %v1930
        %v1935 = vadd.f32 %v1923, %v1928
        %v1936 = vadd.f32 %v1924, %v1932
        %v1937 = vmul.f32 %v1935, 0.2
        %v1938 = vmul.f32 %v1936, 0.2
        %v1939 = vmax.f32 %v1935, %v1937
        %v1940 = vmax.f32 %v1936, %v1938
        %1943 = vrot.lane.b32.xlu0 %v1939, 127
        %v1944 = vpop.permute.xlu0 %1943
        %1945 = vrot.lane.b32.xlu0 %v1940, 127
        %v1946 = vpop.permute.xlu0 %1945
        %v1947 = vsel %vm657, %v1944, %v1946
        %1948 = vrot.lane.b32.xlu0 %v1939, 126
        %v1949 = vpop.permute.xlu0 %1948
        %1950 = vrot.lane.b32.xlu0 %v1940, 126
        %v1951 = vpop.permute.xlu0 %1950
        %v1952 = vsel %vm618, %v1949, %v1951
        %1953 = vrot.lane.b32.xlu0 %v1939, 125
        %v1954 = vpop.permute.xlu0 %1953
        %1955 = vrot.lane.b32.xlu0 %v1940, 125
        %v1956 = vpop.permute.xlu0 %1955
        %v1957 = vsel %vm706, %v1954, %v1956
        %1958 = vrot.lane.b32.xlu0 %v1939, 124
        %v1959 = vpop.permute.xlu0 %1958
        %1960 = vrot.lane.b32.xlu0 %v1940, 124
        %v1961 = vpop.permute.xlu0 %1960
        %v1962 = vsel %vm611, %v1959, %v1961
        %1964 = vset.pattern.permute.xlu0 5
        %1965 = vperm.xlu0 %1964, %v276
        %v1966 = vpop.permute.xlu0 %1965
        %1968 = vrot.lane.b32.xlu0 %v275, 35
        %v1969 = vpop.permute.xlu0 %1968
        %1970 = vrot.lane.b32.xlu0 %v276, 35
        %v1971 = vpop.permute.xlu0 %1970
        %vm1972 = vcmask 285696
        %v1973 = vsel %vm1972, %v1969, %v1971
        %1974 = vrot.lane.b32.xlu0 %v1939, 95
        %v1975 = vpop.permute.xlu0 %1974
        %1976 = vrot.lane.b32.xlu0 %v1940, 95
        %v1977 = vpop.permute.xlu0 %1976
        %1978 = vrot.lane.b32.xlu0 %v1947, 95
        %v1979 = vpop.permute.xlu0 %1978
        %1980 = vrot.lane.b32.xlu0 %v1946, 95
        %v1981 = vpop.permute.xlu0 %1980
        %1982 = vrot.lane.b32.xlu0 %v1952, 95
        %v1983 = vpop.permute.xlu0 %1982
        %1984 = vrot.lane.b32.xlu0 %v1951, 95
        %v1985 = vpop.permute.xlu0 %1984
        %1986 = vrot.lane.b32.xlu0 %v1957, 95
        %v1987 = vpop.permute.xlu0 %1986
        %1988 = vrot.lane.b32.xlu0 %v1956, 95
        %v1989 = vpop.permute.xlu0 %1988
        %1990 = vrot.lane.b32.xlu0 %v1962, 95
        %v1991 = vpop.permute.xlu0 %1990
        %1992 = vrot.lane.b32.xlu0 %v1961, 95
        %v1993 = vpop.permute.xlu0 %1992
        %vm1994 = vcmask 777216
        %v1995 = vsel %vm1994, %v1975, %v1977
        %v1996 = vsel %vm1994, %v1979, %v1981
        %v1997 = vsel %vm1994, %v1983, %v1985
        %v1998 = vsel %vm1994, %v1987, %v1989
        %v1999 = vsel %vm1994, %v1991, %v1993
        %vm2005 = vcmask 326656
        %v2006 = vsel %vm2005, %v1973, 0
        %2008 = vmatprep.subr.mxu0 0.0
        %2009 = vmatpush1.msra.mxu0 0.0
        %2010 = vmatprep.subr.mxu0 0.0
        %2011 = vmatpush1.msra.mxu0 0.0
        %2012 = vmatprep.subr.mxu0 0.0
        %2013 = vmatpush1.msra.mxu0 0.0
        %2014 = vmatprep.subr.mxu0 0.0
        %2015 = vmatpush1.msra.mxu0 0.0
        %2016 = vmatprep.subr.mxu0 0.0
        %2017 = vmatpush1.msra.mxu0 0.0
        %2018 = vmatprep.subr.mxu0 0.0
        %2019 = vmatpush1.msra.mxu0 0.0
        %2020 = vmatprep.subr.mxu0 0.0
        %2021 = vmatpush1.msra.mxu0 0.0
        %2022 = vmatprep.subr.mxu0 0.0
        %2023 = vmatpush1.msra.mxu0 0.0
        %2024 = vmatprep.subr.mxu0 0.0
        %2025 = vmatpush1.msra.mxu0 0.0
        %2026 = vmatprep.subr.mxu0 0.0
        %2027 = vmatpush1.msra.mxu0 0.0
        %2028 = vmatprep.subr.mxu0 0.0
        %2029 = vmatpush1.msra.mxu0 0.0
        %2030 = vmatprep.subr.mxu0 0.0
        %2031 = vmatpush1.msra.mxu0 %v1999
        %2032 = vmatprep.subr.mxu0 0.0
        %2033 = vmatpush1.msra.mxu0 %v1998
        %2034 = vmatprep.subr.mxu0 0.0
        %2035 = vmatpush1.msra.mxu0 %v1997
        %2036 = vmatprep.subr.mxu0 0.0
        %2037 = vmatpush1.msra.mxu0 %v1996
        %2038 = vmatprep.subr.mxu0 0.0
        %2039 = vmatpush1.msra.mxu0 %v1995
        %2040 = vmatprep.subr.mxu0 0.0
        %2041 = vmatpush2.msra.mxu0 0.0
        %2042 = vmatprep.subr.mxu0 0.0
        %2043 = vmatpush2.msra.mxu0 0.0
        %2044 = vmatprep.subr.mxu0 0.0
        %2045 = vmatpush2.msra.mxu0 0.0
        %2046 = vmatprep.subr.mxu0 0.0
        %2047 = vmatpush2.msra.mxu0 0.0
        %2048 = vmatprep.subr.mxu0 0.0
        %2049 = vmatpush2.msra.mxu0 0.0
        %2050 = vmatprep.subr.mxu0 0.0
        %2051 = vmatpush2.msra.mxu0 0.0
        %2052 = vmatprep.subr.mxu0 0.0
        %2053 = vmatpush2.msra.mxu0 0.0
        %2054 = vmatprep.subr.mxu0 0.0
        %2055 = vmatpush2.msra.mxu0 0.0
        %2056 = vmatprep.subr.mxu0 0.0
        %2057 = vmatpush2.msra.mxu0 0.0
        %2058 = vmatprep.subr.mxu0 0.0
        %2059 = vmatpush2.msra.mxu0 0.0
        %2060 = vmatprep.subr.mxu0 0.0
        %2061 = vmatpush2.msra.mxu0 0.0
        %2062 = vmatprep.subr.mxu0 0.0
        %2063 = vmatpush2.msra.mxu0 0.0
        %2064 = vmatprep.subr.mxu0 0.0
        %2065 = vmatpush2.msra.mxu0 0.0
        %2066 = vmatprep.subr.mxu0 0.0
        %2067 = vmatpush2.msra.mxu0 0.0
        %2068 = vmatprep.subr.mxu0 0.0
        %2069 = vmatpush2.msra.mxu0 0.0
        %2070 = vmatprep.subr.mxu0 0.0
        %2071 = vmatpush2.msra.mxu0 0.0
        %2072 = vmatprep.mubr.f32.mxu0 0.0
        %2073 = vmatmul.mubr.f32.gmra.mxu0 %v2006
        %v2074 = vpop.f32.mrf.mxu0
        %v2075 = vadd.f32 %v1966, %v2074
        %v2076 = vpop.f32.mrf.mxu0
        %2077 = vdwg.mxu0
        %2079 = vrot.lane.b32.xlu0 %v2075, 127
        %v2080 = vpop.permute.xlu0 %2079
        %v2082 = vmax.f32 %v2075, %v2080
        %2084 = vrot.lane.b32.xlu0 %v2082, 127
        %v2085 = vpop.permute.xlu0 %2084
        %v2087 = vmax.f32 %v2075, %v2085
        %v2088 = vld [vmem:[%s5] sm:$0xff]
        %v2089 = vld [vmem:[%s5 + $0x8] sm:$0xff]
        %v2090 = vld [vmem:[%s5 + $0x10] sm:$0xff]
        %v2091 = vld [vmem:[%s5 + $0x18] sm:$0xff]
        %v2092 = vld [vmem:[%s5 + $0x20] sm:$0xff]
        %v2093 = vld [vmem:[%s5 + $0x28] sm:$0xff]
        %v2094 = vld [vmem:[%s5 + $0x30] sm:$0xff]
        %v2095 = vld [vmem:[%s5 + $0x38] sm:$0xff]
        %v2096 = vld [vmem:[%s5 + $0x40] sm:$0xff]
        %v2097 = vld [vmem:[%s5 + $0x48] sm:$0xff]
        %v2098 = vld [vmem:[%s5 + $0x50] sm:$0xff]
        %v2099 = vld [vmem:[%s5 + $0x58] sm:$0xff]
        %v2100 = vld [vmem:[%s5 + $0x60] sm:$0xff]
        %v2101 = vld [vmem:[%s5 + $0x68] sm:$0x3]
        %v2103 = vsel %vm549, %v2087, 0
        %v2106 = vsel %vm1009, %v2101, 0
        %2108 = vmatprep.subr.mxu0 0.0
        %2109 = vmatpush1.msra.mxu0 0.0
        %2110 = vmatprep.subr.mxu0 0.0
        %2111 = vmatpush1.msra.mxu0 0.0
        %2112 = vmatprep.subr.mxu0 0.0
        %2113 = vmatpush1.msra.mxu0 %v2106
        %2114 = vmatprep.subr.mxu0 0.0
        %2115 = vmatpush1.msra.mxu0 %v2100
        %2116 = vmatprep.subr.mxu0 0.0
        %2117 = vmatpush1.msra.mxu0 %v2099
        %2118 = vmatprep.subr.mxu0 0.0
        %2119 = vmatpush1.msra.mxu0 %v2098
        %2120 = vmatprep.subr.mxu0 0.0
        %2121 = vmatpush1.msra.mxu0 %v2097
        %2122 = vmatprep.subr.mxu0 0.0
        %2123 = vmatpush1.msra.mxu0 %v2096
        %2124 = vmatprep.subr.mxu0 0.0
        %2125 = vmatpush1.msra.mxu0 %v2095
        %2126 = vmatprep.subr.mxu0 0.0
        %2127 = vmatpush1.msra.mxu0 %v2094
        %2128 = vmatprep.subr.mxu0 0.0
        %2129 = vmatpush1.msra.mxu0 %v2093
        %2130 = vmatprep.subr.mxu0 0.0
        %2131 = vmatpush1.msra.mxu0 %v2092
        %2132 = vmatprep.subr.mxu0 0.0
        %2133 = vmatpush1.msra.mxu0 %v2091
        %2134 = vmatprep.subr.mxu0 0.0
        %2135 = vmatpush1.msra.mxu0 %v2090
        %2136 = vmatprep.subr.mxu0 0.0
        %2137 = vmatpush1.msra.mxu0 %v2089
        %2138 = vmatprep.subr.mxu0 0.0
        %2139 = vmatpush1.msra.mxu0 %v2088
        %2140 = vmatprep.subr.mxu0 0.0
        %2141 = vmatpush2.msra.mxu0 0.0
        %2142 = vmatprep.subr.mxu0 0.0
        %2143 = vmatpush2.msra.mxu0 0.0
        %2144 = vmatprep.subr.mxu0 0.0
        %2145 = vmatpush2.msra.mxu0 0.0
        %2146 = vmatprep.subr.mxu0 0.0
        %2147 = vmatpush2.msra.mxu0 0.0
        %2148 = vmatprep.subr.mxu0 0.0
        %2149 = vmatpush2.msra.mxu0 0.0
        %2150 = vmatprep.subr.mxu0 0.0
        %2151 = vmatpush2.msra.mxu0 0.0
        %2152 = vmatprep.subr.mxu0 0.0
        %2153 = vmatpush2.msra.mxu0 0.0
        %2154 = vmatprep.subr.mxu0 0.0
        %2155 = vmatpush2.msra.mxu0 0.0
        %2156 = vmatprep.subr.mxu0 0.0
        %2157 = vmatpush2.msra.mxu0 0.0
        %2158 = vmatprep.subr.mxu0 0.0
        %2159 = vmatpush2.msra.mxu0 0.0
        %2160 = vmatprep.subr.mxu0 0.0
        %2161 = vmatpush2.msra.mxu0 0.0
        %2162 = vmatprep.subr.mxu0 0.0
        %2163 = vmatpush2.msra.mxu0 0.0
        %2164 = vmatprep.subr.mxu0 0.0
        %2165 = vmatpush2.msra.mxu0 0.0
        %2166 = vmatprep.subr.mxu0 0.0
        %2167 = vmatpush2.msra.mxu0 0.0
        %2168 = vmatprep.subr.mxu0 0.0
        %2169 = vmatpush2.msra.mxu0 0.0
        %2170 = vmatprep.subr.mxu0 0.0
        %2171 = vmatpush2.msra.mxu0 0.0
        %2172 = vmatprep.mubr.f32.mxu0 0.0
        %2173 = vmatmul.mubr.f32.gmra.mxu0 %v2103
        %v2174 = vpop.f32.mrf.mxu0
        %v2175 = vadd.f32 0.0, %v2174
        %v2176 = vpop.f32.mrf.mxu0
        %2177 = vdwg.mxu0
        %vm2178 = vcmask 293888
        %v2179 = vsel %vm2178, %v2175, 0.0
        %2180 = vadd.xlane.f32.xlu0 %v2179
        %v2181 = vpop.xlane.xlu0 %2180
        %v2182 = vmul.f32 %v2175, %v2175
        %v2183 = vsel %vm2178, %v2182, 0.0
        %2184 = vadd.xlane.f32.xlu0 %v2183
        %v2185 = vpop.xlane.xlu0 %2184
        %v2186 = vmul.f32 %v2181, 0.027777778
        %v2187 = vmul.f32 %v2181, %v2186
        %v2188 = vsub.f32 %v2185, %v2187
        %v2189 = vmax.f32 %v2188, 0.0
        %v2190 = vmul.f32 %v2189, 0.028571429
        %v2191 = vrsqrt.pop %v2190
        %v2192 = vmul.f32 %v2190, %v2191
        %vm2193 = vcmp.eq.f32.partialorder %v2190, inf
        %v2194 = vsel %vm2193, %v2190, %v2192
        %vm2195 = vcmp.eq.f32.partialorder %v2190, 0.0
        %v2196 = vand.u32 %v2190, 2147483648
        %v2197 = vsel %vm2195, %v2196, %v2194
        %v2198 = vadd.f32 %v2197, 1e-06
        %v2199 = vrcp.pop %v2198
        %v2200 = vsub.f32 %v2175, %v2186
        %v2201 = vmul.f32 %v2200, %v2199
        %2203 = vrot.lane.b32.xlu0 %v2201, 1
        %v2204 = vpop.permute.xlu0 %2203
        %v2206 = vmul.f32 %v275, %v2204
        %2207 = vrot.lane.b32.xlu0 %v275, 92
        %v2208 = vpop.permute.xlu0 %2207
        %v2210 = vadd.f32 %v2206, %v2208
        %v2211 = vmul.f32 %v2210, 0.2
        %v2212 = vmax.f32 %v2210, %v2211
        %2214 = vrot.lane.b32.xlu0 %v2212, 127
        %v2215 = vpop.permute.xlu0 %2214
        %2216 = vrot.lane.b32.xlu0 %v2212, 126
        %v2217 = vpop.permute.xlu0 %2216
        %2218 = vrot.lane.b32.xlu0 %v2212, 125
        %v2219 = vpop.permute.xlu0 %2218
        %2220 = vrot.lane.b32.xlu0 %v2212, 124
        %v2221 = vpop.permute.xlu0 %2220
        %2222 = vset.pattern.permute.xlu0 46
        %2223 = vperm.xlu0 %2222, %v276
        %v2224 = vpop.permute.xlu0 %2223
        %2226 = vrot.lane.b32.xlu0 %v276, 122
        %v2227 = vpop.permute.xlu0 %2226
        %2228 = vrot.lane.b32.xlu0 %v2215, 127
        %v2229 = vpop.permute.xlu0 %2228
        %2230 = vrot.lane.b32.xlu0 %v2217, 127
        %v2231 = vpop.permute.xlu0 %2230
        %2232 = vrot.lane.b32.xlu0 %v2219, 127
        %v2233 = vpop.permute.xlu0 %2232
        %2234 = vrot.lane.b32.xlu0 %v2221, 127
        %v2235 = vpop.permute.xlu0 %2234
        %v2241 = vsel %vm2005, %v2227, 0
        %2243 = vmatprep.subr.mxu0 0.0
        %2244 = vmatpush1.msra.mxu0 0.0
        %2245 = vmatprep.subr.mxu0 0.0
        %2246 = vmatpush1.msra.mxu0 0.0
        %2247 = vmatprep.subr.mxu0 0.0
        %2248 = vmatpush1.msra.mxu0 0.0
        %2249 = vmatprep.subr.mxu0 0.0
        %2250 = vmatpush1.msra.mxu0 0.0
        %2251 = vmatprep.subr.mxu0 0.0
        %2252 = vmatpush1.msra.mxu0 0.0
        %2253 = vmatprep.subr.mxu0 0.0
        %2254 = vmatpush1.msra.mxu0 0.0
        %2255 = vmatprep.subr.mxu0 0.0
        %2256 = vmatpush1.msra.mxu0 0.0
        %2257 = vmatprep.subr.mxu0 0.0
        %2258 = vmatpush1.msra.mxu0 0.0
        %2259 = vmatprep.subr.mxu0 0.0
        %2260 = vmatpush1.msra.mxu0 0.0
        %2261 = vmatprep.subr.mxu0 0.0
        %2262 = vmatpush1.msra.mxu0 0.0
        %2263 = vmatprep.subr.mxu0 0.0
        %2264 = vmatpush1.msra.mxu0 0.0
        %2265 = vmatprep.subr.mxu0 0.0
        %2266 = vmatpush1.msra.mxu0 %v2235
        %2267 = vmatprep.subr.mxu0 0.0
        %2268 = vmatpush1.msra.mxu0 %v2233
        %2269 = vmatprep.subr.mxu0 0.0
        %2270 = vmatpush1.msra.mxu0 %v2231
        %2271 = vmatprep.subr.mxu0 0.0
        %2272 = vmatpush1.msra.mxu0 %v2229
        %2273 = vmatprep.subr.mxu0 0.0
        %2274 = vmatpush1.msra.mxu0 %v2215
        %2275 = vmatprep.subr.mxu0 0.0
        %2276 = vmatpush2.msra.mxu0 0.0
        %2277 = vmatprep.subr.mxu0 0.0
        %2278 = vmatpush2.msra.mxu0 0.0
        %2279 = vmatprep.subr.mxu0 0.0
        %2280 = vmatpush2.msra.mxu0 0.0
        %2281 = vmatprep.subr.mxu0 0.0
        %2282 = vmatpush2.msra.mxu0 0.0
        %2283 = vmatprep.subr.mxu0 0.0
        %2284 = vmatpush2.msra.mxu0 0.0
        %2285 = vmatprep.subr.mxu0 0.0
        %2286 = vmatpush2.msra.mxu0 0.0
        %2287 = vmatprep.subr.mxu0 0.0
        %2288 = vmatpush2.msra.mxu0 0.0
        %2289 = vmatprep.subr.mxu0 0.0
        %2290 = vmatpush2.msra.mxu0 0.0
        %2291 = vmatprep.subr.mxu0 0.0
        %2292 = vmatpush2.msra.mxu0 0.0
        %2293 = vmatprep.subr.mxu0 0.0
        %2294 = vmatpush2.msra.mxu0 0.0
        %2295 = vmatprep.subr.mxu0 0.0
        %2296 = vmatpush2.msra.mxu0 0.0
        %2297 = vmatprep.subr.mxu0 0.0
        %2298 = vmatpush2.msra.mxu0 0.0
        %2299 = vmatprep.subr.mxu0 0.0
        %2300 = vmatpush2.msra.mxu0 0.0
        %2301 = vmatprep.subr.mxu0 0.0
        %2302 = vmatpush2.msra.mxu0 0.0
        %2303 = vmatprep.subr.mxu0 0.0
        %2304 = vmatpush2.msra.mxu0 0.0
        %2305 = vmatprep.subr.mxu0 0.0
        %2306 = vmatpush2.msra.mxu0 0.0
        %2307 = vmatprep.mubr.f32.mxu0 0.0
        %2308 = vmatmul.mubr.f32.gmra.mxu0 %v2241
        %v2309 = vpop.f32.mrf.mxu0
        %v2310 = vadd.f32 %v2224, %v2309
        %v2311 = vpop.f32.mrf.mxu0
        %2312 = vdwg.mxu0
        %2314 = vrot.lane.b32.xlu0 %v2310, 127
        %v2315 = vpop.permute.xlu0 %2314
        %v2317 = vmax.f32 %v2310, %v2315
        %2319 = vrot.lane.b32.xlu0 %v2317, 127
        %v2320 = vpop.permute.xlu0 %2319
        %v2322 = vmax.f32 %v2310, %v2320
        %v2323 = vld [vmem:[%s6] sm:$0xff]
        %v2324 = vld [vmem:[%s6 + $0x8] sm:$0xff]
        %v2325 = vld [vmem:[%s6 + $0x10] sm:$0xff]
        %v2326 = vld [vmem:[%s6 + $0x18] sm:$0x3f]
        %vm2327 = vcmask 244736
        %v2329 = vsel %vm2327, %v2322, 0
        %v2332 = vsel %vm1025, %v2326, 0
        %2334 = vmatprep.subr.mxu0 0.0
        %2335 = vmatpush1.msra.mxu0 0.0
        %2336 = vmatprep.subr.mxu0 0.0
        %2337 = vmatpush1.msra.mxu0 0.0
        %2338 = vmatprep.subr.mxu0 0.0
        %2339 = vmatpush1.msra.mxu0 0.0
        %2340 = vmatprep.subr.mxu0 0.0
        %2341 = vmatpush1.msra.mxu0 0.0
        %2342 = vmatprep.subr.mxu0 0.0
        %2343 = vmatpush1.msra.mxu0 0.0
        %2344 = vmatprep.subr.mxu0 0.0
        %2345 = vmatpush1.msra.mxu0 0.0
        %2346 = vmatprep.subr.mxu0 0.0
        %2347 = vmatpush1.msra.mxu0 0.0
        %2348 = vmatprep.subr.mxu0 0.0
        %2349 = vmatpush1.msra.mxu0 0.0
        %2350 = vmatprep.subr.mxu0 0.0
        %2351 = vmatpush1.msra.mxu0 0.0
        %2352 = vmatprep.subr.mxu0 0.0
        %2353 = vmatpush1.msra.mxu0 0.0
        %2354 = vmatprep.subr.mxu0 0.0
        %2355 = vmatpush1.msra.mxu0 0.0
        %2356 = vmatprep.subr.mxu0 0.0
        %2357 = vmatpush1.msra.mxu0 0.0
        %2358 = vmatprep.subr.mxu0 0.0
        %2359 = vmatpush1.msra.mxu0 %v2332
        %2360 = vmatprep.subr.mxu0 0.0
        %2361 = vmatpush1.msra.mxu0 %v2325
        %2362 = vmatprep.subr.mxu0 0.0
        %2363 = vmatpush1.msra.mxu0 %v2324
        %2364 = vmatprep.subr.mxu0 0.0
        %2365 = vmatpush1.msra.mxu0 %v2323
        %2366 = vmatprep.subr.mxu0 0.0
        %2367 = vmatpush2.msra.mxu0 0.0
        %2368 = vmatprep.subr.mxu0 0.0
        %2369 = vmatpush2.msra.mxu0 0.0
        %2370 = vmatprep.subr.mxu0 0.0
        %2371 = vmatpush2.msra.mxu0 0.0
        %2372 = vmatprep.subr.mxu0 0.0
        %2373 = vmatpush2.msra.mxu0 0.0
        %2374 = vmatprep.subr.mxu0 0.0
        %2375 = vmatpush2.msra.mxu0 0.0
        %2376 = vmatprep.subr.mxu0 0.0
        %2377 = vmatpush2.msra.mxu0 0.0
        %2378 = vmatprep.subr.mxu0 0.0
        %2379 = vmatpush2.msra.mxu0 0.0
        %2380 = vmatprep.subr.mxu0 0.0
        %2381 = vmatpush2.msra.mxu0 0.0
        %2382 = vmatprep.subr.mxu0 0.0
        %2383 = vmatpush2.msra.mxu0 0.0
        %2384 = vmatprep.subr.mxu0 0.0
        %2385 = vmatpush2.msra.mxu0 0.0
        %2386 = vmatprep.subr.mxu0 0.0
        %2387 = vmatpush2.msra.mxu0 0.0
        %2388 = vmatprep.subr.mxu0 0.0
        %2389 = vmatpush2.msra.mxu0 0.0
        %2390 = vmatprep.subr.mxu0 0.0
        %2391 = vmatpush2.msra.mxu0 0.0
        %2392 = vmatprep.subr.mxu0 0.0
        %2393 = vmatpush2.msra.mxu0 0.0
        %2394 = vmatprep.subr.mxu0 0.0
        %2395 = vmatpush2.msra.mxu0 0.0
        %2396 = vmatprep.subr.mxu0 0.0
        %2397 = vmatpush2.msra.mxu0 0.0
        %2398 = vmatprep.mubr.f32.mxu0 0.0
        %2399 = vmatmul.mubr.f32.gmra.mxu0 %v2329
        %v2400 = vpop.f32.mrf.mxu0
        %v2401 = vadd.f32 0.0, %v2400
        %v2402 = vpop.f32.mrf.mxu0
        %2403 = vdwg.mxu0
        %vm2404 = vcmask 80896
        %v2405 = vsel %vm2404, %v2401, 0.0
        %2406 = vadd.xlane.f32.xlu0 %v2405
        %v2407 = vpop.xlane.xlu0 %2406
        %v2408 = vmul.f32 %v2401, %v2401
        %v2409 = vsel %vm2404, %v2408, 0.0
        %2410 = vadd.xlane.f32.xlu0 %v2409
        %v2411 = vpop.xlane.xlu0 %2410
        %v2412 = vmul.f32 %v2407, 0.1
        %v2413 = vmul.f32 %v2407, %v2412
        %v2414 = vsub.f32 %v2411, %v2413
        %v2415 = vmax.f32 %v2414, 0.0
        %v2416 = vmul.f32 %v2415, 0.11111111
        %v2417 = vrsqrt.pop %v2416
        %v2418 = vmul.f32 %v2416, %v2417
        %vm2419 = vcmp.eq.f32.partialorder %v2416, inf
        %v2420 = vsel %vm2419, %v2416, %v2418
        %vm2421 = vcmp.eq.f32.partialorder %v2416, 0.0
        %v2422 = vand.u32 %v2416, 2147483648
        %v2423 = vsel %vm2421, %v2422, %v2420
        %v2424 = vadd.f32 %v2423, 1e-06
        %v2425 = vrcp.pop %v2424
        %v2426 = vsub.f32 %v2401, %v2412
        %v2427 = vmul.f32 %v2426, %v2425
        %2429 = vrot.lane.b32.xlu0 %v2427, 73
        %v2430 = vpop.permute.xlu0 %2429
        %v2432 = vmul.f32 %v275, %v2430
        %2433 = vrot.lane.b32.xlu0 %v275, 118
        %v2434 = vpop.permute.xlu0 %2433
        %v2436 = vadd.f32 %v2432, %v2434
        %v2437 = vmul.f32 %v2436, 0.2
        %v2438 = vmax.f32 %v2436, %v2437
        %2440 = vrot.lane.b32.xlu0 %v2438, 55
        %v2441 = vpop.permute.xlu0 %2440
        %v2443 = vrot.slane %v2438, 1
        %2444 = vrot.lane.b32.xlu0 %v2443, 65
        %v2445 = vpop.permute.xlu0 %2444
        %v2447 = vrot.slane %v2438, 2
        %2448 = vrot.lane.b32.xlu0 %v2447, 75
        %v2449 = vpop.permute.xlu0 %2448
        %v2451 = vrot.slane %v2438, 3
        %2452 = vrot.lane.b32.xlu0 %v2451, 85
        %v2453 = vpop.permute.xlu0 %2452
        %v2455 = vrot.slane %v2438, 4
        %2456 = vrot.lane.b32.xlu0 %v2455, 95
        %v2457 = vpop.permute.xlu0 %2456
        %v2459 = vrot.slane %v2438, 5
        %2460 = vrot.lane.b32.xlu0 %v2459, 105
        %v2461 = vpop.permute.xlu0 %2460
        %v2463 = vrot.slane %v2438, 6
        %2464 = vrot.lane.b32.xlu0 %v2463, 115
        %v2465 = vpop.permute.xlu0 %2464
        %v2467 = vrot.slane %v2438, 7
        %2468 = vrot.lane.b32.xlu0 %v2467, 125
        %v2469 = vpop.permute.xlu0 %2468
        %v2471 = vsel %vm2404, %v2441, %v2445
        %vm2472 = vcmask 162816
        %v2473 = vsel %vm2472, %v2471, %v2449
        %v2474 = vsel %vm2327, %v2473, %v2453
        %v2475 = vsel %vm2005, %v2474, %v2457
        %vm2476 = vcmask 408576
        %v2477 = vsel %vm2476, %v2475, %v2461
        %vm2478 = vcmask 490496
        %v2479 = vsel %vm2478, %v2477, %v2465
        %v2480 = vsel %vm423, %v2479, %v2469
        %v2481 = vlaneseq
        %v2482 = vshrl.u32 %v2481, 7
        %v2483 = vsub.s32 6, %v2482
        %v2484 = vrot.slane %v277, %v2483
        %2485 = vrot.lane.b32.xlu0 %v2484, 96
        %v2486 = vpop.permute.xlu0 %2485
        %v2489 = vsel %vm458, %v2480, 0
        %2491 = vmatprep.subr.mxu0 0.0
        %2492 = vmatpush1.msra.mxu0 0.0
        %2493 = vmatprep.subr.mxu0 0.0
        %2494 = vmatpush1.msra.mxu0 0.0
        %2495 = vmatprep.subr.mxu0 0.0
        %2496 = vmatpush1.msra.mxu0 0.0
        %2497 = vmatprep.subr.mxu0 0.0
        %2498 = vmatpush1.msra.mxu0 0.0
        %2499 = vmatprep.subr.mxu0 0.0
        %2500 = vmatpush1.msra.mxu0 0.0
        %2501 = vmatprep.subr.mxu0 0.0
        %2502 = vmatpush1.msra.mxu0 0.0
        %2503 = vmatprep.subr.mxu0 0.0
        %2504 = vmatpush1.msra.mxu0 %v287
        %2505 = vmatprep.subr.mxu0 0.0
        %2506 = vmatpush1.msra.mxu0 %v286
        %2507 = vmatprep.subr.mxu0 0.0
        %2508 = vmatpush1.msra.mxu0 %v285
        %2509 = vmatprep.subr.mxu0 0.0
        %2510 = vmatpush1.msra.mxu0 %v284
        %2511 = vmatprep.subr.mxu0 0.0
        %2512 = vmatpush1.msra.mxu0 %v283
        %2513 = vmatprep.subr.mxu0 0.0
        %2514 = vmatpush1.msra.mxu0 %v282
        %2515 = vmatprep.subr.mxu0 0.0
        %2516 = vmatpush1.msra.mxu0 %v281
        %2517 = vmatprep.subr.mxu0 0.0
        %2518 = vmatpush1.msra.mxu0 %v280
        %2519 = vmatprep.subr.mxu0 0.0
        %2520 = vmatpush1.msra.mxu0 %v279
        %2521 = vmatprep.subr.mxu0 0.0
        %2522 = vmatpush1.msra.mxu0 %v278
        %2523 = vmatprep.subr.mxu0 0.0
        %2524 = vmatpush2.msra.mxu0 0.0
        %2525 = vmatprep.subr.mxu0 0.0
        %2526 = vmatpush2.msra.mxu0 0.0
        %2527 = vmatprep.subr.mxu0 0.0
        %2528 = vmatpush2.msra.mxu0 0.0
        %2529 = vmatprep.subr.mxu0 0.0
        %2530 = vmatpush2.msra.mxu0 0.0
        %2531 = vmatprep.subr.mxu0 0.0
        %2532 = vmatpush2.msra.mxu0 0.0
        %2533 = vmatprep.subr.mxu0 0.0
        %2534 = vmatpush2.msra.mxu0 0.0
        %2535 = vmatprep.subr.mxu0 0.0
        %2536 = vmatpush2.msra.mxu0 0.0
        %2537 = vmatprep.subr.mxu0 0.0
        %2538 = vmatpush2.msra.mxu0 0.0
        %2539 = vmatprep.subr.mxu0 0.0
        %2540 = vmatpush2.msra.mxu0 0.0
        %2541 = vmatprep.subr.mxu0 0.0
        %2542 = vmatpush2.msra.mxu0 0.0
        %2543 = vmatprep.subr.mxu0 0.0
        %2544 = vmatpush2.msra.mxu0 0.0
        %2545 = vmatprep.subr.mxu0 0.0
        %2546 = vmatpush2.msra.mxu0 0.0
        %2547 = vmatprep.subr.mxu0 0.0
        %2548 = vmatpush2.msra.mxu0 0.0
        %2549 = vmatprep.subr.mxu0 0.0
        %2550 = vmatpush2.msra.mxu0 0.0
        %2551 = vmatprep.subr.mxu0 0.0
        %2552 = vmatpush2.msra.mxu0 0.0
        %2553 = vmatprep.subr.mxu0 0.0
        %2554 = vmatpush2.msra.mxu0 0.0
        %2555 = vmatprep.mubr.f32.mxu0 0.0
        %2556 = vmatmul.mubr.f32.gmra.mxu0 %v2489
        %v2557 = vpop.f32.mrf.mxu0
        %v2558 = vadd.f32 %v2486, %v2557
        %v2559 = vpop.f32.mrf.mxu0
        %2560 = vdwg.mxu0
        %vm2561 = vcmask 253952
        %v2562 = vsel %vm2561, %v2558, 0.0
        %2563 = vadd.xlane.f32.xlu0 %v2562
        %v2564 = vpop.xlane.xlu0 %2563
        %v2565 = vmul.f32 %v2558, %v2558
        %v2566 = vsel %vm2561, %v2565, 0.0
        %2567 = vadd.xlane.f32.xlu0 %v2566
        %v2568 = vpop.xlane.xlu0 %2567
        %v2569 = vmul.f32 %v2564, 0.03125
        %v2570 = vmul.f32 %v2564, %v2569
        %v2571 = vsub.f32 %v2568, %v2570
        %v2572 = vmax.f32 %v2571, 0.0
        %v2573 = vmul.f32 %v2572, 0.032258064
        %v2574 = vrsqrt.pop %v2573
        %v2575 = vmul.f32 %v2573, %v2574
        %vm2576 = vcmp.eq.f32.partialorder %v2573, inf
        %v2577 = vsel %vm2576, %v2573, %v2575
        %vm2578 = vcmp.eq.f32.partialorder %v2573, 0.0
        %v2579 = vand.u32 %v2573, 2147483648
        %v2580 = vsel %vm2578, %v2579, %v2577
        %v2581 = vadd.f32 %v2580, 1e-06
        %v2582 = vrcp.pop %v2581
        %v2583 = vsub.f32 %v2558, %v2569
        %v2584 = vmul.f32 %v2583, %v2582
        %2585 = vrot.lane.b32.xlu0 %v277, 64
        %v2586 = vpop.permute.xlu0 %2585
        %v2587 = vrot.slane %v2586, 6
        %v2589 = vmul.f32 %v2587, %v2584
        %2590 = vrot.lane.b32.xlu0 %v277, 32
        %v2591 = vpop.permute.xlu0 %2590
        %v2592 = vrot.slane %v2591, 6
        %v2594 = vadd.f32 %v2589, %v2592
        %v2595 = vmul.f32 %v2594, 0.2
        %v2596 = vmax.f32 %v2594, %v2595
        %v2597 = vlaneseq
        %v2598 = vshrl.u32 %v2597, 7
        %v2599 = vsub.s32 7, %v2598
        %v2600 = vrot.slane %v277, %v2599
        %vm2602 = vcmask 261120
        %v2604 = vsel %vm2602, %v2596, 0
        %2606 = vmatprep.subr.mxu0 0.0
        %2607 = vmatpush1.msra.mxu0 0.0
        %2608 = vmatprep.subr.mxu0 0.0
        %2609 = vmatpush1.msra.mxu0 0.0
        %2610 = vmatprep.subr.mxu0 0.0
        %2611 = vmatpush1.msra.mxu0 0.0
        %2612 = vmatprep.subr.mxu0 0.0
        %2613 = vmatpush1.msra.mxu0 0.0
        %2614 = vmatprep.subr.mxu0 0.0
        %2615 = vmatpush1.msra.mxu0 0.0
        %2616 = vmatprep.subr.mxu0 0.0
        %2617 = vmatpush1.msra.mxu0 0.0
        %2618 = vmatprep.subr.mxu0 0.0
        %2619 = vmatpush1.msra.mxu0 0.0
        %2620 = vmatprep.subr.mxu0 0.0
        %2621 = vmatpush1.msra.mxu0 0.0
        %2622 = vmatprep.subr.mxu0 0.0
        %2623 = vmatpush1.msra.mxu0 0.0
        %2624 = vmatprep.subr.mxu0 0.0
        %2625 = vmatpush1.msra.mxu0 0.0
        %2626 = vmatprep.subr.mxu0 0.0
        %2627 = vmatpush1.msra.mxu0 0.0
        %2628 = vmatprep.subr.mxu0 0.0
        %2629 = vmatpush1.msra.mxu0 0.0
        %2630 = vmatprep.subr.mxu0 0.0
        %2631 = vmatpush1.msra.mxu0 %v291
        %2632 = vmatprep.subr.mxu0 0.0
        %2633 = vmatpush1.msra.mxu0 %v290
        %2634 = vmatprep.subr.mxu0 0.0
        %2635 = vmatpush1.msra.mxu0 %v289
        %2636 = vmatprep.subr.mxu0 0.0
        %2637 = vmatpush1.msra.mxu0 %v288
        %2638 = vmatprep.subr.mxu0 0.0
        %2639 = vmatpush2.msra.mxu0 0.0
        %2640 = vmatprep.subr.mxu0 0.0
        %2641 = vmatpush2.msra.mxu0 0.0
        %2642 = vmatprep.subr.mxu0 0.0
        %2643 = vmatpush2.msra.mxu0 0.0
        %2644 = vmatprep.subr.mxu0 0.0
        %2645 = vmatpush2.msra.mxu0 0.0
        %2646 = vmatprep.subr.mxu0 0.0
        %2647 = vmatpush2.msra.mxu0 0.0
        %2648 = vmatprep.subr.mxu0 0.0
        %2649 = vmatpush2.msra.mxu0 0.0
        %2650 = vmatprep.subr.mxu0 0.0
        %2651 = vmatpush2.msra.mxu0 0.0
        %2652 = vmatprep.subr.mxu0 0.0
        %2653 = vmatpush2.msra.mxu0 0.0
        %2654 = vmatprep.subr.mxu0 0.0
        %2655 = vmatpush2.msra.mxu0 0.0
        %2656 = vmatprep.subr.mxu0 0.0
        %2657 = vmatpush2.msra.mxu0 0.0
        %2658 = vmatprep.subr.mxu0 0.0
        %2659 = vmatpush2.msra.mxu0 0.0
        %2660 = vmatprep.subr.mxu0 0.0
        %2661 = vmatpush2.msra.mxu0 0.0
        %2662 = vmatprep.subr.mxu0 0.0
        %2663 = vmatpush2.msra.mxu0 0.0
        %2664 = vmatprep.subr.mxu0 0.0
        %2665 = vmatpush2.msra.mxu0 0.0
        %2666 = vmatprep.subr.mxu0 0.0
        %2667 = vmatpush2.msra.mxu0 0.0
        %2668 = vmatprep.subr.mxu0 0.0
        %2669 = vmatpush2.msra.mxu0 0.0
        %2670 = vmatprep.mubr.f32.mxu0 0.0
        %2671 = vmatmul.mubr.f32.gmra.mxu0 %v2604
        %v2672 = vpop.f32.mrf.mxu0
        %v2673 = vadd.f32 %v2600, %v2672
        %v2674 = vpop.f32.mrf.mxu0
        %2675 = vdwg.mxu0
        %v2676 = vsel %vm2561, %v2673, 0.0
        %2677 = vadd.xlane.f32.xlu0 %v2676
        %v2678 = vpop.xlane.xlu0 %2677
        %v2679 = vmul.f32 %v2673, %v2673
        %v2680 = vsel %vm2561, %v2679, 0.0
        %2681 = vadd.xlane.f32.xlu0 %v2680
        %v2682 = vpop.xlane.xlu0 %2681
        %v2683 = vmul.f32 %v2678, 0.03125
        %v2684 = vmul.f32 %v2678, %v2683
        %v2685 = vsub.f32 %v2682, %v2684
        %v2686 = vmax.f32 %v2685, 0.0
        %v2687 = vmul.f32 %v2686, 0.032258064
        %v2688 = vrsqrt.pop %v2687
        %v2689 = vmul.f32 %v2687, %v2688
        %vm2690 = vcmp.eq.f32.partialorder %v2687, inf
        %v2691 = vsel %vm2690, %v2687, %v2689
        %vm2692 = vcmp.eq.f32.partialorder %v2687, 0.0
        %v2693 = vand.u32 %v2687, 2147483648
        %v2694 = vsel %vm2692, %v2693, %v2691
        %v2695 = vadd.f32 %v2694, 1e-06
        %v2696 = vrcp.pop %v2695
        %v2697 = vsub.f32 %v2673, %v2683
        %v2698 = vmul.f32 %v2697, %v2696
        %2699 = vrot.lane.b32.xlu0 %v277, 96
        %v2700 = vpop.permute.xlu0 %2699
        %v2701 = vrot.slane %v2700, 7
        %v2703 = vmul.f32 %v2701, %v2698
        %v2704 = vrot.slane %v2586, 7
        %v2706 = vadd.f32 %v2703, %v2704
        %v2707 = vmul.f32 %v2706, 0.2
        %v2708 = vmax.f32 %v2706, %v2707
        %2709 = vrot.lane.b32.xlu0 %v2600, 32
        %v2710 = vpop.permute.xlu0 %2709
        %v2713 = vsel %vm2602, %v2708, 0
        %2715 = vmatprep.subr.mxu0 0.0
        %2716 = vmatpush1.msra.mxu0 0.0
        %2717 = vmatprep.subr.mxu0 0.0
        %2718 = vmatpush1.msra.mxu0 0.0
        %2719 = vmatprep.subr.mxu0 0.0
        %2720 = vmatpush1.msra.mxu0 0.0
        %2721 = vmatprep.subr.mxu0 0.0
        %2722 = vmatpush1.msra.mxu0 0.0
        %2723 = vmatprep.subr.mxu0 0.0
        %2724 = vmatpush1.msra.mxu0 0.0
        %2725 = vmatprep.subr.mxu0 0.0
        %2726 = vmatpush1.msra.mxu0 0.0
        %2727 = vmatprep.subr.mxu0 0.0
        %2728 = vmatpush1.msra.mxu0 0.0
        %2729 = vmatprep.subr.mxu0 0.0
        %2730 = vmatpush1.msra.mxu0 0.0
        %2731 = vmatprep.subr.mxu0 0.0
        %2732 = vmatpush1.msra.mxu0 0.0
        %2733 = vmatprep.subr.mxu0 0.0
        %2734 = vmatpush1.msra.mxu0 0.0
        %2735 = vmatprep.subr.mxu0 0.0
        %2736 = vmatpush1.msra.mxu0 0.0
        %2737 = vmatprep.subr.mxu0 0.0
        %2738 = vmatpush1.msra.mxu0 0.0
        %2739 = vmatprep.subr.mxu0 0.0
        %2740 = vmatpush1.msra.mxu0 %v295
        %2741 = vmatprep.subr.mxu0 0.0
        %2742 = vmatpush1.msra.mxu0 %v294
        %2743 = vmatprep.subr.mxu0 0.0
        %2744 = vmatpush1.msra.mxu0 %v293
        %2745 = vmatprep.subr.mxu0 0.0
        %2746 = vmatpush1.msra.mxu0 %v292
        %2747 = vmatprep.subr.mxu0 0.0
        %2748 = vmatpush2.msra.mxu0 0.0
        %2749 = vmatprep.subr.mxu0 0.0
        %2750 = vmatpush2.msra.mxu0 0.0
        %2751 = vmatprep.subr.mxu0 0.0
        %2752 = vmatpush2.msra.mxu0 0.0
        %2753 = vmatprep.subr.mxu0 0.0
        %2754 = vmatpush2.msra.mxu0 0.0
        %2755 = vmatprep.subr.mxu0 0.0
        %2756 = vmatpush2.msra.mxu0 0.0
        %2757 = vmatprep.subr.mxu0 0.0
        %2758 = vmatpush2.msra.mxu0 0.0
        %2759 = vmatprep.subr.mxu0 0.0
        %2760 = vmatpush2.msra.mxu0 0.0
        %2761 = vmatprep.subr.mxu0 0.0
        %2762 = vmatpush2.msra.mxu0 0.0
        %2763 = vmatprep.subr.mxu0 0.0
        %2764 = vmatpush2.msra.mxu0 0.0
        %2765 = vmatprep.subr.mxu0 0.0
        %2766 = vmatpush2.msra.mxu0 0.0
        %2767 = vmatprep.subr.mxu0 0.0
        %2768 = vmatpush2.msra.mxu0 0.0
        %2769 = vmatprep.subr.mxu0 0.0
        %2770 = vmatpush2.msra.mxu0 0.0
        %2771 = vmatprep.subr.mxu0 0.0
        %2772 = vmatpush2.msra.mxu0 0.0
        %2773 = vmatprep.subr.mxu0 0.0
        %2774 = vmatpush2.msra.mxu0 0.0
        %2775 = vmatprep.subr.mxu0 0.0
        %2776 = vmatpush2.msra.mxu0 0.0
        %2777 = vmatprep.subr.mxu0 0.0
        %2778 = vmatpush2.msra.mxu0 0.0
        %2779 = vmatprep.mubr.f32.mxu0 0.0
        %2780 = vmatmul.mubr.f32.gmra.mxu0 %v2713
        %v2781 = vpop.f32.mrf.mxu0
        %v2782 = vadd.f32 %v2710, %v2781
        %v2783 = vpop.f32.mrf.mxu0
        %2784 = vdwg.mxu0
        %vm2785 = vcmask 73728
        %v2786 = vsel %vm2785, %v2782, -inf
        %2787 = vmax.xlane.f32.xlu0 %v2786
        %v2788 = vpop.xlane.xlu0 %2787
        %v2789 = vsub.f32 %v2782, %v2788
        %v2790 = vmul.f32 %v2789, 1.442695
        %v2791 = vpow.pop %v2790
        %v2792 = vsel %vm2785, %v2791, 0.0
        %2793 = vadd.xlane.f32.xlu0 %v2792
        %v2794 = vpop.xlane.xlu0 %2793
        %v2795 = vlog2.pop %v2794
        %v2796 = vmul.f32 %v2795, 0.6931472
        %v2797 = vsub.f32 %v2789, %v2796
        %2798 = vst.msk [vmem:[%s268] sm:$0x1] %vm2785, %v2797
        %s2799 = sand.u32 %s181, 1
        %s2800 = scalar_lea.sflag [#allocation3], %s2799
        %s2801 = sand.u32 %s181, 1
        %s2802 = scalar_lea.vmem [#allocation2], %s2801
        // Predicated region
        $region49: #{sincnet_forward.1} parent=47 // pred_check
          %p2803 = pneg %p191
        $region50: #{sincnet_forward.1} parent=47 // pred_check_branch
          %2805 = sbr.rel (%p2803) target = $region52
        $region51: #{sincnet_forward.1} parent=47 // pred_region
          %s2807 = ssub.s32 16, 16
          %2808 = vsyncadd %s2800, %s2807
          %s2809 = smul.addr %s21, 16
          %s2810 = scalar_lea.hbm %s7, %s2809
          %s2812 = sshll.u32 %s2802, 4
          %s2813 = int_to_ptr.vmem [resolvable:$true] %s2812
          %2815 = dma.vmem_to_hbm [thread:$0]  %s2813, 16, %s2810, %s2800
        $region52: #{sincnet_forward.1} parent=47 // pred_fallthru
          _
      $region48: #{sincnet_forward.1} parent=5 // pred_fallthru
        _
      %p2816 = scmp.le.s32.totalorder 2, %s16
      // Predicated region
      $region53: #{sincnet_forward.1} parent=5 // pred_check
        %p2817 = pneg %p2816
      $region54: #{sincnet_forward.1} parent=5 // pred_check_branch
        %2819 = sbr.rel (%p2817) target = $region56
      $region55: #{sincnet_forward.1} parent=5 // pred_region
        %s2820 = ssub.s32 %s16, 2
        // Predicated region
        $region57: #{sincnet_forward.1} parent=55 // pred_check
          %p2821 = pneg %p197
        $region58: #{sincnet_forward.1} parent=55 // pred_check_branch
          %2823 = sbr.rel (%p2821) target = $region60
        $region59: #{sincnet_forward.1} parent=55 // pred_region
          %s2824 = sand.u32 %s182, 1
          %s2825 = scalar_lea.sflag [#allocation3], %s2824
          %s2826 = sand.u32 %s182, 1
          %s2827 = scalar_lea.vmem [#allocation2], %s2826
          %2828 = dma.done %s2825, 16
        $region60: #{sincnet_forward.1} parent=55 // pred_fallthru
          _
      $region56: #{sincnet_forward.1} parent=5 // pred_fallthru
        _
    $region6: #{sincnet_forward.1} parent=1 // loop_footer
      %s20 = sadd.s32 1, %s16
    $region7: #{sincnet_forward.1} parent=1 // loop_footer_branch
      %15 = sbr.rel target = $region3
    $region8: #{sincnet_forward.1} parent=1 // loop_exit
      _
    %2829 = vsyncpa [#allocation3], 1
    %s2830 = scalar_lea.sflag [#allocation3], 1
    %2831 = vsyncpa %s2830, 1

</llo_original>
